<compile_context>
chip_gen: v6e
topology: v6e:2x2x1
jax: 0.10.0
libtpu: 0.0.40
codegen_flags: <defaults>
</compile_context>

<pallas_src>
import functools

import jax
import jax.numpy as jnp
from jax import lax
from jax.experimental import pallas as pl
from jax.experimental.pallas import tpu as pltpu

EPS = 1e-5


def _basic_block_kernel(xcol_ref, xres_ref, w1_ref, b1_ref, w2_ref, b2_ref,
                        out_ref, pad2, *, H, W):
  """One batch element per grid step.

  xcol_ref : (1, H*W, 9*Cin)  bf16   im2col of the conv1 input (built in wrapper)
  xres_ref : (1, H*W, Cp)     f32    channel-padded residual (lane-dense)
  w1_ref   : (9*Cin, Cp)      bf16   conv1 weights with BN1 scale folded in
  b1_ref   : (1, Cp)          f32    folded BN1 bias
  w2_ref   : (3, 3, Cp, Cp)   bf16   conv2 weights with BN2 scale folded in
  b2_ref   : (1, Cp)          f32    folded BN2 bias
  out_ref  : (1, H*W, Cp)     f32    lane-dense output slab
  pad2     : VMEM (H+2, W+2, Cp) bf16 scratch for conv2's padded input
  """
  HW = H * W
  Cp = out_ref.shape[2]

  # ---- conv1 (+BN1 scale): one im2col matmul on the MXU; bias + ReLU in f32 ----
  acc1 = jnp.dot(xcol_ref[0], w1_ref[...], preferred_element_type=jnp.float32)
  out1 = jnp.maximum(acc1 + b1_ref[...], 0.0)

  # ---- stage out1 into the padded scratch; zero only the 1-element border ----
  # (interior is fully overwritten every grid step, so no full-scratch zero sweep)
  zrow = jnp.zeros((1, W + 2, Cp), jnp.bfloat16)
  zcol = jnp.zeros((H + 2, 1, Cp), jnp.bfloat16)
  pad2[0:1, :, :] = zrow
  pad2[H + 1:H + 2, :, :] = zrow
  pad2[:, 0:1, :] = zcol
  pad2[:, W + 1:W + 2, :] = zcol
  pad2[1:H + 1, 1:W + 1, :] = out1.astype(jnp.bfloat16).reshape(H, W, Cp)

  # ---- conv2 (+BN2 scale): 9 shifted taps; K = Cp >= 128 keeps the MXU full ----
  acc2 = jnp.zeros((HW, Cp), jnp.float32)
  for dy in range(3):
    for dx in range(3):
      patch = pad2[dy:dy + H, dx:dx + W, :].reshape(HW, Cp)
      acc2 = acc2 + jnp.dot(patch, w2_ref[dy, dx],
                            preferred_element_type=jnp.float32)

  # ---- bias + residual add + ReLU (f32), lane-dense store ----
  out_ref[0] = jnp.maximum(acc2 + b2_ref[...] + xres_ref[0], 0.0)


def basic_block_pallas(x_nchw, params):
  """Forward pass of BasicBlock (stride=1, downsample=None). Input/output NCHW."""
  (w1, g1, be1, m1, v1, w2, g2, be2, m2, v2) = params
  N, Cin, H, W = x_nchw.shape
  Cout = w1.shape[0]
  assert Cin == Cout, "identity residual requires inplanes == planes"

  Cp = ((Cout + 127) // 128) * 128          # lane-dense channel padding
  K1 = 9 * Cin

  # ---- fold BN (inference mode) into per-channel scale / bias ----
  s1 = g1 / jnp.sqrt(v1 + EPS)
  b1 = be1 - m1 * s1
  s2 = g2 / jnp.sqrt(v2 + EPS)
  b2 = be2 - m2 * s2

  # conv1: OIHW -> (kh*kw*Cin, Cout); fold BN1 scale into columns; pad Cout; bf16.
  w1_col = jnp.transpose(w1, (2, 3, 1, 0)).reshape(K1, Cout) * s1[None, :]
  w1_col = jnp.pad(w1_col, ((0, 0), (0, Cp - Cout))).astype(jnp.bfloat16)

  # conv2: OIHW -> (kh, kw, Cin, Cout); fold BN2 scale; pad both channel dims; bf16.
  w2_k = jnp.transpose(w2, (2, 3, 1, 0)) * s2[None, None, None, :]
  w2_k = jnp.pad(
      w2_k, ((0, 0), (0, 0), (0, Cp - Cout), (0, Cp - Cout))).astype(jnp.bfloat16)

  b1_p = jnp.pad(b1, (0, Cp - Cout)).reshape(1, Cp).astype(jnp.float32)
  b2_p = jnp.pad(b2, (0, Cp - Cout)).reshape(1, Cp).astype(jnp.float32)

  # ---- activations: NCHW -> NHWC; im2col for conv1 (bf16); residual slab (f32) ----
  x_nhwc = jnp.transpose(x_nchw, (0, 2, 3, 1)).astype(jnp.float32)
  xpad = jnp.pad(x_nhwc, ((0, 0), (1, 1), (1, 1), (0, 0)))
  taps = [xpad[:, dy:dy + H, dx:dx + W, :] for dy in range(3) for dx in range(3)]
  xcol = jnp.concatenate(taps, axis=-1).reshape(N, H * W, K1).astype(jnp.bfloat16)
  xres = jnp.pad(x_nhwc, ((0, 0), (0, 0), (0, 0), (0, Cp - Cin))).reshape(N, H * W, Cp)

  flops = 2 * 2 * N * H * W * 9 * Cin * Cout
  bytes_accessed = (xcol.size * 2 + xres.size * 4 + N * H * W * Cp * 4
                    + w1_col.size * 2 + w2_k.size * 2
                    + (b1_p.size + b2_p.size) * 4)

  kernel = functools.partial(_basic_block_kernel, H=H, W=W)
  out_slab = pl.pallas_call(
      kernel,
      out_shape=jax.ShapeDtypeStruct((N, H * W, Cp), jnp.float32),
      grid_spec=pltpu.PrefetchScalarGridSpec(
          num_scalar_prefetch=0,
          grid=(N,),
          in_specs=[
              pl.BlockSpec((1, H * W, K1), lambda n: (n, 0, 0)),
              pl.BlockSpec((1, H * W, Cp), lambda n: (n, 0, 0)),
              pl.BlockSpec((K1, Cp), lambda n: (0, 0)),
              pl.BlockSpec((1, Cp), lambda n: (0, 0)),
              pl.BlockSpec((3, 3, Cp, Cp), lambda n: (0, 0, 0, 0)),
              pl.BlockSpec((1, Cp), lambda n: (0, 0)),
          ],
          out_specs=pl.BlockSpec((1, H * W, Cp), lambda n: (n, 0, 0)),
          scratch_shapes=[pltpu.VMEM((H + 2, W + 2, Cp), jnp.bfloat16)],
      ),
      compiler_params=pltpu.CompilerParams(
          dimension_semantics=("parallel",)),
      cost_estimate=pl.CostEstimate(flops=int(flops), transcendentals=0,
                                    bytes_accessed=int(bytes_accessed)),
  )(xcol, xres, w1_col, b1_p, w2_k, b2_p)

  out_nhwc = out_slab.reshape(N, H, W, Cp)[..., :Cout]
  return jnp.transpose(out_nhwc, (0, 3, 1, 2))  # back to NCHW


def basic_block_reference(x_nchw, params):
  """Pure-JAX NCHW reference matching PyTorch eval-mode semantics (f32)."""
  (w1, g1, be1, m1, v1, w2, g2, be2, m2, v2) = params

  def conv3x3(x, w):
    return lax.conv_general_dilated(
        x, w, window_strides=(1, 1), padding=((1, 1), (1, 1)),
        dimension_numbers=("NCHW", "OIHW", "NCHW"))

  def bn(x, g, b, m, v):
    g, b, m, v = (t.reshape(1, -1, 1, 1) for t in (g, b, m, v))
    return (x - m) / jnp.sqrt(v + EPS) * g + b

  out = jnp.maximum(bn(conv3x3(x_nchw, w1), g1, be1, m1, v1), 0.0)
  out = bn(conv3x3(out, w2), g2, be2, m2, v2)
  return jnp.maximum(out + x_nchw, 0.0)


def make_params(key, inplanes, planes):
  ks = jax.random.split(key, 10)
  w1 = 0.1 * jax.random.normal(ks[0], (planes, inplanes, 3, 3), jnp.float32)
  g1 = jax.random.uniform(ks[1], (planes,), jnp.float32, 0.5, 1.5)
  be1 = 0.1 * jax.random.normal(ks[2], (planes,), jnp.float32)
  m1 = 0.1 * jax.random.normal(ks[3], (planes,), jnp.float32)
  v1 = jax.random.uniform(ks[4], (planes,), jnp.float32, 0.5, 1.5)
  w2 = 0.1 * jax.random.normal(ks[5], (planes, planes, 3, 3), jnp.float32)
  g2 = jax.random.uniform(ks[6], (planes,), jnp.float32, 0.5, 1.5)
  be2 = 0.1 * jax.random.normal(ks[7], (planes,), jnp.float32)
  m2 = 0.1 * jax.random.normal(ks[8], (planes,), jnp.float32)
  v2 = jax.random.uniform(ks[9], (planes,), jnp.float32, 0.5, 1.5)
  return (w1, g1, be1, m1, v1, w2, g2, be2, m2, v2)


if __name__ == "__main__":
  key = jax.random.PRNGKey(0)
  k_x, k_p = jax.random.split(key)

  N, C, H, W = 2, 4, 16, 16           # inplanes == planes == 4, stride=1
  x = jax.random.normal(k_x, (N, C, H, W), jnp.float32)
  params = make_params(k_p, C, C)

  out = jax.block_until_ready(basic_block_pallas(x, params))
  ref = jax.block_until_ready(basic_block_reference(x, params))

  assert out.shape == (N, C, H, W)
  max_err = float(jnp.max(jnp.abs(out - ref)))
  # bf16 matmul path vs f32 reference -> loosened tolerance.
  assert jnp.allclose(out, ref, atol=5e-2, rtol=5e-2), max_err
  print("KERNEL_OK")
</pallas_src>

<mosaic_0001>
module attributes {stable_mosaic.version = 11 : i64} {
  func.func @_basic_block_kernel(%arg0: i32, %arg1: memref<1x256x36xbf16, #tpu.memory_space<vmem>>, %arg2: memref<1x256x128xf32, #tpu.memory_space<vmem>>, %arg3: memref<36x128xbf16, #tpu.memory_space<vmem>>, %arg4: memref<1x128xf32, #tpu.memory_space<vmem>>, %arg5: memref<3x3x128x128xbf16, #tpu.memory_space<vmem>>, %arg6: memref<1x128xf32, #tpu.memory_space<vmem>>, %arg7: memref<1x256x128xf32, #tpu.memory_space<vmem>>, %arg8: memref<18x18x128xbf16, #tpu.memory_space<vmem>>) attributes {dimension_semantics = [#tpu.dimension_semantics<parallel>], iteration_bounds = array<i64: 2>, scalar_prefetch = 0 : i64, scratch_operands = 1 : i64, tpu.core_type = #tpu.core_type<tc>, window_params = [{transform_indices = @transform_0, window_bounds = array<i64: 1, 256, 36>}, {transform_indices = @transform_1, window_bounds = array<i64: 1, 256, 128>}, {pipeline_mode = #tpu.pipeline_mode<synchronous>, transform_indices = @transform_2, window_bounds = array<i64: 36, 128>}, {pipeline_mode = #tpu.pipeline_mode<synchronous>, transform_indices = @transform_3, window_bounds = array<i64: 1, 128>}, {pipeline_mode = #tpu.pipeline_mode<synchronous>, transform_indices = @transform_4, window_bounds = array<i64: 3, 3, 128, 128>}, {pipeline_mode = #tpu.pipeline_mode<synchronous>, transform_indices = @transform_5, window_bounds = array<i64: 1, 128>}, {transform_indices = @transform_6, window_bounds = array<i64: 1, 256, 128>}]} {
    %c0 = arith.constant 0 : index
    %c0_0 = arith.constant 0 : index
    %c0_1 = arith.constant 0 : index
    %0 = vector.load %arg1[%c0, %c0_0, %c0_1] : memref<1x256x36xbf16, #tpu.memory_space<vmem>>, vector<1x256x36xbf16>
    %1 = vector.shape_cast %0 : vector<1x256x36xbf16> to vector<256x36xbf16>
    %c0_2 = arith.constant 0 : index
    %c0_3 = arith.constant 0 : index
    %2 = vector.load %arg3[%c0_2, %c0_3] : memref<36x128xbf16, #tpu.memory_space<vmem>>, vector<36x128xbf16>
    %cst = arith.constant dense<0.000000e+00> : vector<256x128xf32>
    %3 = tpu.matmul %1, %2, %cst {dimension_numbers = #tpu.dot_dimension_numbers<[1], [0], [0], [1], [0, 0, 1, 1], [], []>} : vector<256x36xbf16>, vector<36x128xbf16>, vector<256x128xf32> -> vector<256x128xf32>
    %c0_4 = arith.constant 0 : index
    %c0_5 = arith.constant 0 : index
    %4 = vector.load %arg4[%c0_4, %c0_5] : memref<1x128xf32, #tpu.memory_space<vmem>>, vector<1x128xf32>
    %5 = vector.broadcast %4 : vector<1x128xf32> to vector<256x128xf32>
    %6 = arith.addf %3, %5 : vector<256x128xf32>
    %cst_6 = arith.constant 0.000000e+00 : f32
    %7 = vector.broadcast %cst_6 : f32 to vector<256x128xf32>
    %8 = arith.maximumf %6, %7 : vector<256x128xf32>
    %cst_7 = arith.constant 0.000000e+00 : bf16
    %9 = vector.broadcast %cst_7 : bf16 to vector<1x18x128xbf16>
    %cst_8 = arith.constant 0.000000e+00 : bf16
    %10 = vector.broadcast %cst_8 : bf16 to vector<18x1x128xbf16>
    %c0_9 = arith.constant 0 : index
    %c0_10 = arith.constant 0 : index
    %c0_11 = arith.constant 0 : index
    %11 = vector.load %arg8[%c0_9, %c0_10, %c0_11] : memref<18x18x128xbf16, #tpu.memory_space<vmem>>, vector<1x18x128xbf16>
    tpu.vector_store %arg8[%c0_9, %c0_10, %c0_11], %9 {strides = array<i32>} : memref<18x18x128xbf16, #tpu.memory_space<vmem>>, vector<1x18x128xbf16>,
    %c17 = arith.constant 17 : index
    %c0_12 = arith.constant 0 : index
    %c0_13 = arith.constant 0 : index
    %12 = vector.load %arg8[%c17, %c0_12, %c0_13] : memref<18x18x128xbf16, #tpu.memory_space<vmem>>, vector<1x18x128xbf16>
    tpu.vector_store %arg8[%c17, %c0_12, %c0_13], %9 {strides = array<i32>} : memref<18x18x128xbf16, #tpu.memory_space<vmem>>, vector<1x18x128xbf16>,
    %c0_14 = arith.constant 0 : index
    %c0_15 = arith.constant 0 : index
    %c0_16 = arith.constant 0 : index
    %13 = vector.load %arg8[%c0_14, %c0_15, %c0_16] : memref<18x18x128xbf16, #tpu.memory_space<vmem>>, vector<18x1x128xbf16>
    tpu.vector_store %arg8[%c0_14, %c0_15, %c0_16], %10 {strides = array<i32>} : memref<18x18x128xbf16, #tpu.memory_space<vmem>>, vector<18x1x128xbf16>,
    %c0_17 = arith.constant 0 : index
    %c17_18 = arith.constant 17 : index
    %c0_19 = arith.constant 0 : index
    %14 = vector.load %arg8[%c0_17, %c17_18, %c0_19] : memref<18x18x128xbf16, #tpu.memory_space<vmem>>, vector<18x1x128xbf16>
    tpu.vector_store %arg8[%c0_17, %c17_18, %c0_19], %10 {strides = array<i32>} : memref<18x18x128xbf16, #tpu.memory_space<vmem>>, vector<18x1x128xbf16>,
    %15 = arith.truncf %8 : vector<256x128xf32> to vector<256x128xbf16>
    %16 = vector.shape_cast %15 : vector<256x128xbf16> to vector<16x16x128xbf16>
    %c1 = arith.constant 1 : index
    %c1_20 = arith.constant 1 : index
    %c0_21 = arith.constant 0 : index
    %17 = vector.load %arg8[%c1, %c1_20, %c0_21] : memref<18x18x128xbf16, #tpu.memory_space<vmem>>, vector<16x16x128xbf16>
    tpu.vector_store %arg8[%c1, %c1_20, %c0_21], %16 {strides = array<i32>} : memref<18x18x128xbf16, #tpu.memory_space<vmem>>, vector<16x16x128xbf16>,
    %cst_22 = arith.constant 0.000000e+00 : f32
    %18 = vector.broadcast %cst_22 : f32 to vector<256x128xf32>
    %c0_23 = arith.constant 0 : index
    %c0_24 = arith.constant 0 : index
    %c0_25 = arith.constant 0 : index
    %19 = vector.load %arg8[%c0_23, %c0_24, %c0_25] : memref<18x18x128xbf16, #tpu.memory_space<vmem>>, vector<16x16x128xbf16>
    %20 = vector.shape_cast %19 : vector<16x16x128xbf16> to vector<256x128xbf16>
    %c0_26 = arith.constant 0 : index
    %c0_27 = arith.constant 0 : index
    %c0_28 = arith.constant 0 : index
    %c0_29 = arith.constant 0 : index
    %21 = vector.load %arg5[%c0_26, %c0_27, %c0_28, %c0_29] : memref<3x3x128x128xbf16, #tpu.memory_space<vmem>>, vector<1x1x128x128xbf16>
    %22 = vector.shape_cast %21 : vector<1x1x128x128xbf16> to vector<128x128xbf16>
    %cst_30 = arith.constant dense<0.000000e+00> : vector<256x128xf32>
    %23 = tpu.matmul %20, %22, %cst_30 {dimension_numbers = #tpu.dot_dimension_numbers<[1], [0], [0], [1], [0, 0, 1, 1], [], []>} : vector<256x128xbf16>, vector<128x128xbf16>, vector<256x128xf32> -> vector<256x128xf32>
    %24 = arith.addf %18, %23 : vector<256x128xf32>
    %c0_31 = arith.constant 0 : index
    %c1_32 = arith.constant 1 : index
    %c0_33 = arith.constant 0 : index
    %25 = vector.load %arg8[%c0_31, %c1_32, %c0_33] : memref<18x18x128xbf16, #tpu.memory_space<vmem>>, vector<16x16x128xbf16>
    %26 = vector.shape_cast %25 : vector<16x16x128xbf16> to vector<256x128xbf16>
    %c0_34 = arith.constant 0 : index
    %c1_35 = arith.constant 1 : index
    %c0_36 = arith.constant 0 : index
    %c0_37 = arith.constant 0 : index
    %27 = vector.load %arg5[%c0_34, %c1_35, %c0_36, %c0_37] : memref<3x3x128x128xbf16, #tpu.memory_space<vmem>>, vector<1x1x128x128xbf16>
    %28 = vector.shape_cast %27 : vector<1x1x128x128xbf16> to vector<128x128xbf16>
    %cst_38 = arith.constant dense<0.000000e+00> : vector<256x128xf32>
    %29 = tpu.matmul %26, %28, %cst_38 {dimension_numbers = #tpu.dot_dimension_numbers<[1], [0], [0], [1], [0, 0, 1, 1], [], []>} : vector<256x128xbf16>, vector<128x128xbf16>, vector<256x128xf32> -> vector<256x128xf32>
    %30 = arith.addf %24, %29 : vector<256x128xf32>
    %c0_39 = arith.constant 0 : index
    %c2 = arith.constant 2 : index
    %c0_40 = arith.constant 0 : index
    %31 = vector.load %arg8[%c0_39, %c2, %c0_40] : memref<18x18x128xbf16, #tpu.memory_space<vmem>>, vector<16x16x128xbf16>
    %32 = vector.shape_cast %31 : vector<16x16x128xbf16> to vector<256x128xbf16>
    %c0_41 = arith.constant 0 : index
    %c2_42 = arith.constant 2 : index
    %c0_43 = arith.constant 0 : index
    %c0_44 = arith.constant 0 : index
    %33 = vector.load %arg5[%c0_41, %c2_42, %c0_43, %c0_44] : memref<3x3x128x128xbf16, #tpu.memory_space<vmem>>, vector<1x1x128x128xbf16>
    %34 = vector.shape_cast %33 : vector<1x1x128x128xbf16> to vector<128x128xbf16>
    %cst_45 = arith.constant dense<0.000000e+00> : vector<256x128xf32>
    %35 = tpu.matmul %32, %34, %cst_45 {dimension_numbers = #tpu.dot_dimension_numbers<[1], [0], [0], [1], [0, 0, 1, 1], [], []>} : vector<256x128xbf16>, vector<128x128xbf16>, vector<256x128xf32> -> vector<256x128xf32>
    %36 = arith.addf %30, %35 : vector<256x128xf32>
    %c1_46 = arith.constant 1 : index
    %c0_47 = arith.constant 0 : index
    %c0_48 = arith.constant 0 : index
    %37 = vector.load %arg8[%c1_46, %c0_47, %c0_48] : memref<18x18x128xbf16, #tpu.memory_space<vmem>>, vector<16x16x128xbf16>
    %38 = vector.shape_cast %37 : vector<16x16x128xbf16> to vector<256x128xbf16>
    %c1_49 = arith.constant 1 : index
    %c0_50 = arith.constant 0 : index
    %c0_51 = arith.constant 0 : index
    %c0_52 = arith.constant 0 : index
    %39 = vector.load %arg5[%c1_49, %c0_50, %c0_51, %c0_52] : memref<3x3x128x128xbf16, #tpu.memory_space<vmem>>, vector<1x1x128x128xbf16>
    %40 = vector.shape_cast %39 : vector<1x1x128x128xbf16> to vector<128x128xbf16>
    %cst_53 = arith.constant dense<0.000000e+00> : vector<256x128xf32>
    %41 = tpu.matmul %38, %40, %cst_53 {dimension_numbers = #tpu.dot_dimension_numbers<[1], [0], [0], [1], [0, 0, 1, 1], [], []>} : vector<256x128xbf16>, vector<128x128xbf16>, vector<256x128xf32> -> vector<256x128xf32>
    %42 = arith.addf %36, %41 : vector<256x128xf32>
    %c1_54 = arith.constant 1 : index
    %c1_55 = arith.constant 1 : index
    %c0_56 = arith.constant 0 : index
    %43 = vector.load %arg8[%c1_54, %c1_55, %c0_56] : memref<18x18x128xbf16, #tpu.memory_space<vmem>>, vector<16x16x128xbf16>
    %44 = vector.shape_cast %43 : vector<16x16x128xbf16> to vector<256x128xbf16>
    %c1_57 = arith.constant 1 : index
    %c1_58 = arith.constant 1 : index
    %c0_59 = arith.constant 0 : index
    %c0_60 = arith.constant 0 : index
    %45 = vector.load %arg5[%c1_57, %c1_58, %c0_59, %c0_60] : memref<3x3x128x128xbf16, #tpu.memory_space<vmem>>, vector<1x1x128x128xbf16>
    %46 = vector.shape_cast %45 : vector<1x1x128x128xbf16> to vector<128x128xbf16>
    %cst_61 = arith.constant dense<0.000000e+00> : vector<256x128xf32>
    %47 = tpu.matmul %44, %46, %cst_61 {dimension_numbers = #tpu.dot_dimension_numbers<[1], [0], [0], [1], [0, 0, 1, 1], [], []>} : vector<256x128xbf16>, vector<128x128xbf16>, vector<256x128xf32> -> vector<256x128xf32>
    %48 = arith.addf %42, %47 : vector<256x128xf32>
    %c1_62 = arith.constant 1 : index
    %c2_63 = arith.constant 2 : index
    %c0_64 = arith.constant 0 : index
    %49 = vector.load %arg8[%c1_62, %c2_63, %c0_64] : memref<18x18x128xbf16, #tpu.memory_space<vmem>>, vector<16x16x128xbf16>
    %50 = vector.shape_cast %49 : vector<16x16x128xbf16> to vector<256x128xbf16>
    %c1_65 = arith.constant 1 : index
    %c2_66 = arith.constant 2 : index
    %c0_67 = arith.constant 0 : index
    %c0_68 = arith.constant 0 : index
    %51 = vector.load %arg5[%c1_65, %c2_66, %c0_67, %c0_68] : memref<3x3x128x128xbf16, #tpu.memory_space<vmem>>, vector<1x1x128x128xbf16>
    %52 = vector.shape_cast %51 : vector<1x1x128x128xbf16> to vector<128x128xbf16>
    %cst_69 = arith.constant dense<0.000000e+00> : vector<256x128xf32>
    %53 = tpu.matmul %50, %52, %cst_69 {dimension_numbers = #tpu.dot_dimension_numbers<[1], [0], [0], [1], [0, 0, 1, 1], [], []>} : vector<256x128xbf16>, vector<128x128xbf16>, vector<256x128xf32> -> vector<256x128xf32>
    %54 = arith.addf %48, %53 : vector<256x128xf32>
    %c2_70 = arith.constant 2 : index
    %c0_71 = arith.constant 0 : index
    %c0_72 = arith.constant 0 : index
    %55 = vector.load %arg8[%c2_70, %c0_71, %c0_72] : memref<18x18x128xbf16, #tpu.memory_space<vmem>>, vector<16x16x128xbf16>
    %56 = vector.shape_cast %55 : vector<16x16x128xbf16> to vector<256x128xbf16>
    %c2_73 = arith.constant 2 : index
    %c0_74 = arith.constant 0 : index
    %c0_75 = arith.constant 0 : index
    %c0_76 = arith.constant 0 : index
    %57 = vector.load %arg5[%c2_73, %c0_74, %c0_75, %c0_76] : memref<3x3x128x128xbf16, #tpu.memory_space<vmem>>, vector<1x1x128x128xbf16>
    %58 = vector.shape_cast %57 : vector<1x1x128x128xbf16> to vector<128x128xbf16>
    %cst_77 = arith.constant dense<0.000000e+00> : vector<256x128xf32>
    %59 = tpu.matmul %56, %58, %cst_77 {dimension_numbers = #tpu.dot_dimension_numbers<[1], [0], [0], [1], [0, 0, 1, 1], [], []>} : vector<256x128xbf16>, vector<128x128xbf16>, vector<256x128xf32> -> vector<256x128xf32>
    %60 = arith.addf %54, %59 : vector<256x128xf32>
    %c2_78 = arith.constant 2 : index
    %c1_79 = arith.constant 1 : index
    %c0_80 = arith.constant 0 : index
    %61 = vector.load %arg8[%c2_78, %c1_79, %c0_80] : memref<18x18x128xbf16, #tpu.memory_space<vmem>>, vector<16x16x128xbf16>
    %62 = vector.shape_cast %61 : vector<16x16x128xbf16> to vector<256x128xbf16>
    %c2_81 = arith.constant 2 : index
    %c1_82 = arith.constant 1 : index
    %c0_83 = arith.constant 0 : index
    %c0_84 = arith.constant 0 : index
    %63 = vector.load %arg5[%c2_81, %c1_82, %c0_83, %c0_84] : memref<3x3x128x128xbf16, #tpu.memory_space<vmem>>, vector<1x1x128x128xbf16>
    %64 = vector.shape_cast %63 : vector<1x1x128x128xbf16> to vector<128x128xbf16>
    %cst_85 = arith.constant dense<0.000000e+00> : vector<256x128xf32>
    %65 = tpu.matmul %62, %64, %cst_85 {dimension_numbers = #tpu.dot_dimension_numbers<[1], [0], [0], [1], [0, 0, 1, 1], [], []>} : vector<256x128xbf16>, vector<128x128xbf16>, vector<256x128xf32> -> vector<256x128xf32>
    %66 = arith.addf %60, %65 : vector<256x128xf32>
    %c2_86 = arith.constant 2 : index
    %c2_87 = arith.constant 2 : index
    %c0_88 = arith.constant 0 : index
    %67 = vector.load %arg8[%c2_86, %c2_87, %c0_88] : memref<18x18x128xbf16, #tpu.memory_space<vmem>>, vector<16x16x128xbf16>
    %68 = vector.shape_cast %67 : vector<16x16x128xbf16> to vector<256x128xbf16>
    %c2_89 = arith.constant 2 : index
    %c2_90 = arith.constant 2 : index
    %c0_91 = arith.constant 0 : index
    %c0_92 = arith.constant 0 : index
    %69 = vector.load %arg5[%c2_89, %c2_90, %c0_91, %c0_92] : memref<3x3x128x128xbf16, #tpu.memory_space<vmem>>, vector<1x1x128x128xbf16>
    %70 = vector.shape_cast %69 : vector<1x1x128x128xbf16> to vector<128x128xbf16>
    %cst_93 = arith.constant dense<0.000000e+00> : vector<256x128xf32>
    %71 = tpu.matmul %68, %70, %cst_93 {dimension_numbers = #tpu.dot_dimension_numbers<[1], [0], [0], [1], [0, 0, 1, 1], [], []>} : vector<256x128xbf16>, vector<128x128xbf16>, vector<256x128xf32> -> vector<256x128xf32>
    %72 = arith.addf %66, %71 : vector<256x128xf32>
    %c0_94 = arith.constant 0 : index
    %c0_95 = arith.constant 0 : index
    %73 = vector.load %arg6[%c0_94, %c0_95] : memref<1x128xf32, #tpu.memory_space<vmem>>, vector<1x128xf32>
    %74 = vector.broadcast %73 : vector<1x128xf32> to vector<256x128xf32>
    %75 = arith.addf %72, %74 : vector<256x128xf32>
    %c0_96 = arith.constant 0 : index
    %c0_97 = arith.constant 0 : index
    %c0_98 = arith.constant 0 : index
    %76 = vector.load %arg2[%c0_96, %c0_97, %c0_98] : memref<1x256x128xf32, #tpu.memory_space<vmem>>, vector<1x256x128xf32>
    %77 = vector.shape_cast %76 : vector<1x256x128xf32> to vector<256x128xf32>
    %78 = arith.addf %75, %77 : vector<256x128xf32>
    %cst_99 = arith.constant 0.000000e+00 : f32
    %79 = vector.broadcast %cst_99 : f32 to vector<256x128xf32>
    %80 = arith.maximumf %78, %79 : vector<256x128xf32>
    %c0_100 = arith.constant 0 : index
    %c0_101 = arith.constant 0 : index
    %c0_102 = arith.constant 0 : index
    %81 = vector.load %arg7[%c0_100, %c0_101, %c0_102] : memref<1x256x128xf32, #tpu.memory_space<vmem>>, vector<1x256x128xf32>
    %82 = vector.shape_cast %81 : vector<1x256x128xf32> to vector<256x128xf32>
    %83 = vector.shape_cast %80 : vector<256x128xf32> to vector<1x256x128xf32>
    tpu.vector_store %arg7[%c0_100, %c0_101, %c0_102], %83 {strides = array<i32>} : memref<1x256x128xf32, #tpu.memory_space<vmem>>, vector<1x256x128xf32>,
    return
  }
  func.func @transform_0(%arg0: i32) -> (i32, i32, i32) {
    %c0_i32 = arith.constant 0 : i32
    %c0_i32_0 = arith.constant 0 : i32
    %c0_i32_1 = arith.constant 0 : i32
    return %arg0, %c0_i32, %c0_i32_0 : i32, i32, i32
  }
  func.func @transform_1(%arg0: i32) -> (i32, i32, i32) {
    %c0_i32 = arith.constant 0 : i32
    %c0_i32_0 = arith.constant 0 : i32
    %c0_i32_1 = arith.constant 0 : i32
    return %arg0, %c0_i32, %c0_i32_0 : i32, i32, i32
  }
  func.func @transform_2(%arg0: i32) -> (i32, i32) {
    %c0_i32 = arith.constant 0 : i32
    %c0_i32_0 = arith.constant 0 : i32
    %c0_i32_1 = arith.constant 0 : i32
    return %c0_i32, %c0_i32_0 : i32, i32
  }
  func.func @transform_3(%arg0: i32) -> (i32, i32) {
    %c0_i32 = arith.constant 0 : i32
    %c0_i32_0 = arith.constant 0 : i32
    %c0_i32_1 = arith.constant 0 : i32
    return %c0_i32, %c0_i32_0 : i32, i32
  }
  func.func @transform_4(%arg0: i32) -> (i32, i32, i32, i32) {
    %c0_i32 = arith.constant 0 : i32
    %c0_i32_0 = arith.constant 0 : i32
    %c0_i32_1 = arith.constant 0 : i32
    %c0_i32_2 = arith.constant 0 : i32
    %c0_i32_3 = arith.constant 0 : i32
    return %c0_i32, %c0_i32_0, %c0_i32_1, %c0_i32_2 : i32, i32, i32, i32
  }
  func.func @transform_5(%arg0: i32) -> (i32, i32) {
    %c0_i32 = arith.constant 0 : i32
    %c0_i32_0 = arith.constant 0 : i32
    %c0_i32_1 = arith.constant 0 : i32
    return %c0_i32, %c0_i32_0 : i32, i32
  }
  func.func @transform_6(%arg0: i32) -> (i32, i32, i32) {
    %c0_i32 = arith.constant 0 : i32
    %c0_i32_0 = arith.constant 0 : i32
    %c0_i32_1 = arith.constant 0 : i32
    return %arg0, %c0_i32, %c0_i32_0 : i32, i32, i32
  }
}

</mosaic_0001>

<llo_original>
// kernel: tpu_custom_call.1
$region0: #{tpu_custom_call.1}
  #allocation0 [shape = 'u32[]', space=smem, size = 0x4, offset = 0x4, fixed_abs, tag = 'smem constant byte address 0x4 - core index']
  #allocation1 [shape = 'u32[144,128]{1,0:T(1,128)}', space=vmem, size = 0x12000, scoped, tag = 'internal scratch']
  #allocation2 [shape = 'bf16[18,18,128]{2,1,0:T(8,128)(2,1)}', space=vmem, size = 0x1b000, scoped, tag = 'scratch operand']
  %s0 = inlined_call_operand.vmem [shape: bf16[2,256,36], index: 0, kind: input, shape index: {}]
  %s1 = inlined_call_operand.hbm [shape: f32[2,256,128], index: 1, kind: input, shape index: {}]
  %s2 = inlined_call_operand.vmem [shape: bf16[36,128], index: 2, kind: input, shape index: {}]
  %s3 = inlined_call_operand.vmem [shape: f32[1,128], index: 3, kind: input, shape index: {}]
  %s4 = inlined_call_operand.hbm [shape: bf16[3,3,128,128], index: 4, kind: input, shape index: {}]
  %s5 = inlined_call_operand.vmem [shape: f32[1,128], index: 5, kind: input, shape index: {}]
  %s6 = inlined_call_operand.hbm [shape: f32[2,256,128], index: 6, kind: output, shape index: {}]
  %s7 = sld [smem:[#allocation0]]
  $region65: #{tpu_custom_call.1} parent=0
    _
  %s9 = ssub.s32 1, %s7
  %s10 = scalar_select 0, %s9, %s7
  $region1: #{tpu_custom_call.1} parent=0
    #allocation3 [shape = 'u8[262144]{0}', space=vmem, size = 0x40000, scoped, tag = 'input window, operand 1']
    #allocation4 [shape = 's32[2]{0}', space=sflag, size = 0x8, scoped, tag = 'scoped memory for tpu_custom_call.1']
    #allocation5 [shape = 's32[2]{0}', space=sflag, size = 0x8, scoped, tag = 'scoped memory for tpu_custom_call.1']
    #allocation6 [shape = 'u8[294912]{0}', space=vmem, size = 0x48000, scoped, tag = 'input window, operand 4, single buffered']
    #allocation7 [shape = 's32[1]{0}', space=sflag, size = 0x4, scoped, tag = 'scoped memory for tpu_custom_call.1']
    #allocation8 [shape = 'u8[262144]{0}', space=vmem, size = 0x40000, scoped, tag = 'output window, operand 0']
    %11 = vsyncpa [#allocation4], 0
    %s12 = scalar_lea.sflag [#allocation4], 1
    %13 = vsyncpa %s12, 0
    %14 = vsyncpa [#allocation7], 0
    %15 = vsyncpa [#allocation5], 0
    %s16 = scalar_lea.sflag [#allocation5], 1
    %17 = vsyncpa %s16, 0
    loop: start=0, step=1, limit=4
    $region2: #{tpu_custom_call.1} parent=1 // loop_pre_header
      _
    $region3: #{tpu_custom_call.1} parent=1 // loop_header
      %s19 = sphi 0, %s23
      %p20 = scmp.ge.s32.totalorder %s19, 4
      %s29 = sphi 0, %s31
      %s32 = sphi 0, %s29
      %s33 = sphi 0, %s32
      %s49 = sphi 0, %s33
      %s55 = sphi 0, %s57
      %s58 = sphi 0, %s55
      %s59 = sphi 0, %s58
      %s75 = sphi 0, %s59
      %s79 = sphi 0, %s79
      %s81 = sphi 0, %s79
      %s82 = sphi 0, %s81
      %s96 = sphi 0, %s82
      %s100 = sphi 0, %s100
      %s102 = sphi 0, %s100
      %s103 = sphi 0, %s102
      %s117 = sphi 0, %s103
      %s121 = sphi 0, %s121
      %s123 = sphi 0, %s121
      %s124 = sphi 0, %s123
      %s138 = sphi 0, %s124
      %s142 = sphi 0, %s142
      %s144 = sphi 0, %s142
      %s145 = sphi 0, %s144
      %s159 = sphi 0, %s145
      %s165 = sphi 0, %s167
      %s168 = sphi 0, %s165
      %s169 = sphi 0, %s168
      %s185 = sphi 0, %s169
    $region4: #{tpu_custom_call.1} parent=1 // loop_header_branch
      %22 = sbr.rel (%p20) target = $region8
    $region5: #{tpu_custom_call.1} parent=1 // loop_body
      %s24 = ssub.s32 %s19, 1
      %s25 = ssub.s32 %s19, 2
      %s26 = sadd.s32 %s19, 1
      %s27 = ssub.s32 %s19, %s26
      %p28 = scmp.eq.s32.totalorder %s27, 0
      %s30 = sadd.s32 %s29, 1
      %s31 = scalar_select %p28, %s29, %s30
      %p34 = pneg %p28
      %p35 = scmp.eq.s32.totalorder %s19, 1
      %p36 = por %p34, %p35
      %p37 = scmp.ne.s32.totalorder %s29, %s32
      %p38 = scmp.eq.s32.totalorder %s19, 0
      %p39 = por %p37, %p38
      %p40 = scmp.ne.s32.totalorder %s29, %s32
      %p41 = scmp.eq.s32.totalorder %s24, 1
      %p42 = por %p40, %p41
      %p43 = scmp.ne.s32.totalorder %s32, %s33
      %p44 = scmp.eq.s32.totalorder %s24, 0
      %p45 = por %p43, %p44
      %p46 = scmp.ne.s32.totalorder %s32, %s33
      %p47 = scmp.eq.s32.totalorder %s25, 1
      %p48 = por %p46, %p47
      %p50 = scmp.ne.s32.totalorder %s33, %s49
      %p51 = scmp.eq.s32.totalorder %s25, 0
      %p52 = por %p50, %p51
      %s53 = ssub.s32 %s19, %s26
      %p54 = scmp.eq.s32.totalorder %s53, 0
      %s56 = sadd.s32 %s55, 1
      %s57 = scalar_select %p54, %s55, %s56
      %p60 = pneg %p54
      %p61 = scmp.eq.s32.totalorder %s19, 1
      %p62 = por %p60, %p61
      %p63 = scmp.ne.s32.totalorder %s55, %s58
      %p64 = scmp.eq.s32.totalorder %s19, 0
      %p65 = por %p63, %p64
      %p66 = scmp.ne.s32.totalorder %s55, %s58
      %p67 = scmp.eq.s32.totalorder %s24, 1
      %p68 = por %p66, %p67
      %p69 = scmp.ne.s32.totalorder %s58, %s59
      %p70 = scmp.eq.s32.totalorder %s24, 0
      %p71 = por %p69, %p70
      %p72 = scmp.ne.s32.totalorder %s58, %s59
      %p73 = scmp.eq.s32.totalorder %s25, 1
      %p74 = por %p72, %p73
      %p76 = scmp.ne.s32.totalorder %s59, %s75
      %p77 = scmp.eq.s32.totalorder %s25, 0
      %p78 = por %p76, %p77
      %s80 = sadd.s32 %s79, 1
      %p83 = scmp.eq.s32.totalorder %s19, 1
      %p84 = scmp.ne.s32.totalorder %s79, %s81
      %p85 = scmp.eq.s32.totalorder %s19, 0
      %p86 = por %p84, %p85
      %p87 = scmp.ne.s32.totalorder %s79, %s81
      %p88 = scmp.eq.s32.totalorder %s24, 1
      %p89 = por %p87, %p88
      %p90 = scmp.ne.s32.totalorder %s81, %s82
      %p91 = scmp.eq.s32.totalorder %s24, 0
      %p92 = por %p90, %p91
      %p93 = scmp.ne.s32.totalorder %s81, %s82
      %p94 = scmp.eq.s32.totalorder %s25, 1
      %p95 = por %p93, %p94
      %p97 = scmp.ne.s32.totalorder %s82, %s96
      %p98 = scmp.eq.s32.totalorder %s25, 0
      %p99 = por %p97, %p98
      %s101 = sadd.s32 %s100, 1
      %p104 = scmp.eq.s32.totalorder %s19, 1
      %p105 = scmp.ne.s32.totalorder %s100, %s102
      %p106 = scmp.eq.s32.totalorder %s19, 0
      %p107 = por %p105, %p106
      %p108 = scmp.ne.s32.totalorder %s100, %s102
      %p109 = scmp.eq.s32.totalorder %s24, 1
      %p110 = por %p108, %p109
      %p111 = scmp.ne.s32.totalorder %s102, %s103
      %p112 = scmp.eq.s32.totalorder %s24, 0
      %p113 = por %p111, %p112
      %p114 = scmp.ne.s32.totalorder %s102, %s103
      %p115 = scmp.eq.s32.totalorder %s25, 1
      %p116 = por %p114, %p115
      %p118 = scmp.ne.s32.totalorder %s103, %s117
      %p119 = scmp.eq.s32.totalorder %s25, 0
      %p120 = por %p118, %p119
      %s122 = sadd.s32 %s121, 1
      %p125 = scmp.eq.s32.totalorder %s19, 1
      %p126 = scmp.ne.s32.totalorder %s121, %s123
      %p127 = scmp.eq.s32.totalorder %s19, 0
      %p128 = por %p126, %p127
      %p129 = scmp.ne.s32.totalorder %s121, %s123
      %p130 = scmp.eq.s32.totalorder %s24, 1
      %p131 = por %p129, %p130
      %p132 = scmp.ne.s32.totalorder %s123, %s124
      %p133 = scmp.eq.s32.totalorder %s24, 0
      %p134 = por %p132, %p133
      %p135 = scmp.ne.s32.totalorder %s123, %s124
      %p136 = scmp.eq.s32.totalorder %s25, 1
      %p137 = por %p135, %p136
      %p139 = scmp.ne.s32.totalorder %s124, %s138
      %p140 = scmp.eq.s32.totalorder %s25, 0
      %p141 = por %p139, %p140
      %s143 = sadd.s32 %s142, 1
      %p146 = scmp.eq.s32.totalorder %s19, 1
      %p147 = scmp.ne.s32.totalorder %s142, %s144
      %p148 = scmp.eq.s32.totalorder %s19, 0
      %p149 = por %p147, %p148
      %p150 = scmp.ne.s32.totalorder %s142, %s144
      %p151 = scmp.eq.s32.totalorder %s24, 1
      %p152 = por %p150, %p151
      %p153 = scmp.ne.s32.totalorder %s144, %s145
      %p154 = scmp.eq.s32.totalorder %s24, 0
      %p155 = por %p153, %p154
      %p156 = scmp.ne.s32.totalorder %s144, %s145
      %p157 = scmp.eq.s32.totalorder %s25, 1
      %p158 = por %p156, %p157
      %p160 = scmp.ne.s32.totalorder %s145, %s159
      %p161 = scmp.eq.s32.totalorder %s25, 0
      %p162 = por %p160, %p161
      %s163 = ssub.s32 %s19, %s26
      %p164 = scmp.eq.s32.totalorder %s163, 0
      %s166 = sadd.s32 %s165, 1
      %s167 = scalar_select %p164, %s165, %s166
      %p170 = pneg %p164
      %p171 = scmp.eq.s32.totalorder %s19, 1
      %p172 = por %p170, %p171
      %p173 = scmp.ne.s32.totalorder %s165, %s168
      %p174 = scmp.eq.s32.totalorder %s19, 0
      %p175 = por %p173, %p174
      %p176 = scmp.ne.s32.totalorder %s165, %s168
      %p177 = scmp.eq.s32.totalorder %s24, 1
      %p178 = por %p176, %p177
      %p179 = scmp.ne.s32.totalorder %s168, %s169
      %p180 = scmp.eq.s32.totalorder %s24, 0
      %p181 = por %p179, %p180
      %p182 = scmp.ne.s32.totalorder %s168, %s169
      %p183 = scmp.eq.s32.totalorder %s25, 1
      %p184 = por %p182, %p183
      %p186 = scmp.ne.s32.totalorder %s169, %s185
      %p187 = scmp.eq.s32.totalorder %s25, 0
      %p188 = por %p186, %p187
      %p189 = scmp.le.s32.totalorder 1, %s19
      %p190 = scmp.lt.s32.totalorder %s19, 3
      %p191 = pnand %p189, %p190
      %p192 = pneg %p191
      // Predicated region
      $region9: #{tpu_custom_call.1} parent=5 // pred_check
        _
      $region10: #{tpu_custom_call.1} parent=5 // pred_check_branch
        %194 = sbr.rel (%p191) target = $region12
      $region11: #{tpu_custom_call.1} parent=5 // pred_region
        %s195 = ssub.s32 %s19, 1
        // Predicated region
        $region13: #{tpu_custom_call.1} parent=11 // pred_check
          %p196 = pneg %p92
        $region14: #{tpu_custom_call.1} parent=11 // pred_check_branch
          %198 = sbr.rel (%p196) target = $region16
        $region15: #{tpu_custom_call.1} parent=11 // pred_region
          _
        $region16: #{tpu_custom_call.1} parent=11 // pred_fallthru
          _
        // Predicated region
        $region17: #{tpu_custom_call.1} parent=11 // pred_check
          %p199 = pneg %p113
        $region18: #{tpu_custom_call.1} parent=11 // pred_check_branch
          %201 = sbr.rel (%p199) target = $region20
        $region19: #{tpu_custom_call.1} parent=11 // pred_region
          _
        $region20: #{tpu_custom_call.1} parent=11 // pred_fallthru
          _
        // Predicated region
        $region21: #{tpu_custom_call.1} parent=11 // pred_check
          %p202 = pneg %p134
        $region22: #{tpu_custom_call.1} parent=11 // pred_check_branch
          %204 = sbr.rel (%p202) target = $region24
        $region23: #{tpu_custom_call.1} parent=11 // pred_region
          %s206 = ssub.s32 9216, 9216
          %207 = vsyncadd [#allocation7], %s206
          %s208 = sshll.u32 [#allocation6], 4
          %s209 = int_to_ptr.vmem [resolvable:$true] %s208
          %214 = dma.hbm_to_vmem [thread:$0]  %s4, 9216, %s209, [#allocation7], 64, 64, 4
        $region24: #{tpu_custom_call.1} parent=11 // pred_fallthru
          _
        // Predicated region
        $region25: #{tpu_custom_call.1} parent=11 // pred_check
          %p215 = pneg %p155
        $region26: #{tpu_custom_call.1} parent=11 // pred_check_branch
          %217 = sbr.rel (%p215) target = $region28
        $region27: #{tpu_custom_call.1} parent=11 // pred_region
          _
        $region28: #{tpu_custom_call.1} parent=11 // pred_fallthru
          _
      $region12: #{tpu_custom_call.1} parent=5 // pred_fallthru
        _
      %p218 = scmp.lt.s32.totalorder %s19, 2
      // Predicated region
      $region29: #{tpu_custom_call.1} parent=5 // pred_check
        %p219 = pneg %p218
      $region30: #{tpu_custom_call.1} parent=5 // pred_check_branch
        %221 = sbr.rel (%p219) target = $region32
      $region31: #{tpu_custom_call.1} parent=5 // pred_region
        // Predicated region
        $region33: #{tpu_custom_call.1} parent=31 // pred_check
          %p222 = pneg %p39
        $region34: #{tpu_custom_call.1} parent=31 // pred_check_branch
          %224 = sbr.rel (%p222) target = $region36
        $region35: #{tpu_custom_call.1} parent=31 // pred_region
          %p225 = scmp.lt.s32.totalorder %s19, 1
          %s226 = scalar_select %p225, %s19, 1
          %s227 = smul.addr %s226, 32
          %s228 = smul.addr %s227, 4
          %s229 = scalar_lea.vmem %s0, %s228
        $region36: #{tpu_custom_call.1} parent=31 // pred_fallthru
          _
        // Predicated region
        $region37: #{tpu_custom_call.1} parent=31 // pred_check
          %p230 = pneg %p65
        $region38: #{tpu_custom_call.1} parent=31 // pred_check_branch
          %232 = sbr.rel (%p230) target = $region40
        $region39: #{tpu_custom_call.1} parent=31 // pred_region
          %s233 = sand.u32 %s55, 1
          %s234 = scalar_lea.sflag [#allocation4], %s233
          %s235 = sand.u32 %s55, 1
          %s236 = smul.addr %s235, 256
          %s237 = scalar_lea.vmem [#allocation3], %s236
          %s239 = ssub.s32 4096, 4096
          %240 = vsyncadd %s234, %s239
          %s241 = smul.addr %s19, 32
          %s242 = smul.addr %s241, 128
          %s243 = scalar_lea.hbm %s1, %s242
          %s244 = sshll.u32 %s237, 4
          %s245 = int_to_ptr.vmem [resolvable:$true] %s244
          %250 = dma.hbm_to_vmem [thread:$0]  %s243, 4096, %s245, %s234, 128, 128, 8
        $region40: #{tpu_custom_call.1} parent=31 // pred_fallthru
          _
      $region32: #{tpu_custom_call.1} parent=5 // pred_fallthru
        _
      %p251 = scmp.le.s32.totalorder 1, %s19
      %p252 = scmp.lt.s32.totalorder %s19, 3
      %p253 = pnand %p251, %p252
      %p254 = pneg %p253
      // Predicated region
      $region41: #{tpu_custom_call.1} parent=5 // pred_check
        _
      $region42: #{tpu_custom_call.1} parent=5 // pred_check_branch
        %256 = sbr.rel (%p253) target = $region44
      $region43: #{tpu_custom_call.1} parent=5 // pred_region
        %s257 = ssub.s32 %s19, 1
        %s258 = sand.u32 %s58, 1
        %s259 = scalar_lea.sflag [#allocation4], %s258
        %s260 = sand.u32 %s58, 1
        %s261 = smul.addr %s260, 256
        %s262 = scalar_lea.vmem [#allocation3], %s261
        // Predicated region
        $region45: #{tpu_custom_call.1} parent=43 // pred_check
          %p263 = pneg %p71
        $region46: #{tpu_custom_call.1} parent=43 // pred_check_branch
          %265 = sbr.rel (%p263) target = $region48
        $region47: #{tpu_custom_call.1} parent=43 // pred_region
          %266 = dma.done %s259, 4096
        $region48: #{tpu_custom_call.1} parent=43 // pred_fallthru
          _
        // Predicated region
        $region49: #{tpu_custom_call.1} parent=43 // pred_check
          %p267 = pneg %p134
        $region50: #{tpu_custom_call.1} parent=43 // pred_check_branch
          %269 = sbr.rel (%p267) target = $region52
        $region51: #{tpu_custom_call.1} parent=43 // pred_region
          %270 = dma.done [#allocation7], 9216
        $region52: #{tpu_custom_call.1} parent=43 // pred_fallthru
          _
        %p271 = scmp.lt.s32.totalorder %s24, 1
        %s272 = scalar_select %p271, %s24, 1
        %s273 = smul.addr %s272, 32
        %s274 = smul.addr %s273, 4
        %s275 = scalar_lea.vmem %s0, %s274
        %p276 = pneg %p45
        %p277 = pneg %p42
        %s278 = sand.u32 %s58, 1
        %s279 = scalar_lea.sflag [#allocation4], %s278
        %s280 = sand.u32 %s58, 1
        %s281 = smul.addr %s280, 256
        %s282 = scalar_lea.vmem [#allocation3], %s281
        %p283 = pneg %p71
        %p284 = pneg %p68
        %p285 = pneg %p92
        %p286 = pneg %p89
        %p287 = pneg %p113
        %p288 = pneg %p110
        %p289 = pneg %p134
        %p290 = pneg %p131
        %p291 = pneg %p155
        %p292 = pneg %p152
        %p293 = pneg %p181
        %p294 = pneg %p178
        %s295 = sand.u32 %s168, 1
        %s296 = scalar_lea.sflag [#allocation5], %s295
        %s297 = sand.u32 %s168, 1
        %s298 = smul.addr %s297, 256
        %s299 = scalar_lea.vmem [#allocation8], %s298
        %p300 = scmp.lt.s32.totalorder %s24, 1
        %s301 = scalar_select %p300, %s24, 1
        %s302 = smul.addr %s301, 32
        %s303 = smul.addr %s302, 4
        %s304 = scalar_lea.vmem %s0, %s303
        %v306 = vld [vmem:[%s304] sm:$0xf]
        %v307 = vld [vmem:[%s304 + $0x4] sm:$0xf]
        %v308 = vld [vmem:[%s304 + $0x8] sm:$0xf]
        %v309 = vld [vmem:[%s304 + $0xc] sm:$0xf]
        %v310 = vld [vmem:[%s304 + $0x10] sm:$0xf]
        %v311 = vld [vmem:[%s304 + $0x14] sm:$0xf]
        %v312 = vld [vmem:[%s304 + $0x18] sm:$0xf]
        %v313 = vld [vmem:[%s304 + $0x1c] sm:$0xf]
        %v314 = vld [vmem:[%s304 + $0x20] sm:$0xf]
        %v315 = vld [vmem:[%s304 + $0x24] sm:$0xf]
        %v316 = vld [vmem:[%s304 + $0x28] sm:$0xf]
        %v317 = vld [vmem:[%s304 + $0x2c] sm:$0xf]
        %v318 = vld [vmem:[%s304 + $0x30] sm:$0xf]
        %v319 = vld [vmem:[%s304 + $0x34] sm:$0xf]
        %v320 = vld [vmem:[%s304 + $0x38] sm:$0xf]
        %v321 = vld [vmem:[%s304 + $0x3c] sm:$0xf]
        %v322 = vld [vmem:[%s304 + $0x40] sm:$0xf]
        %v323 = vld [vmem:[%s304 + $0x44] sm:$0xf]
        %v324 = vld [vmem:[%s304 + $0x48] sm:$0xf]
        %v325 = vld [vmem:[%s304 + $0x4c] sm:$0xf]
        %v326 = vld [vmem:[%s304 + $0x50] sm:$0xf]
        %v327 = vld [vmem:[%s304 + $0x54] sm:$0xf]
        %v328 = vld [vmem:[%s304 + $0x58] sm:$0xf]
        %v329 = vld [vmem:[%s304 + $0x5c] sm:$0xf]
        %v330 = vld [vmem:[%s304 + $0x60] sm:$0xf]
        %v331 = vld [vmem:[%s304 + $0x64] sm:$0xf]
        %v332 = vld [vmem:[%s304 + $0x68] sm:$0xf]
        %v333 = vld [vmem:[%s304 + $0x6c] sm:$0xf]
        %v334 = vld [vmem:[%s304 + $0x70] sm:$0xf]
        %v335 = vld [vmem:[%s304 + $0x74] sm:$0xf]
        %v336 = vld [vmem:[%s304 + $0x78] sm:$0xf]
        %v337 = vld [vmem:[%s304 + $0x7c] sm:$0xf]
        %v338 = vld [vmem:[%s2] sm:$0xf]
        %v339 = vld [vmem:[%s2 + $0x4] sm:$0xf]
        %v340 = vld [vmem:[%s2 + $0x8] sm:$0xf]
        %v341 = vld [vmem:[%s2 + $0xc] sm:$0xf]
        %v342 = vld [vmem:[%s2 + $0x10] sm:$0x3]
        %v343 = vld [vmem:[%s3] sm:$0x1]
        %v345 = vlaneseq
        %v346 = vshrl.u32 %v345, 7
        %v347 = vsub.s32 0, %v346
        %v348 = vrot.slane %v343, %v347
        %v382 = vunpack.c.l.b16 %v306
        %v383 = vunpack.c.l.b16 %v307
        %v384 = vunpack.c.l.b16 %v308
        %v385 = vunpack.c.l.b16 %v309
        %v386 = vunpack.c.l.b16 %v310
        %v387 = vunpack.c.l.b16 %v311
        %v388 = vunpack.c.l.b16 %v312
        %v389 = vunpack.c.l.b16 %v313
        %v390 = vunpack.c.l.b16 %v314
        %v391 = vunpack.c.l.b16 %v315
        %v392 = vunpack.c.l.b16 %v316
        %v393 = vunpack.c.l.b16 %v317
        %v394 = vunpack.c.l.b16 %v318
        %v395 = vunpack.c.l.b16 %v319
        %v396 = vunpack.c.l.b16 %v320
        %v397 = vunpack.c.l.b16 %v321
        %v398 = vunpack.c.l.b16 %v322
        %v399 = vunpack.c.l.b16 %v323
        %v400 = vunpack.c.l.b16 %v324
        %v401 = vunpack.c.l.b16 %v325
        %v402 = vunpack.c.l.b16 %v326
        %v403 = vunpack.c.l.b16 %v327
        %v404 = vunpack.c.l.b16 %v328
        %v405 = vunpack.c.l.b16 %v329
        %v406 = vunpack.c.l.b16 %v330
        %v407 = vunpack.c.l.b16 %v331
        %v408 = vunpack.c.l.b16 %v332
        %v409 = vunpack.c.l.b16 %v333
        %v410 = vunpack.c.l.b16 %v334
        %v411 = vunpack.c.l.b16 %v335
        %v412 = vunpack.c.l.b16 %v336
        %v413 = vunpack.c.l.b16 %v337
        %v414 = vpack.c.b16 %v383, %v382
        %v415 = vpack.c.b16 %v385, %v384
        %v416 = vpack.c.b16 %v387, %v386
        %v417 = vpack.c.b16 %v389, %v388
        %v418 = vpack.c.b16 %v391, %v390
        %v419 = vpack.c.b16 %v393, %v392
        %v420 = vpack.c.b16 %v395, %v394
        %v421 = vpack.c.b16 %v397, %v396
        %v422 = vpack.c.b16 %v399, %v398
        %v423 = vpack.c.b16 %v401, %v400
        %v424 = vpack.c.b16 %v403, %v402
        %v425 = vpack.c.b16 %v405, %v404
        %v426 = vpack.c.b16 %v407, %v406
        %v427 = vpack.c.b16 %v409, %v408
        %v428 = vpack.c.b16 %v411, %v410
        %v429 = vpack.c.b16 %v413, %v412
        %v435 = vunpack.c.l.b16 %v338
        %v436 = vunpack.c.l.b16 %v339
        %v437 = vunpack.c.l.b16 %v340
        %v438 = vunpack.c.l.b16 %v341
        %v439 = vunpack.c.l.b16 %v342
        %v440 = vpack.c.b16 %v436, %v435
        %v441 = vpack.c.b16 %v438, %v437
        %v442 = vpack.c.b16 %v439, %v439
        %vm445 = vcmask 293888
        %v447 = vsel %vm445, %v414, 0
        %v450 = vsel %vm445, %v415, 0
        %v453 = vsel %vm445, %v416, 0
        %v456 = vsel %vm445, %v417, 0
        %v459 = vsel %vm445, %v418, 0
        %v462 = vsel %vm445, %v419, 0
        %v465 = vsel %vm445, %v420, 0
        %v468 = vsel %vm445, %v421, 0
        %v471 = vsel %vm445, %v422, 0
        %v474 = vsel %vm445, %v423, 0
        %v477 = vsel %vm445, %v424, 0
        %v480 = vsel %vm445, %v425, 0
        %v483 = vsel %vm445, %v426, 0
        %v486 = vsel %vm445, %v427, 0
        %v489 = vsel %vm445, %v428, 0
        %v492 = vsel %vm445, %v429, 0
        %vm494 = vcmask 1041408
        %v496 = vsel %vm494, %v442, 0
        %498 = vmatprep.subr.bf16.mxu0 0
        %499 = vmatpush1.bf16.msra.mxu0 0
        %500 = vmatprep.subr.bf16.mxu0 0
        %501 = vmatpush1.bf16.msra.mxu0 0
        %502 = vmatprep.subr.bf16.mxu0 0
        %503 = vmatpush1.bf16.msra.mxu0 0
        %504 = vmatprep.subr.bf16.mxu0 0
        %505 = vmatpush1.bf16.msra.mxu0 0
        %506 = vmatprep.subr.bf16.mxu0 0
        %507 = vmatpush1.bf16.msra.mxu0 0
        %508 = vmatprep.subr.bf16.mxu0 0
        %509 = vmatpush1.bf16.msra.mxu0 %v496
        %510 = vmatprep.subr.bf16.mxu0 0
        %511 = vmatpush1.bf16.msra.mxu0 %v441
        %512 = vmatprep.subr.bf16.mxu0 0
        %513 = vmatpush1.bf16.msra.mxu0 %v440
        %514 = vmatprep.subr.bf16.mxu0 0
        %515 = vmatpush2.bf16.msra.mxu0 0
        %516 = vmatprep.subr.bf16.mxu0 0
        %517 = vmatpush2.bf16.msra.mxu0 0
        %518 = vmatprep.subr.bf16.mxu0 0
        %519 = vmatpush2.bf16.msra.mxu0 0
        %520 = vmatprep.subr.bf16.mxu0 0
        %521 = vmatpush2.bf16.msra.mxu0 0
        %522 = vmatprep.subr.bf16.mxu0 0
        %523 = vmatpush2.bf16.msra.mxu0 0
        %524 = vmatprep.subr.bf16.mxu0 0
        %525 = vmatpush2.bf16.msra.mxu0 0
        %526 = vmatprep.subr.bf16.mxu0 0
        %527 = vmatpush2.bf16.msra.mxu0 0
        %528 = vmatprep.subr.bf16.mxu0 0
        %529 = vmatpush2.bf16.msra.mxu0 0
        %530 = vmatprep.mubr.bf16.mxu0 0
        %531 = vmatmul.mubr.bf16.gmra.mxu0 %v447
        %v532 = vpop.f32.mrf.mxu0
        %v533 = vadd.f32 %v348, %v532
        %v534 = vpop.f32.mrf.mxu0
        %v535 = vpop.f32.mrf.mxu0
        %v536 = vadd.f32 %v348, %v535
        %v537 = vpop.f32.mrf.mxu0
        %538 = vmatprep.mubr.bf16.mxu0 0
        %539 = vmatmul.mubr.bf16.gmra.mxu0 %v450
        %v540 = vpop.f32.mrf.mxu0
        %v541 = vadd.f32 %v348, %v540
        %v542 = vpop.f32.mrf.mxu0
        %v543 = vpop.f32.mrf.mxu0
        %v544 = vadd.f32 %v348, %v543
        %v545 = vpop.f32.mrf.mxu0
        %546 = vmatprep.mubr.bf16.mxu0 0
        %547 = vmatmul.mubr.bf16.gmra.mxu0 %v453
        %v548 = vpop.f32.mrf.mxu0
        %v549 = vadd.f32 %v348, %v548
        %v550 = vpop.f32.mrf.mxu0
        %v551 = vpop.f32.mrf.mxu0
        %v552 = vadd.f32 %v348, %v551
        %v553 = vpop.f32.mrf.mxu0
        %554 = vmatprep.mubr.bf16.mxu0 0
        %555 = vmatmul.mubr.bf16.gmra.mxu0 %v456
        %v556 = vpop.f32.mrf.mxu0
        %v557 = vadd.f32 %v348, %v556
        %v558 = vpop.f32.mrf.mxu0
        %v559 = vpop.f32.mrf.mxu0
        %v560 = vadd.f32 %v348, %v559
        %v561 = vpop.f32.mrf.mxu0
        %562 = vmatprep.mubr.bf16.mxu0 0
        %563 = vmatmul.mubr.bf16.gmra.mxu0 %v459
        %v564 = vpop.f32.mrf.mxu0
        %v565 = vadd.f32 %v348, %v564
        %v566 = vpop.f32.mrf.mxu0
        %v567 = vpop.f32.mrf.mxu0
        %v568 = vadd.f32 %v348, %v567
        %v569 = vpop.f32.mrf.mxu0
        %570 = vmatprep.mubr.bf16.mxu0 0
        %571 = vmatmul.mubr.bf16.gmra.mxu0 %v462
        %v572 = vpop.f32.mrf.mxu0
        %v573 = vadd.f32 %v348, %v572
        %v574 = vpop.f32.mrf.mxu0
        %v575 = vpop.f32.mrf.mxu0
        %v576 = vadd.f32 %v348, %v575
        %v577 = vpop.f32.mrf.mxu0
        %578 = vmatprep.mubr.bf16.mxu0 0
        %579 = vmatmul.mubr.bf16.gmra.mxu0 %v465
        %v580 = vpop.f32.mrf.mxu0
        %v581 = vadd.f32 %v348, %v580
        %v582 = vpop.f32.mrf.mxu0
        %v583 = vpop.f32.mrf.mxu0
        %v584 = vadd.f32 %v348, %v583
        %v585 = vpop.f32.mrf.mxu0
        %586 = vmatprep.mubr.bf16.mxu0 0
        %587 = vmatmul.mubr.bf16.gmra.mxu0 %v468
        %v588 = vpop.f32.mrf.mxu0
        %v589 = vadd.f32 %v348, %v588
        %v590 = vpop.f32.mrf.mxu0
        %v591 = vpop.f32.mrf.mxu0
        %v592 = vadd.f32 %v348, %v591
        %v593 = vpop.f32.mrf.mxu0
        %594 = vmatprep.mubr.bf16.mxu0 0
        %595 = vmatmul.mubr.bf16.gmra.mxu0 %v471
        %v596 = vpop.f32.mrf.mxu0
        %v597 = vadd.f32 %v348, %v596
        %v598 = vpop.f32.mrf.mxu0
        %v599 = vpop.f32.mrf.mxu0
        %v600 = vadd.f32 %v348, %v599
        %v601 = vpop.f32.mrf.mxu0
        %602 = vmatprep.mubr.bf16.mxu0 0
        %603 = vmatmul.mubr.bf16.gmra.mxu0 %v474
        %v604 = vpop.f32.mrf.mxu0
        %v605 = vadd.f32 %v348, %v604
        %v606 = vpop.f32.mrf.mxu0
        %v607 = vpop.f32.mrf.mxu0
        %v608 = vadd.f32 %v348, %v607
        %v609 = vpop.f32.mrf.mxu0
        %610 = vmatprep.mubr.bf16.mxu0 0
        %611 = vmatmul.mubr.bf16.gmra.mxu0 %v477
        %v612 = vpop.f32.mrf.mxu0
        %v613 = vadd.f32 %v348, %v612
        %v614 = vpop.f32.mrf.mxu0
        %v615 = vpop.f32.mrf.mxu0
        %v616 = vadd.f32 %v348, %v615
        %v617 = vpop.f32.mrf.mxu0
        %618 = vmatprep.mubr.bf16.mxu0 0
        %619 = vmatmul.mubr.bf16.gmra.mxu0 %v480
        %v620 = vpop.f32.mrf.mxu0
        %v621 = vadd.f32 %v348, %v620
        %v622 = vpop.f32.mrf.mxu0
        %v623 = vpop.f32.mrf.mxu0
        %v624 = vadd.f32 %v348, %v623
        %v625 = vpop.f32.mrf.mxu0
        %626 = vmatprep.mubr.bf16.mxu0 0
        %627 = vmatmul.mubr.bf16.gmra.mxu0 %v483
        %v628 = vpop.f32.mrf.mxu0
        %v629 = vadd.f32 %v348, %v628
        %v630 = vpop.f32.mrf.mxu0
        %v631 = vpop.f32.mrf.mxu0
        %v632 = vadd.f32 %v348, %v631
        %v633 = vpop.f32.mrf.mxu0
        %634 = vmatprep.mubr.bf16.mxu0 0
        %635 = vmatmul.mubr.bf16.gmra.mxu0 %v486
        %v636 = vpop.f32.mrf.mxu0
        %v637 = vadd.f32 %v348, %v636
        %v638 = vpop.f32.mrf.mxu0
        %v639 = vpop.f32.mrf.mxu0
        %v640 = vadd.f32 %v348, %v639
        %v641 = vpop.f32.mrf.mxu0
        %642 = vmatprep.mubr.bf16.mxu0 0
        %643 = vmatmul.mubr.bf16.gmra.mxu0 %v489
        %v644 = vpop.f32.mrf.mxu0
        %v645 = vadd.f32 %v348, %v644
        %v646 = vpop.f32.mrf.mxu0
        %v647 = vpop.f32.mrf.mxu0
        %v648 = vadd.f32 %v348, %v647
        %v649 = vpop.f32.mrf.mxu0
        %650 = vmatprep.mubr.bf16.mxu0 0
        %651 = vmatmul.mubr.bf16.gmra.mxu0 %v492
        %v652 = vpop.f32.mrf.mxu0
        %v653 = vadd.f32 %v348, %v652
        %v654 = vpop.f32.mrf.mxu0
        %v655 = vpop.f32.mrf.mxu0
        %v656 = vadd.f32 %v348, %v655
        %v657 = vpop.f32.mrf.mxu0
        %658 = vdwg.mxu0
        %v659 = vmax.f32 %v533, 0.0
        %v660 = vmax.f32 %v536, 0.0
        %v661 = vmax.f32 %v541, 0.0
        %v662 = vmax.f32 %v544, 0.0
        %v663 = vmax.f32 %v549, 0.0
        %v664 = vmax.f32 %v552, 0.0
        %v665 = vmax.f32 %v557, 0.0
        %v666 = vmax.f32 %v560, 0.0
        %v667 = vmax.f32 %v565, 0.0
        %v668 = vmax.f32 %v568, 0.0
        %v669 = vmax.f32 %v573, 0.0
        %v670 = vmax.f32 %v576, 0.0
        %v671 = vmax.f32 %v581, 0.0
        %v672 = vmax.f32 %v584, 0.0
        %v673 = vmax.f32 %v589, 0.0
        %v674 = vmax.f32 %v592, 0.0
        %v675 = vmax.f32 %v597, 0.0
        %v676 = vmax.f32 %v600, 0.0
        %v677 = vmax.f32 %v605, 0.0
        %v678 = vmax.f32 %v608, 0.0
        %v679 = vmax.f32 %v613, 0.0
        %v680 = vmax.f32 %v616, 0.0
        %v681 = vmax.f32 %v621, 0.0
        %v682 = vmax.f32 %v624, 0.0
        %v683 = vmax.f32 %v629, 0.0
        %v684 = vmax.f32 %v632, 0.0
        %v685 = vmax.f32 %v637, 0.0
        %v686 = vmax.f32 %v640, 0.0
        %v687 = vmax.f32 %v645, 0.0
        %v688 = vmax.f32 %v648, 0.0
        %v689 = vmax.f32 %v653, 0.0
        %v690 = vmax.f32 %v656, 0.0
        %691 = vst [vmem:[#allocation2] sm:$0xf] 0
        %692 = vst [vmem:[#allocation2 + $0x4] sm:$0xf] 0
        %693 = vst [vmem:[#allocation2 + $0x8] sm:$0x1] 0
        %s694 = scalar_lea.vmem [#allocation2], 204
        %695 = vst [vmem:[%s694] sm:$0xf] 0
        %696 = vst [vmem:[%s694 + $0x4] sm:$0xf] 0
        %697 = vst [vmem:[%s694 + $0x8] sm:$0x1] 0
        %vm698 = vcmask 1040384
        %vm699 = vsmask.f32 256
        %vm700 = vmand %vm698, %vm699
        %v701 = vld [vmem:[#allocation2] sm:$0x1]
        %v702 = vsel %vm700, 0, %v701
        %703 = vst [vmem:[#allocation2] sm:$0x1] %v702
        %v704 = vld [vmem:[#allocation2 + $0xc] sm:$0x1]
        %v705 = vsel %vm700, 0, %v704
        %706 = vst [vmem:[#allocation2 + $0xc] sm:$0x1] %v705
        %v707 = vld [vmem:[#allocation2 + $0x18] sm:$0x1]
        %v708 = vsel %vm700, 0, %v707
        %709 = vst [vmem:[#allocation2 + $0x18] sm:$0x1] %v708
        %v710 = vld [vmem:[#allocation2 + $0x24] sm:$0x1]
        %v711 = vsel %vm700, 0, %v710
        %712 = vst [vmem:[#allocation2 + $0x24] sm:$0x1] %v711
        %v713 = vld [vmem:[#allocation2 + $0x30] sm:$0x1]
        %v714 = vsel %vm700, 0, %v713
        %715 = vst [vmem:[#allocation2 + $0x30] sm:$0x1] %v714
        %v716 = vld [vmem:[#allocation2 + $0x3c] sm:$0x1]
        %v717 = vsel %vm700, 0, %v716
        %718 = vst [vmem:[#allocation2 + $0x3c] sm:$0x1] %v717
        %v719 = vld [vmem:[#allocation2 + $0x48] sm:$0x1]
        %v720 = vsel %vm700, 0, %v719
        %721 = vst [vmem:[#allocation2 + $0x48] sm:$0x1] %v720
        %v722 = vld [vmem:[#allocation2 + $0x54] sm:$0x1]
        %v723 = vsel %vm700, 0, %v722
        %724 = vst [vmem:[#allocation2 + $0x54] sm:$0x1] %v723
        %v725 = vld [vmem:[#allocation2 + $0x60] sm:$0x1]
        %v726 = vsel %vm700, 0, %v725
        %727 = vst [vmem:[#allocation2 + $0x60] sm:$0x1] %v726
        %v728 = vld [vmem:[#allocation2 + $0x6c] sm:$0x1]
        %v729 = vsel %vm700, 0, %v728
        %730 = vst [vmem:[#allocation2 + $0x6c] sm:$0x1] %v729
        %v731 = vld [vmem:[#allocation2 + $0x78] sm:$0x1]
        %v732 = vsel %vm700, 0, %v731
        %733 = vst [vmem:[#allocation2 + $0x78] sm:$0x1] %v732
        %v734 = vld [vmem:[#allocation2 + $0x84] sm:$0x1]
        %v735 = vsel %vm700, 0, %v734
        %736 = vst [vmem:[#allocation2 + $0x84] sm:$0x1] %v735
        %v737 = vld [vmem:[#allocation2 + $0x90] sm:$0x1]
        %v738 = vsel %vm700, 0, %v737
        %739 = vst [vmem:[#allocation2 + $0x90] sm:$0x1] %v738
        %v740 = vld [vmem:[#allocation2 + $0x9c] sm:$0x1]
        %v741 = vsel %vm700, 0, %v740
        %742 = vst [vmem:[#allocation2 + $0x9c] sm:$0x1] %v741
        %v743 = vld [vmem:[#allocation2 + $0xa8] sm:$0x1]
        %v744 = vsel %vm700, 0, %v743
        %745 = vst [vmem:[#allocation2 + $0xa8] sm:$0x1] %v744
        %v746 = vld [vmem:[#allocation2 + $0xb4] sm:$0x1]
        %v747 = vsel %vm700, 0, %v746
        %748 = vst [vmem:[#allocation2 + $0xb4] sm:$0x1] %v747
        %v749 = vld [vmem:[#allocation2 + $0xc0] sm:$0x1]
        %v750 = vsel %vm700, 0, %v749
        %751 = vst [vmem:[#allocation2 + $0xc0] sm:$0x1] %v750
        %v752 = vld [vmem:[#allocation2 + $0xcc] sm:$0x1]
        %v753 = vsel %vm700, 0, %v752
        %754 = vst [vmem:[#allocation2 + $0xcc] sm:$0x1] %v753
        %vm755 = vsmask.f32 7938
        %vm756 = vmand %vm698, %vm755
        %v757 = vld [vmem:[#allocation2 + $0x8] sm:$0x1]
        %v758 = vsel %vm756, 0, %v757
        %759 = vst [vmem:[#allocation2 + $0x8] sm:$0x1] %v758
        %v760 = vld [vmem:[#allocation2 + $0x14] sm:$0x1]
        %v761 = vsel %vm756, 0, %v760
        %762 = vst [vmem:[#allocation2 + $0x14] sm:$0x1] %v761
        %v763 = vld [vmem:[#allocation2 + $0x20] sm:$0x1]
        %v764 = vsel %vm756, 0, %v763
        %765 = vst [vmem:[#allocation2 + $0x20] sm:$0x1] %v764
        %v766 = vld [vmem:[#allocation2 + $0x2c] sm:$0x1]
        %v767 = vsel %vm756, 0, %v766
        %768 = vst [vmem:[#allocation2 + $0x2c] sm:$0x1] %v767
        %v769 = vld [vmem:[#allocation2 + $0x38] sm:$0x1]
        %v770 = vsel %vm756, 0, %v769
        %771 = vst [vmem:[#allocation2 + $0x38] sm:$0x1] %v770
        %v772 = vld [vmem:[#allocation2 + $0x44] sm:$0x1]
        %v773 = vsel %vm756, 0, %v772
        %774 = vst [vmem:[#allocation2 + $0x44] sm:$0x1] %v773
        %v775 = vld [vmem:[#allocation2 + $0x50] sm:$0x1]
        %v776 = vsel %vm756, 0, %v775
        %777 = vst [vmem:[#allocation2 + $0x50] sm:$0x1] %v776
        %v778 = vld [vmem:[#allocation2 + $0x5c] sm:$0x1]
        %v779 = vsel %vm756, 0, %v778
        %780 = vst [vmem:[#allocation2 + $0x5c] sm:$0x1] %v779
        %v781 = vld [vmem:[#allocation2 + $0x68] sm:$0x1]
        %v782 = vsel %vm756, 0, %v781
        %783 = vst [vmem:[#allocation2 + $0x68] sm:$0x1] %v782
        %v784 = vld [vmem:[#allocation2 + $0x74] sm:$0x1]
        %v785 = vsel %vm756, 0, %v784
        %786 = vst [vmem:[#allocation2 + $0x74] sm:$0x1] %v785
        %v787 = vld [vmem:[#allocation2 + $0x80] sm:$0x1]
        %v788 = vsel %vm756, 0, %v787
        %789 = vst [vmem:[#allocation2 + $0x80] sm:$0x1] %v788
        %v790 = vld [vmem:[#allocation2 + $0x8c] sm:$0x1]
        %v791 = vsel %vm756, 0, %v790
        %792 = vst [vmem:[#allocation2 + $0x8c] sm:$0x1] %v791
        %v793 = vld [vmem:[#allocation2 + $0x98] sm:$0x1]
        %v794 = vsel %vm756, 0, %v793
        %795 = vst [vmem:[#allocation2 + $0x98] sm:$0x1] %v794
        %v796 = vld [vmem:[#allocation2 + $0xa4] sm:$0x1]
        %v797 = vsel %vm756, 0, %v796
        %798 = vst [vmem:[#allocation2 + $0xa4] sm:$0x1] %v797
        %v799 = vld [vmem:[#allocation2 + $0xb0] sm:$0x1]
        %v800 = vsel %vm756, 0, %v799
        %801 = vst [vmem:[#allocation2 + $0xb0] sm:$0x1] %v800
        %v802 = vld [vmem:[#allocation2 + $0xbc] sm:$0x1]
        %v803 = vsel %vm756, 0, %v802
        %804 = vst [vmem:[#allocation2 + $0xbc] sm:$0x1] %v803
        %v805 = vld [vmem:[#allocation2 + $0xc8] sm:$0x1]
        %v806 = vsel %vm756, 0, %v805
        %807 = vst [vmem:[#allocation2 + $0xc8] sm:$0x1] %v806
        %v808 = vld [vmem:[#allocation2 + $0xd4] sm:$0x1]
        %v809 = vsel %vm756, 0, %v808
        %810 = vst [vmem:[#allocation2 + $0xd4] sm:$0x1] %v809
        %v811 = vpack.c.bf16 %v660, %v659
        %v812 = vpack.c.bf16 %v662, %v661
        %v813 = vpack.c.bf16 %v664, %v663
        %v814 = vpack.c.bf16 %v666, %v665
        %v815 = vpack.c.bf16 %v668, %v667
        %v816 = vpack.c.bf16 %v670, %v669
        %v817 = vpack.c.bf16 %v672, %v671
        %v818 = vpack.c.bf16 %v674, %v673
        %v819 = vpack.c.bf16 %v676, %v675
        %v820 = vpack.c.bf16 %v678, %v677
        %v821 = vpack.c.bf16 %v680, %v679
        %v822 = vpack.c.bf16 %v682, %v681
        %v823 = vpack.c.bf16 %v684, %v683
        %v824 = vpack.c.bf16 %v686, %v685
        %v825 = vpack.c.bf16 %v688, %v687
        %v826 = vpack.c.bf16 %v690, %v689
        %v843 = vunpack.c.l.b16 %v811
        %v844 = vunpack.c.h.b16 %v811
        %v845 = vunpack.c.l.b16 %v812
        %v846 = vunpack.c.h.b16 %v812
        %v847 = vunpack.c.l.b16 %v813
        %v848 = vunpack.c.h.b16 %v813
        %v849 = vunpack.c.l.b16 %v814
        %v850 = vunpack.c.h.b16 %v814
        %v851 = vunpack.c.l.b16 %v815
        %v852 = vunpack.c.h.b16 %v815
        %v853 = vunpack.c.l.b16 %v816
        %v854 = vunpack.c.h.b16 %v816
        %v855 = vunpack.c.l.b16 %v817
        %v856 = vunpack.c.h.b16 %v817
        %v857 = vunpack.c.l.b16 %v818
        %v858 = vunpack.c.h.b16 %v818
        %v859 = vunpack.c.l.b16 %v819
        %v860 = vunpack.c.h.b16 %v819
        %v861 = vunpack.c.l.b16 %v820
        %v862 = vunpack.c.h.b16 %v820
        %v863 = vunpack.c.l.b16 %v821
        %v864 = vunpack.c.h.b16 %v821
        %v865 = vunpack.c.l.b16 %v822
        %v866 = vunpack.c.h.b16 %v822
        %v867 = vunpack.c.l.b16 %v823
        %v868 = vunpack.c.h.b16 %v823
        %v869 = vunpack.c.l.b16 %v824
        %v870 = vunpack.c.h.b16 %v824
        %v871 = vunpack.c.l.b16 %v825
        %v872 = vunpack.c.h.b16 %v825
        %v873 = vunpack.c.l.b16 %v826
        %v874 = vunpack.c.h.b16 %v826
        %v875 = vpack.c.b16 %v843, %v843
        %v876 = vpack.c.b16 %v844, %v844
        %v877 = vpack.c.b16 %v845, %v845
        %v878 = vpack.c.b16 %v846, %v846
        %v879 = vpack.c.b16 %v847, %v847
        %v880 = vpack.c.b16 %v848, %v848
        %v881 = vpack.c.b16 %v849, %v849
        %v882 = vpack.c.b16 %v850, %v850
        %v883 = vpack.c.b16 %v851, %v851
        %v884 = vpack.c.b16 %v852, %v852
        %v885 = vpack.c.b16 %v853, %v853
        %v886 = vpack.c.b16 %v854, %v854
        %v887 = vpack.c.b16 %v855, %v855
        %v888 = vpack.c.b16 %v856, %v856
        %v889 = vpack.c.b16 %v857, %v857
        %v890 = vpack.c.b16 %v858, %v858
        %v891 = vpack.c.b16 %v859, %v859
        %v892 = vpack.c.b16 %v860, %v860
        %v893 = vpack.c.b16 %v861, %v861
        %v894 = vpack.c.b16 %v862, %v862
        %v895 = vpack.c.b16 %v863, %v863
        %v896 = vpack.c.b16 %v864, %v864
        %v897 = vpack.c.b16 %v865, %v865
        %v898 = vpack.c.b16 %v866, %v866
        %v899 = vpack.c.b16 %v867, %v867
        %v900 = vpack.c.b16 %v868, %v868
        %v901 = vpack.c.b16 %v869, %v869
        %v902 = vpack.c.b16 %v870, %v870
        %v903 = vpack.c.b16 %v871, %v871
        %v904 = vpack.c.b16 %v872, %v872
        %v905 = vpack.c.b16 %v873, %v873
        %v906 = vpack.c.b16 %v874, %v874
        %vm907 = vsmask.f32 4368
        %vm908 = vmor %vm699, %vm907
        %v910 = vshrl.u32 %v875, 16
        %v912 = vrot.slane %v910, 7
        %v913 = vshll.u32 %v875, 16
        %v915 = vor.u32 %v912, %v913
        %v916 = vrot.slane %v912, 4
        %v918 = vshrl.u32 %v876, 16
        %v920 = vrot.slane %v918, 7
        %v921 = vshll.u32 %v876, 16
        %v923 = vor.u32 %v920, %v921
        %v924 = vsel %vm908, %v916, %v923
        %v925 = vrot.slane %v920, 4
        %v927 = vshrl.u32 %v877, 16
        %v929 = vrot.slane %v927, 7
        %v930 = vshll.u32 %v877, 16
        %v932 = vor.u32 %v929, %v930
        %v933 = vrot.slane %v929, 4
        %v935 = vshrl.u32 %v878, 16
        %v937 = vrot.slane %v935, 7
        %v938 = vshll.u32 %v878, 16
        %v940 = vor.u32 %v937, %v938
        %v941 = vsel %vm908, %v933, %v940
        %v942 = vrot.slane %v937, 4
        %v944 = vshrl.u32 %v879, 16
        %v946 = vrot.slane %v944, 7
        %v947 = vshll.u32 %v879, 16
        %v949 = vor.u32 %v946, %v947
        %v950 = vrot.slane %v946, 4
        %v952 = vshrl.u32 %v880, 16
        %v954 = vrot.slane %v952, 7
        %v955 = vshll.u32 %v880, 16
        %v957 = vor.u32 %v954, %v955
        %v958 = vsel %vm908, %v950, %v957
        %v959 = vrot.slane %v954, 4
        %v961 = vshrl.u32 %v881, 16
        %v963 = vrot.slane %v961, 7
        %v964 = vshll.u32 %v881, 16
        %v966 = vor.u32 %v963, %v964
        %v967 = vrot.slane %v963, 4
        %v969 = vshrl.u32 %v882, 16
        %v971 = vrot.slane %v969, 7
        %v972 = vshll.u32 %v882, 16
        %v974 = vor.u32 %v971, %v972
        %v975 = vsel %vm908, %v967, %v974
        %v976 = vrot.slane %v971, 4
        %v978 = vshrl.u32 %v883, 16
        %v980 = vrot.slane %v978, 7
        %v981 = vshll.u32 %v883, 16
        %v983 = vor.u32 %v980, %v981
        %v984 = vrot.slane %v980, 4
        %v986 = vshrl.u32 %v884, 16
        %v988 = vrot.slane %v986, 7
        %v989 = vshll.u32 %v884, 16
        %v991 = vor.u32 %v988, %v989
        %v992 = vsel %vm908, %v984, %v991
        %v993 = vrot.slane %v988, 4
        %v995 = vshrl.u32 %v885, 16
        %v997 = vrot.slane %v995, 7
        %v998 = vshll.u32 %v885, 16
        %v1000 = vor.u32 %v997, %v998
        %v1001 = vrot.slane %v997, 4
        %v1003 = vshrl.u32 %v886, 16
        %v1005 = vrot.slane %v1003, 7
        %v1006 = vshll.u32 %v886, 16
        %v1008 = vor.u32 %v1005, %v1006
        %v1009 = vsel %vm908, %v1001, %v1008
        %v1010 = vrot.slane %v1005, 4
        %v1012 = vshrl.u32 %v887, 16
        %v1014 = vrot.slane %v1012, 7
        %v1015 = vshll.u32 %v887, 16
        %v1017 = vor.u32 %v1014, %v1015
        %v1018 = vrot.slane %v1014, 4
        %v1020 = vshrl.u32 %v888, 16
        %v1022 = vrot.slane %v1020, 7
        %v1023 = vshll.u32 %v888, 16
        %v1025 = vor.u32 %v1022, %v1023
        %v1026 = vsel %vm908, %v1018, %v1025
        %v1027 = vrot.slane %v1022, 4
        %v1029 = vshrl.u32 %v889, 16
        %v1031 = vrot.slane %v1029, 7
        %v1032 = vshll.u32 %v889, 16
        %v1034 = vor.u32 %v1031, %v1032
        %v1035 = vrot.slane %v1031, 4
        %v1037 = vshrl.u32 %v890, 16
        %v1039 = vrot.slane %v1037, 7
        %v1040 = vshll.u32 %v890, 16
        %v1042 = vor.u32 %v1039, %v1040
        %v1043 = vsel %vm908, %v1035, %v1042
        %v1044 = vrot.slane %v1039, 4
        %v1046 = vshrl.u32 %v891, 16
        %v1048 = vrot.slane %v1046, 7
        %v1049 = vshll.u32 %v891, 16
        %v1051 = vor.u32 %v1048, %v1049
        %v1052 = vrot.slane %v1048, 4
        %v1054 = vshrl.u32 %v892, 16
        %v1056 = vrot.slane %v1054, 7
        %v1057 = vshll.u32 %v892, 16
        %v1059 = vor.u32 %v1056, %v1057
        %v1060 = vsel %vm908, %v1052, %v1059
        %v1061 = vrot.slane %v1056, 4
        %v1063 = vshrl.u32 %v893, 16
        %v1065 = vrot.slane %v1063, 7
        %v1066 = vshll.u32 %v893, 16
        %v1068 = vor.u32 %v1065, %v1066
        %v1069 = vrot.slane %v1065, 4
        %v1071 = vshrl.u32 %v894, 16
        %v1073 = vrot.slane %v1071, 7
        %v1074 = vshll.u32 %v894, 16
        %v1076 = vor.u32 %v1073, %v1074
        %v1077 = vsel %vm908, %v1069, %v1076
        %v1078 = vrot.slane %v1073, 4
        %v1080 = vshrl.u32 %v895, 16
        %v1082 = vrot.slane %v1080, 7
        %v1083 = vshll.u32 %v895, 16
        %v1085 = vor.u32 %v1082, %v1083
        %v1086 = vrot.slane %v1082, 4
        %v1088 = vshrl.u32 %v896, 16
        %v1090 = vrot.slane %v1088, 7
        %v1091 = vshll.u32 %v896, 16
        %v1093 = vor.u32 %v1090, %v1091
        %v1094 = vsel %vm908, %v1086, %v1093
        %v1095 = vrot.slane %v1090, 4
        %v1097 = vshrl.u32 %v897, 16
        %v1099 = vrot.slane %v1097, 7
        %v1100 = vshll.u32 %v897, 16
        %v1102 = vor.u32 %v1099, %v1100
        %v1103 = vrot.slane %v1099, 4
        %v1105 = vshrl.u32 %v898, 16
        %v1107 = vrot.slane %v1105, 7
        %v1108 = vshll.u32 %v898, 16
        %v1110 = vor.u32 %v1107, %v1108
        %v1111 = vsel %vm908, %v1103, %v1110
        %v1112 = vrot.slane %v1107, 4
        %v1114 = vshrl.u32 %v899, 16
        %v1116 = vrot.slane %v1114, 7
        %v1117 = vshll.u32 %v899, 16
        %v1119 = vor.u32 %v1116, %v1117
        %v1120 = vrot.slane %v1116, 4
        %v1122 = vshrl.u32 %v900, 16
        %v1124 = vrot.slane %v1122, 7
        %v1125 = vshll.u32 %v900, 16
        %v1127 = vor.u32 %v1124, %v1125
        %v1128 = vsel %vm908, %v1120, %v1127
        %v1129 = vrot.slane %v1124, 4
        %v1131 = vshrl.u32 %v901, 16
        %v1133 = vrot.slane %v1131, 7
        %v1134 = vshll.u32 %v901, 16
        %v1136 = vor.u32 %v1133, %v1134
        %v1137 = vrot.slane %v1133, 4
        %v1139 = vshrl.u32 %v902, 16
        %v1141 = vrot.slane %v1139, 7
        %v1142 = vshll.u32 %v902, 16
        %v1144 = vor.u32 %v1141, %v1142
        %v1145 = vsel %vm908, %v1137, %v1144
        %v1146 = vrot.slane %v1141, 4
        %v1148 = vshrl.u32 %v903, 16
        %v1150 = vrot.slane %v1148, 7
        %v1151 = vshll.u32 %v903, 16
        %v1153 = vor.u32 %v1150, %v1151
        %v1154 = vrot.slane %v1150, 4
        %v1156 = vshrl.u32 %v904, 16
        %v1158 = vrot.slane %v1156, 7
        %v1159 = vshll.u32 %v904, 16
        %v1161 = vor.u32 %v1158, %v1159
        %v1162 = vsel %vm908, %v1154, %v1161
        %v1163 = vrot.slane %v1158, 4
        %v1165 = vshrl.u32 %v905, 16
        %v1167 = vrot.slane %v1165, 7
        %v1168 = vshll.u32 %v905, 16
        %v1170 = vor.u32 %v1167, %v1168
        %v1171 = vrot.slane %v1167, 4
        %v1173 = vshrl.u32 %v906, 16
        %v1175 = vrot.slane %v1173, 7
        %v1176 = vshll.u32 %v906, 16
        %v1178 = vor.u32 %v1175, %v1176
        %v1179 = vsel %vm908, %v1171, %v1178
        %v1180 = vrot.slane %v1175, 4
        %s1229 = scalar_lea.vmem [#allocation2], 12
        %vm1230 = vcmask 1043456
        %vm1231 = vmand %vm1230, %vm755
        %v1232 = vld [vmem:[%s1229] sm:$0xf]
        %v1233 = vsel %vm1231, %v915, %v1232
        %1234 = vst [vmem:[%s1229] sm:$0xf] %v1233
        %1235 = vst [vmem:[%s1229 + $0x4] sm:$0xf] %v924
        %v1236 = vld [vmem:[%s1229 + $0x8] sm:$0x1]
        %v1237 = vsel %vm700, %v925, %v1236
        %1238 = vst [vmem:[%s1229 + $0x8] sm:$0x1] %v1237
        %v1239 = vld [vmem:[%s1229 + $0xc] sm:$0xf]
        %v1240 = vsel %vm1231, %v932, %v1239
        %1241 = vst [vmem:[%s1229 + $0xc] sm:$0xf] %v1240
        %1242 = vst [vmem:[%s1229 + $0x10] sm:$0xf] %v941
        %v1243 = vld [vmem:[%s1229 + $0x14] sm:$0x1]
        %v1244 = vsel %vm700, %v942, %v1243
        %1245 = vst [vmem:[%s1229 + $0x14] sm:$0x1] %v1244
        %v1246 = vld [vmem:[%s1229 + $0x18] sm:$0xf]
        %v1247 = vsel %vm1231, %v949, %v1246
        %1248 = vst [vmem:[%s1229 + $0x18] sm:$0xf] %v1247
        %1249 = vst [vmem:[%s1229 + $0x1c] sm:$0xf] %v958
        %v1250 = vld [vmem:[%s1229 + $0x20] sm:$0x1]
        %v1251 = vsel %vm700, %v959, %v1250
        %1252 = vst [vmem:[%s1229 + $0x20] sm:$0x1] %v1251
        %v1253 = vld [vmem:[%s1229 + $0x24] sm:$0xf]
        %v1254 = vsel %vm1231, %v966, %v1253
        %1255 = vst [vmem:[%s1229 + $0x24] sm:$0xf] %v1254
        %1256 = vst [vmem:[%s1229 + $0x28] sm:$0xf] %v975
        %v1257 = vld [vmem:[%s1229 + $0x2c] sm:$0x1]
        %v1258 = vsel %vm700, %v976, %v1257
        %1259 = vst [vmem:[%s1229 + $0x2c] sm:$0x1] %v1258
        %v1260 = vld [vmem:[%s1229 + $0x30] sm:$0xf]
        %v1261 = vsel %vm1231, %v983, %v1260
        %1262 = vst [vmem:[%s1229 + $0x30] sm:$0xf] %v1261
        %1263 = vst [vmem:[%s1229 + $0x34] sm:$0xf] %v992
        %v1264 = vld [vmem:[%s1229 + $0x38] sm:$0x1]
        %v1265 = vsel %vm700, %v993, %v1264
        %1266 = vst [vmem:[%s1229 + $0x38] sm:$0x1] %v1265
        %v1267 = vld [vmem:[%s1229 + $0x3c] sm:$0xf]
        %v1268 = vsel %vm1231, %v1000, %v1267
        %1269 = vst [vmem:[%s1229 + $0x3c] sm:$0xf] %v1268
        %1270 = vst [vmem:[%s1229 + $0x40] sm:$0xf] %v1009
        %v1271 = vld [vmem:[%s1229 + $0x44] sm:$0x1]
        %v1272 = vsel %vm700, %v1010, %v1271
        %1273 = vst [vmem:[%s1229 + $0x44] sm:$0x1] %v1272
        %v1274 = vld [vmem:[%s1229 + $0x48] sm:$0xf]
        %v1275 = vsel %vm1231, %v1017, %v1274
        %1276 = vst [vmem:[%s1229 + $0x48] sm:$0xf] %v1275
        %1277 = vst [vmem:[%s1229 + $0x4c] sm:$0xf] %v1026
        %v1278 = vld [vmem:[%s1229 + $0x50] sm:$0x1]
        %v1279 = vsel %vm700, %v1027, %v1278
        %1280 = vst [vmem:[%s1229 + $0x50] sm:$0x1] %v1279
        %v1281 = vld [vmem:[%s1229 + $0x54] sm:$0xf]
        %v1282 = vsel %vm1231, %v1034, %v1281
        %1283 = vst [vmem:[%s1229 + $0x54] sm:$0xf] %v1282
        %1284 = vst [vmem:[%s1229 + $0x58] sm:$0xf] %v1043
        %v1285 = vld [vmem:[%s1229 + $0x5c] sm:$0x1]
        %v1286 = vsel %vm700, %v1044, %v1285
        %1287 = vst [vmem:[%s1229 + $0x5c] sm:$0x1] %v1286
        %v1288 = vld [vmem:[%s1229 + $0x60] sm:$0xf]
        %v1289 = vsel %vm1231, %v1051, %v1288
        %1290 = vst [vmem:[%s1229 + $0x60] sm:$0xf] %v1289
        %1291 = vst [vmem:[%s1229 + $0x64] sm:$0xf] %v1060
        %v1292 = vld [vmem:[%s1229 + $0x68] sm:$0x1]
        %v1293 = vsel %vm700, %v1061, %v1292
        %1294 = vst [vmem:[%s1229 + $0x68] sm:$0x1] %v1293
        %v1295 = vld [vmem:[%s1229 + $0x6c] sm:$0xf]
        %v1296 = vsel %vm1231, %v1068, %v1295
        %1297 = vst [vmem:[%s1229 + $0x6c] sm:$0xf] %v1296
        %1298 = vst [vmem:[%s1229 + $0x70] sm:$0xf] %v1077
        %v1299 = vld [vmem:[%s1229 + $0x74] sm:$0x1]
        %v1300 = vsel %vm700, %v1078, %v1299
        %1301 = vst [vmem:[%s1229 + $0x74] sm:$0x1] %v1300
        %v1302 = vld [vmem:[%s1229 + $0x78] sm:$0xf]
        %v1303 = vsel %vm1231, %v1085, %v1302
        %1304 = vst [vmem:[%s1229 + $0x78] sm:$0xf] %v1303
        %1305 = vst [vmem:[%s1229 + $0x7c] sm:$0xf] %v1094
        %v1306 = vld [vmem:[%s1229 + $0x80] sm:$0x1]
        %v1307 = vsel %vm700, %v1095, %v1306
        %1308 = vst [vmem:[%s1229 + $0x80] sm:$0x1] %v1307
        %v1309 = vld [vmem:[%s1229 + $0x84] sm:$0xf]
        %v1310 = vsel %vm1231, %v1102, %v1309
        %1311 = vst [vmem:[%s1229 + $0x84] sm:$0xf] %v1310
        %1312 = vst [vmem:[%s1229 + $0x88] sm:$0xf] %v1111
        %v1313 = vld [vmem:[%s1229 + $0x8c] sm:$0x1]
        %v1314 = vsel %vm700, %v1112, %v1313
        %1315 = vst [vmem:[%s1229 + $0x8c] sm:$0x1] %v1314
        %v1316 = vld [vmem:[%s1229 + $0x90] sm:$0xf]
        %v1317 = vsel %vm1231, %v1119, %v1316
        %1318 = vst [vmem:[%s1229 + $0x90] sm:$0xf] %v1317
        %1319 = vst [vmem:[%s1229 + $0x94] sm:$0xf] %v1128
        %v1320 = vld [vmem:[%s1229 + $0x98] sm:$0x1]
        %v1321 = vsel %vm700, %v1129, %v1320
        %1322 = vst [vmem:[%s1229 + $0x98] sm:$0x1] %v1321
        %v1323 = vld [vmem:[%s1229 + $0x9c] sm:$0xf]
        %v1324 = vsel %vm1231, %v1136, %v1323
        %1325 = vst [vmem:[%s1229 + $0x9c] sm:$0xf] %v1324
        %1326 = vst [vmem:[%s1229 + $0xa0] sm:$0xf] %v1145
        %v1327 = vld [vmem:[%s1229 + $0xa4] sm:$0x1]
        %v1328 = vsel %vm700, %v1146, %v1327
        %1329 = vst [vmem:[%s1229 + $0xa4] sm:$0x1] %v1328
        %v1330 = vld [vmem:[%s1229 + $0xa8] sm:$0xf]
        %v1331 = vsel %vm1231, %v1153, %v1330
        %1332 = vst [vmem:[%s1229 + $0xa8] sm:$0xf] %v1331
        %1333 = vst [vmem:[%s1229 + $0xac] sm:$0xf] %v1162
        %v1334 = vld [vmem:[%s1229 + $0xb0] sm:$0x1]
        %v1335 = vsel %vm700, %v1163, %v1334
        %1336 = vst [vmem:[%s1229 + $0xb0] sm:$0x1] %v1335
        %v1337 = vld [vmem:[%s1229 + $0xb4] sm:$0xf]
        %v1338 = vsel %vm1231, %v1170, %v1337
        %1339 = vst [vmem:[%s1229 + $0xb4] sm:$0xf] %v1338
        %1340 = vst [vmem:[%s1229 + $0xb8] sm:$0xf] %v1179
        %v1341 = vld [vmem:[%s1229 + $0xbc] sm:$0x1]
        %v1342 = vsel %vm700, %v1180, %v1341
        %1343 = vst [vmem:[%s1229 + $0xbc] sm:$0x1] %v1342
        %v1344 = vld [vmem:[#allocation2] sm:$0xf]
        %v1345 = vld [vmem:[#allocation2 + $0x4] sm:$0xf]
        %v1346 = vld [vmem:[#allocation2 + $0xc] sm:$0xf]
        %v1347 = vld [vmem:[#allocation2 + $0x10] sm:$0xf]
        %v1348 = vld [vmem:[#allocation2 + $0x18] sm:$0xf]
        %v1349 = vld [vmem:[#allocation2 + $0x1c] sm:$0xf]
        %v1350 = vld [vmem:[#allocation2 + $0x24] sm:$0xf]
        %v1351 = vld [vmem:[#allocation2 + $0x28] sm:$0xf]
        %v1352 = vld [vmem:[#allocation2 + $0x30] sm:$0xf]
        %v1353 = vld [vmem:[#allocation2 + $0x34] sm:$0xf]
        %v1354 = vld [vmem:[#allocation2 + $0x3c] sm:$0xf]
        %v1355 = vld [vmem:[#allocation2 + $0x40] sm:$0xf]
        %v1356 = vld [vmem:[#allocation2 + $0x48] sm:$0xf]
        %v1357 = vld [vmem:[#allocation2 + $0x4c] sm:$0xf]
        %v1358 = vld [vmem:[#allocation2 + $0x54] sm:$0xf]
        %v1359 = vld [vmem:[#allocation2 + $0x58] sm:$0xf]
        %v1360 = vld [vmem:[#allocation2 + $0x60] sm:$0xf]
        %v1361 = vld [vmem:[#allocation2 + $0x64] sm:$0xf]
        %v1362 = vld [vmem:[#allocation2 + $0x6c] sm:$0xf]
        %v1363 = vld [vmem:[#allocation2 + $0x70] sm:$0xf]
        %v1364 = vld [vmem:[#allocation2 + $0x78] sm:$0xf]
        %v1365 = vld [vmem:[#allocation2 + $0x7c] sm:$0xf]
        %v1366 = vld [vmem:[#allocation2 + $0x84] sm:$0xf]
        %v1367 = vld [vmem:[#allocation2 + $0x88] sm:$0xf]
        %v1368 = vld [vmem:[#allocation2 + $0x90] sm:$0xf]
        %v1369 = vld [vmem:[#allocation2 + $0x94] sm:$0xf]
        %v1370 = vld [vmem:[#allocation2 + $0x9c] sm:$0xf]
        %v1371 = vld [vmem:[#allocation2 + $0xa0] sm:$0xf]
        %v1372 = vld [vmem:[#allocation2 + $0xa8] sm:$0xf]
        %v1373 = vld [vmem:[#allocation2 + $0xac] sm:$0xf]
        %v1374 = vld [vmem:[#allocation2 + $0xb4] sm:$0xf]
        %v1375 = vld [vmem:[#allocation2 + $0xb8] sm:$0xf]
        %v1376 = vld [vmem:[#allocation6] sm:$0xf]
        %v1377 = vld [vmem:[#allocation6 + $0x4] sm:$0xf]
        %v1378 = vld [vmem:[#allocation6 + $0x8] sm:$0xf]
        %v1379 = vld [vmem:[#allocation6 + $0xc] sm:$0xf]
        %v1380 = vld [vmem:[#allocation6 + $0x10] sm:$0xf]
        %v1381 = vld [vmem:[#allocation6 + $0x14] sm:$0xf]
        %v1382 = vld [vmem:[#allocation6 + $0x18] sm:$0xf]
        %v1383 = vld [vmem:[#allocation6 + $0x1c] sm:$0xf]
        %v1384 = vld [vmem:[#allocation6 + $0x20] sm:$0xf]
        %v1385 = vld [vmem:[#allocation6 + $0x24] sm:$0xf]
        %v1386 = vld [vmem:[#allocation6 + $0x28] sm:$0xf]
        %v1387 = vld [vmem:[#allocation6 + $0x2c] sm:$0xf]
        %v1388 = vld [vmem:[#allocation6 + $0x30] sm:$0xf]
        %v1389 = vld [vmem:[#allocation6 + $0x34] sm:$0xf]
        %v1390 = vld [vmem:[#allocation6 + $0x38] sm:$0xf]
        %v1391 = vld [vmem:[#allocation6 + $0x3c] sm:$0xf]
        %v1392 = vld [vmem:[#allocation2 + $0x8] sm:$0x1]
        %v1393 = vld [vmem:[#allocation2 + $0x14] sm:$0x1]
        %v1394 = vld [vmem:[#allocation2 + $0x20] sm:$0x1]
        %v1395 = vld [vmem:[#allocation2 + $0x2c] sm:$0x1]
        %v1396 = vld [vmem:[#allocation2 + $0x38] sm:$0x1]
        %v1397 = vld [vmem:[#allocation2 + $0x44] sm:$0x1]
        %v1398 = vld [vmem:[#allocation2 + $0x50] sm:$0x1]
        %v1399 = vld [vmem:[#allocation2 + $0x5c] sm:$0x1]
        %v1400 = vld [vmem:[#allocation2 + $0x68] sm:$0x1]
        %v1401 = vld [vmem:[#allocation2 + $0x74] sm:$0x1]
        %v1402 = vld [vmem:[#allocation2 + $0x80] sm:$0x1]
        %v1403 = vld [vmem:[#allocation2 + $0x8c] sm:$0x1]
        %v1404 = vld [vmem:[#allocation2 + $0x98] sm:$0x1]
        %v1405 = vld [vmem:[#allocation2 + $0xa4] sm:$0x1]
        %v1406 = vld [vmem:[#allocation2 + $0xb0] sm:$0x1]
        %v1407 = vld [vmem:[#allocation2 + $0xbc] sm:$0x1]
        %vm1408 = vsmask.f32 3328
        %vm1409 = vsmask.f32 7440
        %vm1410 = vmor %vm1408, %vm1409
        %v1412 = vshrl.u32 %v1344, 16
        %v1414 = vrot.slane %v1412, 4
        %v1415 = vshll.u32 %v1344, 16
        %v1417 = vrot.slane %v1415, 5
        %v1418 = vor.u32 %v1414, %v1417
        %v1419 = vrot.slane %v1418, 4
        %v1421 = vshll.u32 %v1345, 16
        %v1423 = vrot.slane %v1421, 5
        %v1424 = vsel %vm1410, %v1419, %v1423
        %v1425 = vshrl.u32 %v1345, 16
        %v1427 = vrot.slane %v1425, 4
        %v1428 = vor.u32 %v1427, %v1423
        %v1429 = vrot.slane %v1428, 4
        %v1431 = vshll.u32 %v1392, 16
        %v1433 = vrot.slane %v1431, 5
        %v1434 = vsel %vm1410, %v1429, %v1433
        %v1436 = vshrl.u32 %v1346, 16
        %v1438 = vrot.slane %v1436, 4
        %v1439 = vshll.u32 %v1346, 16
        %v1441 = vrot.slane %v1439, 5
        %v1442 = vor.u32 %v1438, %v1441
        %v1443 = vrot.slane %v1442, 4
        %v1445 = vshll.u32 %v1347, 16
        %v1447 = vrot.slane %v1445, 5
        %v1448 = vsel %vm1410, %v1443, %v1447
        %v1449 = vshrl.u32 %v1347, 16
        %v1451 = vrot.slane %v1449, 4
        %v1452 = vor.u32 %v1451, %v1447
        %v1453 = vrot.slane %v1452, 4
        %v1455 = vshll.u32 %v1393, 16
        %v1457 = vrot.slane %v1455, 5
        %v1458 = vsel %vm1410, %v1453, %v1457
        %v1460 = vshrl.u32 %v1348, 16
        %v1462 = vrot.slane %v1460, 4
        %v1463 = vshll.u32 %v1348, 16
        %v1465 = vrot.slane %v1463, 5
        %v1466 = vor.u32 %v1462, %v1465
        %v1467 = vrot.slane %v1466, 4
        %v1469 = vshll.u32 %v1349, 16
        %v1471 = vrot.slane %v1469, 5
        %v1472 = vsel %vm1410, %v1467, %v1471
        %v1473 = vshrl.u32 %v1349, 16
        %v1475 = vrot.slane %v1473, 4
        %v1476 = vor.u32 %v1475, %v1471
        %v1477 = vrot.slane %v1476, 4
        %v1479 = vshll.u32 %v1394, 16
        %v1481 = vrot.slane %v1479, 5
        %v1482 = vsel %vm1410, %v1477, %v1481
        %v1484 = vshrl.u32 %v1350, 16
        %v1486 = vrot.slane %v1484, 4
        %v1487 = vshll.u32 %v1350, 16
        %v1489 = vrot.slane %v1487, 5
        %v1490 = vor.u32 %v1486, %v1489
        %v1491 = vrot.slane %v1490, 4
        %v1493 = vshll.u32 %v1351, 16
        %v1495 = vrot.slane %v1493, 5
        %v1496 = vsel %vm1410, %v1491, %v1495
        %v1497 = vshrl.u32 %v1351, 16
        %v1499 = vrot.slane %v1497, 4
        %v1500 = vor.u32 %v1499, %v1495
        %v1501 = vrot.slane %v1500, 4
        %v1503 = vshll.u32 %v1395, 16
        %v1505 = vrot.slane %v1503, 5
        %v1506 = vsel %vm1410, %v1501, %v1505
        %v1508 = vshrl.u32 %v1352, 16
        %v1510 = vrot.slane %v1508, 4
        %v1511 = vshll.u32 %v1352, 16
        %v1513 = vrot.slane %v1511, 5
        %v1514 = vor.u32 %v1510, %v1513
        %v1515 = vrot.slane %v1514, 4
        %v1517 = vshll.u32 %v1353, 16
        %v1519 = vrot.slane %v1517, 5
        %v1520 = vsel %vm1410, %v1515, %v1519
        %v1521 = vshrl.u32 %v1353, 16
        %v1523 = vrot.slane %v1521, 4
        %v1524 = vor.u32 %v1523, %v1519
        %v1525 = vrot.slane %v1524, 4
        %v1527 = vshll.u32 %v1396, 16
        %v1529 = vrot.slane %v1527, 5
        %v1530 = vsel %vm1410, %v1525, %v1529
        %v1532 = vshrl.u32 %v1354, 16
        %v1534 = vrot.slane %v1532, 4
        %v1535 = vshll.u32 %v1354, 16
        %v1537 = vrot.slane %v1535, 5
        %v1538 = vor.u32 %v1534, %v1537
        %v1539 = vrot.slane %v1538, 4
        %v1541 = vshll.u32 %v1355, 16
        %v1543 = vrot.slane %v1541, 5
        %v1544 = vsel %vm1410, %v1539, %v1543
        %v1545 = vshrl.u32 %v1355, 16
        %v1547 = vrot.slane %v1545, 4
        %v1548 = vor.u32 %v1547, %v1543
        %v1549 = vrot.slane %v1548, 4
        %v1551 = vshll.u32 %v1397, 16
        %v1553 = vrot.slane %v1551, 5
        %v1554 = vsel %vm1410, %v1549, %v1553
        %v1556 = vshrl.u32 %v1356, 16
        %v1558 = vrot.slane %v1556, 4
        %v1559 = vshll.u32 %v1356, 16
        %v1561 = vrot.slane %v1559, 5
        %v1562 = vor.u32 %v1558, %v1561
        %v1563 = vrot.slane %v1562, 4
        %v1565 = vshll.u32 %v1357, 16
        %v1567 = vrot.slane %v1565, 5
        %v1568 = vsel %vm1410, %v1563, %v1567
        %v1569 = vshrl.u32 %v1357, 16
        %v1571 = vrot.slane %v1569, 4
        %v1572 = vor.u32 %v1571, %v1567
        %v1573 = vrot.slane %v1572, 4
        %v1575 = vshll.u32 %v1398, 16
        %v1577 = vrot.slane %v1575, 5
        %v1578 = vsel %vm1410, %v1573, %v1577
        %v1580 = vshrl.u32 %v1358, 16
        %v1582 = vrot.slane %v1580, 4
        %v1583 = vshll.u32 %v1358, 16
        %v1585 = vrot.slane %v1583, 5
        %v1586 = vor.u32 %v1582, %v1585
        %v1587 = vrot.slane %v1586, 4
        %v1589 = vshll.u32 %v1359, 16
        %v1591 = vrot.slane %v1589, 5
        %v1592 = vsel %vm1410, %v1587, %v1591
        %v1593 = vshrl.u32 %v1359, 16
        %v1595 = vrot.slane %v1593, 4
        %v1596 = vor.u32 %v1595, %v1591
        %v1597 = vrot.slane %v1596, 4
        %v1599 = vshll.u32 %v1399, 16
        %v1601 = vrot.slane %v1599, 5
        %v1602 = vsel %vm1410, %v1597, %v1601
        %v1604 = vshrl.u32 %v1360, 16
        %v1606 = vrot.slane %v1604, 4
        %v1607 = vshll.u32 %v1360, 16
        %v1609 = vrot.slane %v1607, 5
        %v1610 = vor.u32 %v1606, %v1609
        %v1611 = vrot.slane %v1610, 4
        %v1613 = vshll.u32 %v1361, 16
        %v1615 = vrot.slane %v1613, 5
        %v1616 = vsel %vm1410, %v1611, %v1615
        %v1617 = vshrl.u32 %v1361, 16
        %v1619 = vrot.slane %v1617, 4
        %v1620 = vor.u32 %v1619, %v1615
        %v1621 = vrot.slane %v1620, 4
        %v1623 = vshll.u32 %v1400, 16
        %v1625 = vrot.slane %v1623, 5
        %v1626 = vsel %vm1410, %v1621, %v1625
        %v1628 = vshrl.u32 %v1362, 16
        %v1630 = vrot.slane %v1628, 4
        %v1631 = vshll.u32 %v1362, 16
        %v1633 = vrot.slane %v1631, 5
        %v1634 = vor.u32 %v1630, %v1633
        %v1635 = vrot.slane %v1634, 4
        %v1637 = vshll.u32 %v1363, 16
        %v1639 = vrot.slane %v1637, 5
        %v1640 = vsel %vm1410, %v1635, %v1639
        %v1641 = vshrl.u32 %v1363, 16
        %v1643 = vrot.slane %v1641, 4
        %v1644 = vor.u32 %v1643, %v1639
        %v1645 = vrot.slane %v1644, 4
        %v1647 = vshll.u32 %v1401, 16
        %v1649 = vrot.slane %v1647, 5
        %v1650 = vsel %vm1410, %v1645, %v1649
        %v1652 = vshrl.u32 %v1364, 16
        %v1654 = vrot.slane %v1652, 4
        %v1655 = vshll.u32 %v1364, 16
        %v1657 = vrot.slane %v1655, 5
        %v1658 = vor.u32 %v1654, %v1657
        %v1659 = vrot.slane %v1658, 4
        %v1661 = vshll.u32 %v1365, 16
        %v1663 = vrot.slane %v1661, 5
        %v1664 = vsel %vm1410, %v1659, %v1663
        %v1665 = vshrl.u32 %v1365, 16
        %v1667 = vrot.slane %v1665, 4
        %v1668 = vor.u32 %v1667, %v1663
        %v1669 = vrot.slane %v1668, 4
        %v1671 = vshll.u32 %v1402, 16
        %v1673 = vrot.slane %v1671, 5
        %v1674 = vsel %vm1410, %v1669, %v1673
        %v1676 = vshrl.u32 %v1366, 16
        %v1678 = vrot.slane %v1676, 4
        %v1679 = vshll.u32 %v1366, 16
        %v1681 = vrot.slane %v1679, 5
        %v1682 = vor.u32 %v1678, %v1681
        %v1683 = vrot.slane %v1682, 4
        %v1685 = vshll.u32 %v1367, 16
        %v1687 = vrot.slane %v1685, 5
        %v1688 = vsel %vm1410, %v1683, %v1687
        %v1689 = vshrl.u32 %v1367, 16
        %v1691 = vrot.slane %v1689, 4
        %v1692 = vor.u32 %v1691, %v1687
        %v1693 = vrot.slane %v1692, 4
        %v1695 = vshll.u32 %v1403, 16
        %v1697 = vrot.slane %v1695, 5
        %v1698 = vsel %vm1410, %v1693, %v1697
        %v1700 = vshrl.u32 %v1368, 16
        %v1702 = vrot.slane %v1700, 4
        %v1703 = vshll.u32 %v1368, 16
        %v1705 = vrot.slane %v1703, 5
        %v1706 = vor.u32 %v1702, %v1705
        %v1707 = vrot.slane %v1706, 4
        %v1709 = vshll.u32 %v1369, 16
        %v1711 = vrot.slane %v1709, 5
        %v1712 = vsel %vm1410, %v1707, %v1711
        %v1713 = vshrl.u32 %v1369, 16
        %v1715 = vrot.slane %v1713, 4
        %v1716 = vor.u32 %v1715, %v1711
        %v1717 = vrot.slane %v1716, 4
        %v1719 = vshll.u32 %v1404, 16
        %v1721 = vrot.slane %v1719, 5
        %v1722 = vsel %vm1410, %v1717, %v1721
        %v1724 = vshrl.u32 %v1370, 16
        %v1726 = vrot.slane %v1724, 4
        %v1727 = vshll.u32 %v1370, 16
        %v1729 = vrot.slane %v1727, 5
        %v1730 = vor.u32 %v1726, %v1729
        %v1731 = vrot.slane %v1730, 4
        %v1733 = vshll.u32 %v1371, 16
        %v1735 = vrot.slane %v1733, 5
        %v1736 = vsel %vm1410, %v1731, %v1735
        %v1737 = vshrl.u32 %v1371, 16
        %v1739 = vrot.slane %v1737, 4
        %v1740 = vor.u32 %v1739, %v1735
        %v1741 = vrot.slane %v1740, 4
        %v1743 = vshll.u32 %v1405, 16
        %v1745 = vrot.slane %v1743, 5
        %v1746 = vsel %vm1410, %v1741, %v1745
        %v1748 = vshrl.u32 %v1372, 16
        %v1750 = vrot.slane %v1748, 4
        %v1751 = vshll.u32 %v1372, 16
        %v1753 = vrot.slane %v1751, 5
        %v1754 = vor.u32 %v1750, %v1753
        %v1755 = vrot.slane %v1754, 4
        %v1757 = vshll.u32 %v1373, 16
        %v1759 = vrot.slane %v1757, 5
        %v1760 = vsel %vm1410, %v1755, %v1759
        %v1761 = vshrl.u32 %v1373, 16
        %v1763 = vrot.slane %v1761, 4
        %v1764 = vor.u32 %v1763, %v1759
        %v1765 = vrot.slane %v1764, 4
        %v1767 = vshll.u32 %v1406, 16
        %v1769 = vrot.slane %v1767, 5
        %v1770 = vsel %vm1410, %v1765, %v1769
        %v1772 = vshrl.u32 %v1374, 16
        %v1774 = vrot.slane %v1772, 4
        %v1775 = vshll.u32 %v1374, 16
        %v1777 = vrot.slane %v1775, 5
        %v1778 = vor.u32 %v1774, %v1777
        %v1779 = vrot.slane %v1778, 4
        %v1781 = vshll.u32 %v1375, 16
        %v1783 = vrot.slane %v1781, 5
        %v1784 = vsel %vm1410, %v1779, %v1783
        %v1785 = vshrl.u32 %v1375, 16
        %v1787 = vrot.slane %v1785, 4
        %v1788 = vor.u32 %v1787, %v1783
        %v1789 = vrot.slane %v1788, 4
        %v1791 = vshll.u32 %v1407, 16
        %v1793 = vrot.slane %v1791, 5
        %v1794 = vsel %vm1410, %v1789, %v1793
        %s1795 = scalar_lea.vmem [#allocation6], 64
        %v1796 = vld [vmem:[%s1795] sm:$0xf]
        %v1797 = vld [vmem:[%s1795 + $0x4] sm:$0xf]
        %v1798 = vld [vmem:[%s1795 + $0x8] sm:$0xf]
        %v1799 = vld [vmem:[%s1795 + $0xc] sm:$0xf]
        %v1800 = vld [vmem:[%s1795 + $0x10] sm:$0xf]
        %v1801 = vld [vmem:[%s1795 + $0x14] sm:$0xf]
        %v1802 = vld [vmem:[%s1795 + $0x18] sm:$0xf]
        %v1803 = vld [vmem:[%s1795 + $0x1c] sm:$0xf]
        %v1804 = vld [vmem:[%s1795 + $0x20] sm:$0xf]
        %v1805 = vld [vmem:[%s1795 + $0x24] sm:$0xf]
        %v1806 = vld [vmem:[%s1795 + $0x28] sm:$0xf]
        %v1807 = vld [vmem:[%s1795 + $0x2c] sm:$0xf]
        %v1808 = vld [vmem:[%s1795 + $0x30] sm:$0xf]
        %v1809 = vld [vmem:[%s1795 + $0x34] sm:$0xf]
        %v1810 = vld [vmem:[%s1795 + $0x38] sm:$0xf]
        %v1811 = vld [vmem:[%s1795 + $0x3c] sm:$0xf]
        %v1812 = vunpack.c.l.b16 %v1424
        %v1813 = vunpack.c.l.b16 %v1434
        %v1814 = vunpack.c.l.b16 %v1448
        %v1815 = vunpack.c.l.b16 %v1458
        %v1816 = vunpack.c.l.b16 %v1472
        %v1817 = vunpack.c.l.b16 %v1482
        %v1818 = vunpack.c.l.b16 %v1496
        %v1819 = vunpack.c.l.b16 %v1506
        %v1820 = vunpack.c.l.b16 %v1520
        %v1821 = vunpack.c.l.b16 %v1530
        %v1822 = vunpack.c.l.b16 %v1544
        %v1823 = vunpack.c.l.b16 %v1554
        %v1824 = vunpack.c.l.b16 %v1568
        %v1825 = vunpack.c.l.b16 %v1578
        %v1826 = vunpack.c.l.b16 %v1592
        %v1827 = vunpack.c.l.b16 %v1602
        %v1828 = vunpack.c.l.b16 %v1616
        %v1829 = vunpack.c.l.b16 %v1626
        %v1830 = vunpack.c.l.b16 %v1640
        %v1831 = vunpack.c.l.b16 %v1650
        %v1832 = vunpack.c.l.b16 %v1664
        %v1833 = vunpack.c.l.b16 %v1674
        %v1834 = vunpack.c.l.b16 %v1688
        %v1835 = vunpack.c.l.b16 %v1698
        %v1836 = vunpack.c.l.b16 %v1712
        %v1837 = vunpack.c.l.b16 %v1722
        %v1838 = vunpack.c.l.b16 %v1736
        %v1839 = vunpack.c.l.b16 %v1746
        %v1840 = vunpack.c.l.b16 %v1760
        %v1841 = vunpack.c.l.b16 %v1770
        %v1842 = vunpack.c.l.b16 %v1784
        %v1843 = vunpack.c.l.b16 %v1794
        %v1844 = vpack.c.b16 %v1813, %v1812
        %v1845 = vpack.c.b16 %v1815, %v1814
        %v1846 = vpack.c.b16 %v1817, %v1816
        %v1847 = vpack.c.b16 %v1819, %v1818
        %v1848 = vpack.c.b16 %v1821, %v1820
        %v1849 = vpack.c.b16 %v1823, %v1822
        %v1850 = vpack.c.b16 %v1825, %v1824
        %v1851 = vpack.c.b16 %v1827, %v1826
        %v1852 = vpack.c.b16 %v1829, %v1828
        %v1853 = vpack.c.b16 %v1831, %v1830
        %v1854 = vpack.c.b16 %v1833, %v1832
        %v1855 = vpack.c.b16 %v1835, %v1834
        %v1856 = vpack.c.b16 %v1837, %v1836
        %v1857 = vpack.c.b16 %v1839, %v1838
        %v1858 = vpack.c.b16 %v1841, %v1840
        %v1859 = vpack.c.b16 %v1843, %v1842
        %v1892 = vunpack.c.l.b16 %v1796
        %v1893 = vunpack.c.l.b16 %v1797
        %v1894 = vunpack.c.l.b16 %v1798
        %v1895 = vunpack.c.l.b16 %v1799
        %v1896 = vunpack.c.l.b16 %v1800
        %v1897 = vunpack.c.l.b16 %v1801
        %v1898 = vunpack.c.l.b16 %v1802
        %v1899 = vunpack.c.l.b16 %v1803
        %v1900 = vunpack.c.l.b16 %v1804
        %v1901 = vunpack.c.l.b16 %v1805
        %v1902 = vunpack.c.l.b16 %v1806
        %v1903 = vunpack.c.l.b16 %v1807
        %v1904 = vunpack.c.l.b16 %v1808
        %v1905 = vunpack.c.l.b16 %v1809
        %v1906 = vunpack.c.l.b16 %v1810
        %v1907 = vunpack.c.l.b16 %v1811
        %v1908 = vpack.c.b16 %v1893, %v1892
        %v1909 = vpack.c.b16 %v1895, %v1894
        %v1910 = vpack.c.b16 %v1897, %v1896
        %v1911 = vpack.c.b16 %v1899, %v1898
        %v1912 = vpack.c.b16 %v1901, %v1900
        %v1913 = vpack.c.b16 %v1903, %v1902
        %v1914 = vpack.c.b16 %v1905, %v1904
        %v1915 = vpack.c.b16 %v1907, %v1906
        %1924 = vmatprep.subr.bf16.mxu0 0
        %1925 = vmatpush1.bf16.msra.mxu0 %v1915
        %1926 = vmatprep.subr.bf16.mxu0 0
        %1927 = vmatpush1.bf16.msra.mxu0 %v1914
        %1928 = vmatprep.subr.bf16.mxu0 0
        %1929 = vmatpush1.bf16.msra.mxu0 %v1913
        %1930 = vmatprep.subr.bf16.mxu0 0
        %1931 = vmatpush1.bf16.msra.mxu0 %v1912
        %1932 = vmatprep.subr.bf16.mxu0 0
        %1933 = vmatpush1.bf16.msra.mxu0 %v1911
        %1934 = vmatprep.subr.bf16.mxu0 0
        %1935 = vmatpush1.bf16.msra.mxu0 %v1910
        %1936 = vmatprep.subr.bf16.mxu0 0
        %1937 = vmatpush1.bf16.msra.mxu0 %v1909
        %1938 = vmatprep.subr.bf16.mxu0 0
        %1939 = vmatpush1.bf16.msra.mxu0 %v1908
        %1940 = vmatprep.subr.bf16.mxu0 0
        %1941 = vmatpush2.bf16.msra.mxu0 0
        %1942 = vmatprep.subr.bf16.mxu0 0
        %1943 = vmatpush2.bf16.msra.mxu0 0
        %1944 = vmatprep.subr.bf16.mxu0 0
        %1945 = vmatpush2.bf16.msra.mxu0 0
        %1946 = vmatprep.subr.bf16.mxu0 0
        %1947 = vmatpush2.bf16.msra.mxu0 0
        %1948 = vmatprep.subr.bf16.mxu0 0
        %1949 = vmatpush2.bf16.msra.mxu0 0
        %1950 = vmatprep.subr.bf16.mxu0 0
        %1951 = vmatpush2.bf16.msra.mxu0 0
        %1952 = vmatprep.subr.bf16.mxu0 0
        %1953 = vmatpush2.bf16.msra.mxu0 0
        %1954 = vmatprep.subr.bf16.mxu0 0
        %1955 = vmatpush2.bf16.msra.mxu0 0
        %1956 = vmatprep.mubr.bf16.mxu0 0
        %1957 = vmatmul.mubr.bf16.gmra.mxu0 %v1844
        %v1958 = vpop.f32.mrf.mxu0
        %v1959 = vadd.f32 0.0, %v1958
        %v1960 = vpop.f32.mrf.mxu0
        %v1961 = vpop.f32.mrf.mxu0
        %v1962 = vadd.f32 0.0, %v1961
        %v1963 = vpop.f32.mrf.mxu0
        %1964 = vmatprep.mubr.bf16.mxu0 0
        %1965 = vmatmul.mubr.bf16.gmra.mxu0 %v1845
        %v1966 = vpop.f32.mrf.mxu0
        %v1967 = vadd.f32 0.0, %v1966
        %v1968 = vpop.f32.mrf.mxu0
        %v1969 = vpop.f32.mrf.mxu0
        %v1970 = vadd.f32 0.0, %v1969
        %v1971 = vpop.f32.mrf.mxu0
        %1972 = vmatprep.mubr.bf16.mxu0 0
        %1973 = vmatmul.mubr.bf16.gmra.mxu0 %v1846
        %v1974 = vpop.f32.mrf.mxu0
        %v1975 = vadd.f32 0.0, %v1974
        %v1976 = vpop.f32.mrf.mxu0
        %v1977 = vpop.f32.mrf.mxu0
        %v1978 = vadd.f32 0.0, %v1977
        %v1979 = vpop.f32.mrf.mxu0
        %1980 = vmatprep.mubr.bf16.mxu0 0
        %1981 = vmatmul.mubr.bf16.gmra.mxu0 %v1847
        %v1982 = vpop.f32.mrf.mxu0
        %v1983 = vadd.f32 0.0, %v1982
        %v1984 = vpop.f32.mrf.mxu0
        %v1985 = vpop.f32.mrf.mxu0
        %v1986 = vadd.f32 0.0, %v1985
        %v1987 = vpop.f32.mrf.mxu0
        %1988 = vmatprep.mubr.bf16.mxu0 0
        %1989 = vmatmul.mubr.bf16.gmra.mxu0 %v1848
        %v1990 = vpop.f32.mrf.mxu0
        %v1991 = vadd.f32 0.0, %v1990
        %v1992 = vpop.f32.mrf.mxu0
        %v1993 = vpop.f32.mrf.mxu0
        %v1994 = vadd.f32 0.0, %v1993
        %v1995 = vpop.f32.mrf.mxu0
        %1996 = vmatprep.mubr.bf16.mxu0 0
        %1997 = vmatmul.mubr.bf16.gmra.mxu0 %v1849
        %v1998 = vpop.f32.mrf.mxu0
        %v1999 = vadd.f32 0.0, %v1998
        %v2000 = vpop.f32.mrf.mxu0
        %v2001 = vpop.f32.mrf.mxu0
        %v2002 = vadd.f32 0.0, %v2001
        %v2003 = vpop.f32.mrf.mxu0
        %2004 = vmatprep.mubr.bf16.mxu0 0
        %2005 = vmatmul.mubr.bf16.gmra.mxu0 %v1850
        %v2006 = vpop.f32.mrf.mxu0
        %v2007 = vadd.f32 0.0, %v2006
        %v2008 = vpop.f32.mrf.mxu0
        %v2009 = vpop.f32.mrf.mxu0
        %v2010 = vadd.f32 0.0, %v2009
        %v2011 = vpop.f32.mrf.mxu0
        %2012 = vmatprep.mubr.bf16.mxu0 0
        %2013 = vmatmul.mubr.bf16.gmra.mxu0 %v1851
        %v2014 = vpop.f32.mrf.mxu0
        %v2015 = vadd.f32 0.0, %v2014
        %v2016 = vpop.f32.mrf.mxu0
        %v2017 = vpop.f32.mrf.mxu0
        %v2018 = vadd.f32 0.0, %v2017
        %v2019 = vpop.f32.mrf.mxu0
        %2020 = vmatprep.mubr.bf16.mxu0 0
        %2021 = vmatmul.mubr.bf16.gmra.mxu0 %v1852
        %v2022 = vpop.f32.mrf.mxu0
        %v2023 = vadd.f32 0.0, %v2022
        %v2024 = vpop.f32.mrf.mxu0
        %v2025 = vpop.f32.mrf.mxu0
        %v2026 = vadd.f32 0.0, %v2025
        %v2027 = vpop.f32.mrf.mxu0
        %2028 = vmatprep.mubr.bf16.mxu0 0
        %2029 = vmatmul.mubr.bf16.gmra.mxu0 %v1853
        %v2030 = vpop.f32.mrf.mxu0
        %v2031 = vadd.f32 0.0, %v2030
        %v2032 = vpop.f32.mrf.mxu0
        %v2033 = vpop.f32.mrf.mxu0
        %v2034 = vadd.f32 0.0, %v2033
        %v2035 = vpop.f32.mrf.mxu0
        %2036 = vmatprep.mubr.bf16.mxu0 0
        %2037 = vmatmul.mubr.bf16.gmra.mxu0 %v1854
        %v2038 = vpop.f32.mrf.mxu0
        %v2039 = vadd.f32 0.0, %v2038
        %v2040 = vpop.f32.mrf.mxu0
        %v2041 = vpop.f32.mrf.mxu0
        %v2042 = vadd.f32 0.0, %v2041
        %v2043 = vpop.f32.mrf.mxu0
        %2044 = vmatprep.mubr.bf16.mxu0 0
        %2045 = vmatmul.mubr.bf16.gmra.mxu0 %v1855
        %v2046 = vpop.f32.mrf.mxu0
        %v2047 = vadd.f32 0.0, %v2046
        %v2048 = vpop.f32.mrf.mxu0
        %v2049 = vpop.f32.mrf.mxu0
        %v2050 = vadd.f32 0.0, %v2049
        %v2051 = vpop.f32.mrf.mxu0
        %2052 = vmatprep.mubr.bf16.mxu0 0
        %2053 = vmatmul.mubr.bf16.gmra.mxu0 %v1856
        %v2054 = vpop.f32.mrf.mxu0
        %v2055 = vadd.f32 0.0, %v2054
        %v2056 = vpop.f32.mrf.mxu0
        %v2057 = vpop.f32.mrf.mxu0
        %v2058 = vadd.f32 0.0, %v2057
        %v2059 = vpop.f32.mrf.mxu0
        %2060 = vmatprep.mubr.bf16.mxu0 0
        %2061 = vmatmul.mubr.bf16.gmra.mxu0 %v1857
        %v2062 = vpop.f32.mrf.mxu0
        %v2063 = vadd.f32 0.0, %v2062
        %v2064 = vpop.f32.mrf.mxu0
        %v2065 = vpop.f32.mrf.mxu0
        %v2066 = vadd.f32 0.0, %v2065
        %v2067 = vpop.f32.mrf.mxu0
        %2068 = vmatprep.mubr.bf16.mxu0 0
        %2069 = vmatmul.mubr.bf16.gmra.mxu0 %v1858
        %v2070 = vpop.f32.mrf.mxu0
        %v2071 = vadd.f32 0.0, %v2070
        %v2072 = vpop.f32.mrf.mxu0
        %v2073 = vpop.f32.mrf.mxu0
        %v2074 = vadd.f32 0.0, %v2073
        %v2075 = vpop.f32.mrf.mxu0
        %2076 = vmatprep.mubr.bf16.mxu0 0
        %2077 = vmatmul.mubr.bf16.gmra.mxu0 %v1859
        %v2078 = vpop.f32.mrf.mxu0
        %v2079 = vadd.f32 0.0, %v2078
        %v2080 = vpop.f32.mrf.mxu0
        %v2081 = vpop.f32.mrf.mxu0
        %v2082 = vadd.f32 0.0, %v2081
        %v2083 = vpop.f32.mrf.mxu0
        %2084 = vdwg.mxu0
        %v2117 = vunpack.c.l.b16 %v1344
        %v2118 = vunpack.c.l.b16 %v1345
        %v2119 = vunpack.c.l.b16 %v1346
        %v2120 = vunpack.c.l.b16 %v1347
        %v2121 = vunpack.c.l.b16 %v1348
        %v2122 = vunpack.c.l.b16 %v1349
        %v2123 = vunpack.c.l.b16 %v1350
        %v2124 = vunpack.c.l.b16 %v1351
        %v2125 = vunpack.c.l.b16 %v1352
        %v2126 = vunpack.c.l.b16 %v1353
        %v2127 = vunpack.c.l.b16 %v1354
        %v2128 = vunpack.c.l.b16 %v1355
        %v2129 = vunpack.c.l.b16 %v1356
        %v2130 = vunpack.c.l.b16 %v1357
        %v2131 = vunpack.c.l.b16 %v1358
        %v2132 = vunpack.c.l.b16 %v1359
        %v2133 = vunpack.c.l.b16 %v1360
        %v2134 = vunpack.c.l.b16 %v1361
        %v2135 = vunpack.c.l.b16 %v1362
        %v2136 = vunpack.c.l.b16 %v1363
        %v2137 = vunpack.c.l.b16 %v1364
        %v2138 = vunpack.c.l.b16 %v1365
        %v2139 = vunpack.c.l.b16 %v1366
        %v2140 = vunpack.c.l.b16 %v1367
        %v2141 = vunpack.c.l.b16 %v1368
        %v2142 = vunpack.c.l.b16 %v1369
        %v2143 = vunpack.c.l.b16 %v1370
        %v2144 = vunpack.c.l.b16 %v1371
        %v2145 = vunpack.c.l.b16 %v1372
        %v2146 = vunpack.c.l.b16 %v1373
        %v2147 = vunpack.c.l.b16 %v1374
        %v2148 = vunpack.c.l.b16 %v1375
        %v2149 = vpack.c.b16 %v2118, %v2117
        %v2150 = vpack.c.b16 %v2120, %v2119
        %v2151 = vpack.c.b16 %v2122, %v2121
        %v2152 = vpack.c.b16 %v2124, %v2123
        %v2153 = vpack.c.b16 %v2126, %v2125
        %v2154 = vpack.c.b16 %v2128, %v2127
        %v2155 = vpack.c.b16 %v2130, %v2129
        %v2156 = vpack.c.b16 %v2132, %v2131
        %v2157 = vpack.c.b16 %v2134, %v2133
        %v2158 = vpack.c.b16 %v2136, %v2135
        %v2159 = vpack.c.b16 %v2138, %v2137
        %v2160 = vpack.c.b16 %v2140, %v2139
        %v2161 = vpack.c.b16 %v2142, %v2141
        %v2162 = vpack.c.b16 %v2144, %v2143
        %v2163 = vpack.c.b16 %v2146, %v2145
        %v2164 = vpack.c.b16 %v2148, %v2147
        %v2197 = vunpack.c.l.b16 %v1376
        %v2198 = vunpack.c.l.b16 %v1377
        %v2199 = vunpack.c.l.b16 %v1378
        %v2200 = vunpack.c.l.b16 %v1379
        %v2201 = vunpack.c.l.b16 %v1380
        %v2202 = vunpack.c.l.b16 %v1381
        %v2203 = vunpack.c.l.b16 %v1382
        %v2204 = vunpack.c.l.b16 %v1383
        %v2205 = vunpack.c.l.b16 %v1384
        %v2206 = vunpack.c.l.b16 %v1385
        %v2207 = vunpack.c.l.b16 %v1386
        %v2208 = vunpack.c.l.b16 %v1387
        %v2209 = vunpack.c.l.b16 %v1388
        %v2210 = vunpack.c.l.b16 %v1389
        %v2211 = vunpack.c.l.b16 %v1390
        %v2212 = vunpack.c.l.b16 %v1391
        %v2213 = vpack.c.b16 %v2198, %v2197
        %v2214 = vpack.c.b16 %v2200, %v2199
        %v2215 = vpack.c.b16 %v2202, %v2201
        %v2216 = vpack.c.b16 %v2204, %v2203
        %v2217 = vpack.c.b16 %v2206, %v2205
        %v2218 = vpack.c.b16 %v2208, %v2207
        %v2219 = vpack.c.b16 %v2210, %v2209
        %v2220 = vpack.c.b16 %v2212, %v2211
        %2229 = vmatprep.subr.bf16.mxu0 0
        %2230 = vmatpush1.bf16.msra.mxu0 %v2220
        %2231 = vmatprep.subr.bf16.mxu0 0
        %2232 = vmatpush1.bf16.msra.mxu0 %v2219
        %2233 = vmatprep.subr.bf16.mxu0 0
        %2234 = vmatpush1.bf16.msra.mxu0 %v2218
        %2235 = vmatprep.subr.bf16.mxu0 0
        %2236 = vmatpush1.bf16.msra.mxu0 %v2217
        %2237 = vmatprep.subr.bf16.mxu0 0
        %2238 = vmatpush1.bf16.msra.mxu0 %v2216
        %2239 = vmatprep.subr.bf16.mxu0 0
        %2240 = vmatpush1.bf16.msra.mxu0 %v2215
        %2241 = vmatprep.subr.bf16.mxu0 0
        %2242 = vmatpush1.bf16.msra.mxu0 %v2214
        %2243 = vmatprep.subr.bf16.mxu0 0
        %2244 = vmatpush1.bf16.msra.mxu0 %v2213
        %2245 = vmatprep.subr.bf16.mxu0 0
        %2246 = vmatpush2.bf16.msra.mxu0 0
        %2247 = vmatprep.subr.bf16.mxu0 0
        %2248 = vmatpush2.bf16.msra.mxu0 0
        %2249 = vmatprep.subr.bf16.mxu0 0
        %2250 = vmatpush2.bf16.msra.mxu0 0
        %2251 = vmatprep.subr.bf16.mxu0 0
        %2252 = vmatpush2.bf16.msra.mxu0 0
        %2253 = vmatprep.subr.bf16.mxu0 0
        %2254 = vmatpush2.bf16.msra.mxu0 0
        %2255 = vmatprep.subr.bf16.mxu0 0
        %2256 = vmatpush2.bf16.msra.mxu0 0
        %2257 = vmatprep.subr.bf16.mxu0 0
        %2258 = vmatpush2.bf16.msra.mxu0 0
        %2259 = vmatprep.subr.bf16.mxu0 0
        %2260 = vmatpush2.bf16.msra.mxu0 0
        %2261 = vmatprep.mubr.bf16.mxu0 0
        %2262 = vmatmul.mubr.bf16.gmra.mxu0 %v2149
        %v2263 = vpop.f32.mrf.mxu0
        %v2264 = vadd.f32 %v1959, %v2263
        %v2265 = vpop.f32.mrf.mxu0
        %v2266 = vpop.f32.mrf.mxu0
        %v2267 = vadd.f32 %v1962, %v2266
        %v2268 = vpop.f32.mrf.mxu0
        %2269 = vmatprep.mubr.bf16.mxu0 0
        %2270 = vmatmul.mubr.bf16.gmra.mxu0 %v2150
        %v2271 = vpop.f32.mrf.mxu0
        %v2272 = vadd.f32 %v1967, %v2271
        %v2273 = vpop.f32.mrf.mxu0
        %v2274 = vpop.f32.mrf.mxu0
        %v2275 = vadd.f32 %v1970, %v2274
        %v2276 = vpop.f32.mrf.mxu0
        %2277 = vmatprep.mubr.bf16.mxu0 0
        %2278 = vmatmul.mubr.bf16.gmra.mxu0 %v2151
        %v2279 = vpop.f32.mrf.mxu0
        %v2280 = vadd.f32 %v1975, %v2279
        %v2281 = vpop.f32.mrf.mxu0
        %v2282 = vpop.f32.mrf.mxu0
        %v2283 = vadd.f32 %v1978, %v2282
        %v2284 = vpop.f32.mrf.mxu0
        %2285 = vmatprep.mubr.bf16.mxu0 0
        %2286 = vmatmul.mubr.bf16.gmra.mxu0 %v2152
        %v2287 = vpop.f32.mrf.mxu0
        %v2288 = vadd.f32 %v1983, %v2287
        %v2289 = vpop.f32.mrf.mxu0
        %v2290 = vpop.f32.mrf.mxu0
        %v2291 = vadd.f32 %v1986, %v2290
        %v2292 = vpop.f32.mrf.mxu0
        %2293 = vmatprep.mubr.bf16.mxu0 0
        %2294 = vmatmul.mubr.bf16.gmra.mxu0 %v2153
        %v2295 = vpop.f32.mrf.mxu0
        %v2296 = vadd.f32 %v1991, %v2295
        %v2297 = vpop.f32.mrf.mxu0
        %v2298 = vpop.f32.mrf.mxu0
        %v2299 = vadd.f32 %v1994, %v2298
        %v2300 = vpop.f32.mrf.mxu0
        %2301 = vmatprep.mubr.bf16.mxu0 0
        %2302 = vmatmul.mubr.bf16.gmra.mxu0 %v2154
        %v2303 = vpop.f32.mrf.mxu0
        %v2304 = vadd.f32 %v1999, %v2303
        %v2305 = vpop.f32.mrf.mxu0
        %v2306 = vpop.f32.mrf.mxu0
        %v2307 = vadd.f32 %v2002, %v2306
        %v2308 = vpop.f32.mrf.mxu0
        %2309 = vmatprep.mubr.bf16.mxu0 0
        %2310 = vmatmul.mubr.bf16.gmra.mxu0 %v2155
        %v2311 = vpop.f32.mrf.mxu0
        %v2312 = vadd.f32 %v2007, %v2311
        %v2313 = vpop.f32.mrf.mxu0
        %v2314 = vpop.f32.mrf.mxu0
        %v2315 = vadd.f32 %v2010, %v2314
        %v2316 = vpop.f32.mrf.mxu0
        %2317 = vmatprep.mubr.bf16.mxu0 0
        %2318 = vmatmul.mubr.bf16.gmra.mxu0 %v2156
        %v2319 = vpop.f32.mrf.mxu0
        %v2320 = vadd.f32 %v2015, %v2319
        %v2321 = vpop.f32.mrf.mxu0
        %v2322 = vpop.f32.mrf.mxu0
        %v2323 = vadd.f32 %v2018, %v2322
        %v2324 = vpop.f32.mrf.mxu0
        %2325 = vmatprep.mubr.bf16.mxu0 0
        %2326 = vmatmul.mubr.bf16.gmra.mxu0 %v2157
        %v2327 = vpop.f32.mrf.mxu0
        %v2328 = vadd.f32 %v2023, %v2327
        %v2329 = vpop.f32.mrf.mxu0
        %v2330 = vpop.f32.mrf.mxu0
        %v2331 = vadd.f32 %v2026, %v2330
        %v2332 = vpop.f32.mrf.mxu0
        %2333 = vmatprep.mubr.bf16.mxu0 0
        %2334 = vmatmul.mubr.bf16.gmra.mxu0 %v2158
        %v2335 = vpop.f32.mrf.mxu0
        %v2336 = vadd.f32 %v2031, %v2335
        %v2337 = vpop.f32.mrf.mxu0
        %v2338 = vpop.f32.mrf.mxu0
        %v2339 = vadd.f32 %v2034, %v2338
        %v2340 = vpop.f32.mrf.mxu0
        %2341 = vmatprep.mubr.bf16.mxu0 0
        %2342 = vmatmul.mubr.bf16.gmra.mxu0 %v2159
        %v2343 = vpop.f32.mrf.mxu0
        %v2344 = vadd.f32 %v2039, %v2343
        %v2345 = vpop.f32.mrf.mxu0
        %v2346 = vpop.f32.mrf.mxu0
        %v2347 = vadd.f32 %v2042, %v2346
        %v2348 = vpop.f32.mrf.mxu0
        %2349 = vmatprep.mubr.bf16.mxu0 0
        %2350 = vmatmul.mubr.bf16.gmra.mxu0 %v2160
        %v2351 = vpop.f32.mrf.mxu0
        %v2352 = vadd.f32 %v2047, %v2351
        %v2353 = vpop.f32.mrf.mxu0
        %v2354 = vpop.f32.mrf.mxu0
        %v2355 = vadd.f32 %v2050, %v2354
        %v2356 = vpop.f32.mrf.mxu0
        %2357 = vmatprep.mubr.bf16.mxu0 0
        %2358 = vmatmul.mubr.bf16.gmra.mxu0 %v2161
        %v2359 = vpop.f32.mrf.mxu0
        %v2360 = vadd.f32 %v2055, %v2359
        %v2361 = vpop.f32.mrf.mxu0
        %v2362 = vpop.f32.mrf.mxu0
        %v2363 = vadd.f32 %v2058, %v2362
        %v2364 = vpop.f32.mrf.mxu0
        %2365 = vmatprep.mubr.bf16.mxu0 0
        %2366 = vmatmul.mubr.bf16.gmra.mxu0 %v2162
        %v2367 = vpop.f32.mrf.mxu0
        %v2368 = vadd.f32 %v2063, %v2367
        %v2369 = vpop.f32.mrf.mxu0
        %v2370 = vpop.f32.mrf.mxu0
        %v2371 = vadd.f32 %v2066, %v2370
        %v2372 = vpop.f32.mrf.mxu0
        %2373 = vmatprep.mubr.bf16.mxu0 0
        %2374 = vmatmul.mubr.bf16.gmra.mxu0 %v2163
        %v2375 = vpop.f32.mrf.mxu0
        %v2376 = vadd.f32 %v2071, %v2375
        %v2377 = vpop.f32.mrf.mxu0
        %v2378 = vpop.f32.mrf.mxu0
        %v2379 = vadd.f32 %v2074, %v2378
        %v2380 = vpop.f32.mrf.mxu0
        %2381 = vmatprep.mubr.bf16.mxu0 0
        %2382 = vmatmul.mubr.bf16.gmra.mxu0 %v2164
        %v2383 = vpop.f32.mrf.mxu0
        %v2384 = vadd.f32 %v2079, %v2383
        %v2385 = vpop.f32.mrf.mxu0
        %v2386 = vpop.f32.mrf.mxu0
        %v2387 = vadd.f32 %v2082, %v2386
        %v2388 = vpop.f32.mrf.mxu0
        %2389 = vdwg.mxu0
        %v2390 = vld [vmem:[#allocation2] sm:$0xe]
        %v2391 = vld [vmem:[#allocation2 + $0xc] sm:$0xe]
        %v2392 = vld [vmem:[#allocation2 + $0x18] sm:$0xe]
        %v2393 = vld [vmem:[#allocation2 + $0x24] sm:$0xe]
        %v2394 = vld [vmem:[#allocation2 + $0x30] sm:$0xe]
        %v2395 = vld [vmem:[#allocation2 + $0x3c] sm:$0xe]
        %v2396 = vld [vmem:[#allocation2 + $0x48] sm:$0xe]
        %v2397 = vld [vmem:[#allocation2 + $0x54] sm:$0xe]
        %v2398 = vld [vmem:[#allocation2 + $0x60] sm:$0xe]
        %v2399 = vld [vmem:[#allocation2 + $0x6c] sm:$0xe]
        %v2400 = vld [vmem:[#allocation2 + $0x78] sm:$0xe]
        %v2401 = vld [vmem:[#allocation2 + $0x84] sm:$0xe]
        %v2402 = vld [vmem:[#allocation2 + $0x90] sm:$0xe]
        %v2403 = vld [vmem:[#allocation2 + $0x9c] sm:$0xe]
        %v2404 = vld [vmem:[#allocation2 + $0xa8] sm:$0xe]
        %v2405 = vld [vmem:[#allocation2 + $0xb4] sm:$0xe]
        %vm2438 = vcmask 1042432
        %vm2439 = vcmask 1046532
        %vm2440 = vmor %vm2438, %vm2439
        %v2441 = vrot.slane %v2390, 5
        %v2442 = vrot.slane %v2441, 4
        %v2443 = vrot.slane %v1345, 5
        %v2444 = vsel %vm2440, %v2442, %v2443
        %v2445 = vrot.slane %v2443, 4
        %v2446 = vrot.slane %v1392, 5
        %v2447 = vsel %vm2440, %v2445, %v2446
        %v2448 = vrot.slane %v2391, 5
        %v2449 = vrot.slane %v2448, 4
        %v2450 = vrot.slane %v1347, 5
        %v2451 = vsel %vm2440, %v2449, %v2450
        %v2452 = vrot.slane %v2450, 4
        %v2453 = vrot.slane %v1393, 5
        %v2454 = vsel %vm2440, %v2452, %v2453
        %v2455 = vrot.slane %v2392, 5
        %v2456 = vrot.slane %v2455, 4
        %v2457 = vrot.slane %v1349, 5
        %v2458 = vsel %vm2440, %v2456, %v2457
        %v2459 = vrot.slane %v2457, 4
        %v2460 = vrot.slane %v1394, 5
        %v2461 = vsel %vm2440, %v2459, %v2460
        %v2462 = vrot.slane %v2393, 5
        %v2463 = vrot.slane %v2462, 4
        %v2464 = vrot.slane %v1351, 5
        %v2465 = vsel %vm2440, %v2463, %v2464
        %v2466 = vrot.slane %v2464, 4
        %v2467 = vrot.slane %v1395, 5
        %v2468 = vsel %vm2440, %v2466, %v2467
        %v2469 = vrot.slane %v2394, 5
        %v2470 = vrot.slane %v2469, 4
        %v2471 = vrot.slane %v1353, 5
        %v2472 = vsel %vm2440, %v2470, %v2471
        %v2473 = vrot.slane %v2471, 4
        %v2474 = vrot.slane %v1396, 5
        %v2475 = vsel %vm2440, %v2473, %v2474
        %v2476 = vrot.slane %v2395, 5
        %v2477 = vrot.slane %v2476, 4
        %v2478 = vrot.slane %v1355, 5
        %v2479 = vsel %vm2440, %v2477, %v2478
        %v2480 = vrot.slane %v2478, 4
        %v2481 = vrot.slane %v1397, 5
        %v2482 = vsel %vm2440, %v2480, %v2481
        %v2483 = vrot.slane %v2396, 5
        %v2484 = vrot.slane %v2483, 4
        %v2485 = vrot.slane %v1357, 5
        %v2486 = vsel %vm2440, %v2484, %v2485
        %v2487 = vrot.slane %v2485, 4
        %v2488 = vrot.slane %v1398, 5
        %v2489 = vsel %vm2440, %v2487, %v2488
        %v2490 = vrot.slane %v2397, 5
        %v2491 = vrot.slane %v2490, 4
        %v2492 = vrot.slane %v1359, 5
        %v2493 = vsel %vm2440, %v2491, %v2492
        %v2494 = vrot.slane %v2492, 4
        %v2495 = vrot.slane %v1399, 5
        %v2496 = vsel %vm2440, %v2494, %v2495
        %v2497 = vrot.slane %v2398, 5
        %v2498 = vrot.slane %v2497, 4
        %v2499 = vrot.slane %v1361, 5
        %v2500 = vsel %vm2440, %v2498, %v2499
        %v2501 = vrot.slane %v2499, 4
        %v2502 = vrot.slane %v1400, 5
        %v2503 = vsel %vm2440, %v2501, %v2502
        %v2504 = vrot.slane %v2399, 5
        %v2505 = vrot.slane %v2504, 4
        %v2506 = vrot.slane %v1363, 5
        %v2507 = vsel %vm2440, %v2505, %v2506
        %v2508 = vrot.slane %v2506, 4
        %v2509 = vrot.slane %v1401, 5
        %v2510 = vsel %vm2440, %v2508, %v2509
        %v2511 = vrot.slane %v2400, 5
        %v2512 = vrot.slane %v2511, 4
        %v2513 = vrot.slane %v1365, 5
        %v2514 = vsel %vm2440, %v2512, %v2513
        %v2515 = vrot.slane %v2513, 4
        %v2516 = vrot.slane %v1402, 5
        %v2517 = vsel %vm2440, %v2515, %v2516
        %v2518 = vrot.slane %v2401, 5
        %v2519 = vrot.slane %v2518, 4
        %v2520 = vrot.slane %v1367, 5
        %v2521 = vsel %vm2440, %v2519, %v2520
        %v2522 = vrot.slane %v2520, 4
        %v2523 = vrot.slane %v1403, 5
        %v2524 = vsel %vm2440, %v2522, %v2523
        %v2525 = vrot.slane %v2402, 5
        %v2526 = vrot.slane %v2525, 4
        %v2527 = vrot.slane %v1369, 5
        %v2528 = vsel %vm2440, %v2526, %v2527
        %v2529 = vrot.slane %v2527, 4
        %v2530 = vrot.slane %v1404, 5
        %v2531 = vsel %vm2440, %v2529, %v2530
        %v2532 = vrot.slane %v2403, 5
        %v2533 = vrot.slane %v2532, 4
        %v2534 = vrot.slane %v1371, 5
        %v2535 = vsel %vm2440, %v2533, %v2534
        %v2536 = vrot.slane %v2534, 4
        %v2537 = vrot.slane %v1405, 5
        %v2538 = vsel %vm2440, %v2536, %v2537
        %v2539 = vrot.slane %v2404, 5
        %v2540 = vrot.slane %v2539, 4
        %v2541 = vrot.slane %v1373, 5
        %v2542 = vsel %vm2440, %v2540, %v2541
        %v2543 = vrot.slane %v2541, 4
        %v2544 = vrot.slane %v1406, 5
        %v2545 = vsel %vm2440, %v2543, %v2544
        %v2546 = vrot.slane %v2405, 5
        %v2547 = vrot.slane %v2546, 4
        %v2548 = vrot.slane %v1375, 5
        %v2549 = vsel %vm2440, %v2547, %v2548
        %v2550 = vrot.slane %v2548, 4
        %v2551 = vrot.slane %v1407, 5
        %v2552 = vsel %vm2440, %v2550, %v2551
        %s2553 = scalar_lea.vmem [#allocation6], 128
        %v2554 = vld [vmem:[%s2553] sm:$0xf]
        %v2555 = vld [vmem:[%s2553 + $0x4] sm:$0xf]
        %v2556 = vld [vmem:[%s2553 + $0x8] sm:$0xf]
        %v2557 = vld [vmem:[%s2553 + $0xc] sm:$0xf]
        %v2558 = vld [vmem:[%s2553 + $0x10] sm:$0xf]
        %v2559 = vld [vmem:[%s2553 + $0x14] sm:$0xf]
        %v2560 = vld [vmem:[%s2553 + $0x18] sm:$0xf]
        %v2561 = vld [vmem:[%s2553 + $0x1c] sm:$0xf]
        %v2562 = vld [vmem:[%s2553 + $0x20] sm:$0xf]
        %v2563 = vld [vmem:[%s2553 + $0x24] sm:$0xf]
        %v2564 = vld [vmem:[%s2553 + $0x28] sm:$0xf]
        %v2565 = vld [vmem:[%s2553 + $0x2c] sm:$0xf]
        %v2566 = vld [vmem:[%s2553 + $0x30] sm:$0xf]
        %v2567 = vld [vmem:[%s2553 + $0x34] sm:$0xf]
        %v2568 = vld [vmem:[%s2553 + $0x38] sm:$0xf]
        %v2569 = vld [vmem:[%s2553 + $0x3c] sm:$0xf]
        %v2570 = vunpack.c.l.b16 %v2444
        %v2571 = vunpack.c.l.b16 %v2447
        %v2572 = vunpack.c.l.b16 %v2451
        %v2573 = vunpack.c.l.b16 %v2454
        %v2574 = vunpack.c.l.b16 %v2458
        %v2575 = vunpack.c.l.b16 %v2461
        %v2576 = vunpack.c.l.b16 %v2465
        %v2577 = vunpack.c.l.b16 %v2468
        %v2578 = vunpack.c.l.b16 %v2472
        %v2579 = vunpack.c.l.b16 %v2475
        %v2580 = vunpack.c.l.b16 %v2479
        %v2581 = vunpack.c.l.b16 %v2482
        %v2582 = vunpack.c.l.b16 %v2486
        %v2583 = vunpack.c.l.b16 %v2489
        %v2584 = vunpack.c.l.b16 %v2493
        %v2585 = vunpack.c.l.b16 %v2496
        %v2586 = vunpack.c.l.b16 %v2500
        %v2587 = vunpack.c.l.b16 %v2503
        %v2588 = vunpack.c.l.b16 %v2507
        %v2589 = vunpack.c.l.b16 %v2510
        %v2590 = vunpack.c.l.b16 %v2514
        %v2591 = vunpack.c.l.b16 %v2517
        %v2592 = vunpack.c.l.b16 %v2521
        %v2593 = vunpack.c.l.b16 %v2524
        %v2594 = vunpack.c.l.b16 %v2528
        %v2595 = vunpack.c.l.b16 %v2531
        %v2596 = vunpack.c.l.b16 %v2535
        %v2597 = vunpack.c.l.b16 %v2538
        %v2598 = vunpack.c.l.b16 %v2542
        %v2599 = vunpack.c.l.b16 %v2545
        %v2600 = vunpack.c.l.b16 %v2549
        %v2601 = vunpack.c.l.b16 %v2552
        %v2602 = vpack.c.b16 %v2571, %v2570
        %v2603 = vpack.c.b16 %v2573, %v2572
        %v2604 = vpack.c.b16 %v2575, %v2574
        %v2605 = vpack.c.b16 %v2577, %v2576
        %v2606 = vpack.c.b16 %v2579, %v2578
        %v2607 = vpack.c.b16 %v2581, %v2580
        %v2608 = vpack.c.b16 %v2583, %v2582
        %v2609 = vpack.c.b16 %v2585, %v2584
        %v2610 = vpack.c.b16 %v2587, %v2586
        %v2611 = vpack.c.b16 %v2589, %v2588
        %v2612 = vpack.c.b16 %v2591, %v2590
        %v2613 = vpack.c.b16 %v2593, %v2592
        %v2614 = vpack.c.b16 %v2595, %v2594
        %v2615 = vpack.c.b16 %v2597, %v2596
        %v2616 = vpack.c.b16 %v2599, %v2598
        %v2617 = vpack.c.b16 %v2601, %v2600
        %v2650 = vunpack.c.l.b16 %v2554
        %v2651 = vunpack.c.l.b16 %v2555
        %v2652 = vunpack.c.l.b16 %v2556
        %v2653 = vunpack.c.l.b16 %v2557
        %v2654 = vunpack.c.l.b16 %v2558
        %v2655 = vunpack.c.l.b16 %v2559
        %v2656 = vunpack.c.l.b16 %v2560
        %v2657 = vunpack.c.l.b16 %v2561
        %v2658 = vunpack.c.l.b16 %v2562
        %v2659 = vunpack.c.l.b16 %v2563
        %v2660 = vunpack.c.l.b16 %v2564
        %v2661 = vunpack.c.l.b16 %v2565
        %v2662 = vunpack.c.l.b16 %v2566
        %v2663 = vunpack.c.l.b16 %v2567
        %v2664 = vunpack.c.l.b16 %v2568
        %v2665 = vunpack.c.l.b16 %v2569
        %v2666 = vpack.c.b16 %v2651, %v2650
        %v2667 = vpack.c.b16 %v2653, %v2652
        %v2668 = vpack.c.b16 %v2655, %v2654
        %v2669 = vpack.c.b16 %v2657, %v2656
        %v2670 = vpack.c.b16 %v2659, %v2658
        %v2671 = vpack.c.b16 %v2661, %v2660
        %v2672 = vpack.c.b16 %v2663, %v2662
        %v2673 = vpack.c.b16 %v2665, %v2664
        %2682 = vmatprep.subr.bf16.mxu0 0
        %2683 = vmatpush1.bf16.msra.mxu0 %v2673
        %2684 = vmatprep.subr.bf16.mxu0 0
        %2685 = vmatpush1.bf16.msra.mxu0 %v2672
        %2686 = vmatprep.subr.bf16.mxu0 0
        %2687 = vmatpush1.bf16.msra.mxu0 %v2671
        %2688 = vmatprep.subr.bf16.mxu0 0
        %2689 = vmatpush1.bf16.msra.mxu0 %v2670
        %2690 = vmatprep.subr.bf16.mxu0 0
        %2691 = vmatpush1.bf16.msra.mxu0 %v2669
        %2692 = vmatprep.subr.bf16.mxu0 0
        %2693 = vmatpush1.bf16.msra.mxu0 %v2668
        %2694 = vmatprep.subr.bf16.mxu0 0
        %2695 = vmatpush1.bf16.msra.mxu0 %v2667
        %2696 = vmatprep.subr.bf16.mxu0 0
        %2697 = vmatpush1.bf16.msra.mxu0 %v2666
        %2698 = vmatprep.subr.bf16.mxu0 0
        %2699 = vmatpush2.bf16.msra.mxu0 0
        %2700 = vmatprep.subr.bf16.mxu0 0
        %2701 = vmatpush2.bf16.msra.mxu0 0
        %2702 = vmatprep.subr.bf16.mxu0 0
        %2703 = vmatpush2.bf16.msra.mxu0 0
        %2704 = vmatprep.subr.bf16.mxu0 0
        %2705 = vmatpush2.bf16.msra.mxu0 0
        %2706 = vmatprep.subr.bf16.mxu0 0
        %2707 = vmatpush2.bf16.msra.mxu0 0
        %2708 = vmatprep.subr.bf16.mxu0 0
        %2709 = vmatpush2.bf16.msra.mxu0 0
        %2710 = vmatprep.subr.bf16.mxu0 0
        %2711 = vmatpush2.bf16.msra.mxu0 0
        %2712 = vmatprep.subr.bf16.mxu0 0
        %2713 = vmatpush2.bf16.msra.mxu0 0
        %2714 = vmatprep.mubr.bf16.mxu0 0
        %2715 = vmatmul.mubr.bf16.gmra.mxu0 %v2602
        %v2716 = vpop.f32.mrf.mxu0
        %v2717 = vadd.f32 0.0, %v2716
        %v2718 = vpop.f32.mrf.mxu0
        %v2719 = vpop.f32.mrf.mxu0
        %v2720 = vadd.f32 0.0, %v2719
        %v2721 = vpop.f32.mrf.mxu0
        %2722 = vmatprep.mubr.bf16.mxu0 0
        %2723 = vmatmul.mubr.bf16.gmra.mxu0 %v2603
        %v2724 = vpop.f32.mrf.mxu0
        %v2725 = vadd.f32 0.0, %v2724
        %v2726 = vpop.f32.mrf.mxu0
        %v2727 = vpop.f32.mrf.mxu0
        %v2728 = vadd.f32 0.0, %v2727
        %v2729 = vpop.f32.mrf.mxu0
        %2730 = vmatprep.mubr.bf16.mxu0 0
        %2731 = vmatmul.mubr.bf16.gmra.mxu0 %v2604
        %v2732 = vpop.f32.mrf.mxu0
        %v2733 = vadd.f32 0.0, %v2732
        %v2734 = vpop.f32.mrf.mxu0
        %v2735 = vpop.f32.mrf.mxu0
        %v2736 = vadd.f32 0.0, %v2735
        %v2737 = vpop.f32.mrf.mxu0
        %2738 = vmatprep.mubr.bf16.mxu0 0
        %2739 = vmatmul.mubr.bf16.gmra.mxu0 %v2605
        %v2740 = vpop.f32.mrf.mxu0
        %v2741 = vadd.f32 0.0, %v2740
        %v2742 = vpop.f32.mrf.mxu0
        %v2743 = vpop.f32.mrf.mxu0
        %v2744 = vadd.f32 0.0, %v2743
        %v2745 = vpop.f32.mrf.mxu0
        %2746 = vmatprep.mubr.bf16.mxu0 0
        %2747 = vmatmul.mubr.bf16.gmra.mxu0 %v2606
        %v2748 = vpop.f32.mrf.mxu0
        %v2749 = vadd.f32 0.0, %v2748
        %v2750 = vpop.f32.mrf.mxu0
        %v2751 = vpop.f32.mrf.mxu0
        %v2752 = vadd.f32 0.0, %v2751
        %v2753 = vpop.f32.mrf.mxu0
        %2754 = vmatprep.mubr.bf16.mxu0 0
        %2755 = vmatmul.mubr.bf16.gmra.mxu0 %v2607
        %v2756 = vpop.f32.mrf.mxu0
        %v2757 = vadd.f32 0.0, %v2756
        %v2758 = vpop.f32.mrf.mxu0
        %v2759 = vpop.f32.mrf.mxu0
        %v2760 = vadd.f32 0.0, %v2759
        %v2761 = vpop.f32.mrf.mxu0
        %2762 = vmatprep.mubr.bf16.mxu0 0
        %2763 = vmatmul.mubr.bf16.gmra.mxu0 %v2608
        %v2764 = vpop.f32.mrf.mxu0
        %v2765 = vadd.f32 0.0, %v2764
        %v2766 = vpop.f32.mrf.mxu0
        %v2767 = vpop.f32.mrf.mxu0
        %v2768 = vadd.f32 0.0, %v2767
        %v2769 = vpop.f32.mrf.mxu0
        %2770 = vmatprep.mubr.bf16.mxu0 0
        %2771 = vmatmul.mubr.bf16.gmra.mxu0 %v2609
        %v2772 = vpop.f32.mrf.mxu0
        %v2773 = vadd.f32 0.0, %v2772
        %v2774 = vpop.f32.mrf.mxu0
        %v2775 = vpop.f32.mrf.mxu0
        %v2776 = vadd.f32 0.0, %v2775
        %v2777 = vpop.f32.mrf.mxu0
        %2778 = vmatprep.mubr.bf16.mxu0 0
        %2779 = vmatmul.mubr.bf16.gmra.mxu0 %v2610
        %v2780 = vpop.f32.mrf.mxu0
        %v2781 = vadd.f32 0.0, %v2780
        %v2782 = vpop.f32.mrf.mxu0
        %v2783 = vpop.f32.mrf.mxu0
        %v2784 = vadd.f32 0.0, %v2783
        %v2785 = vpop.f32.mrf.mxu0
        %2786 = vmatprep.mubr.bf16.mxu0 0
        %2787 = vmatmul.mubr.bf16.gmra.mxu0 %v2611
        %v2788 = vpop.f32.mrf.mxu0
        %v2789 = vadd.f32 0.0, %v2788
        %v2790 = vpop.f32.mrf.mxu0
        %v2791 = vpop.f32.mrf.mxu0
        %v2792 = vadd.f32 0.0, %v2791
        %v2793 = vpop.f32.mrf.mxu0
        %2794 = vmatprep.mubr.bf16.mxu0 0
        %2795 = vmatmul.mubr.bf16.gmra.mxu0 %v2612
        %v2796 = vpop.f32.mrf.mxu0
        %v2797 = vadd.f32 0.0, %v2796
        %v2798 = vpop.f32.mrf.mxu0
        %v2799 = vpop.f32.mrf.mxu0
        %v2800 = vadd.f32 0.0, %v2799
        %v2801 = vpop.f32.mrf.mxu0
        %2802 = vmatprep.mubr.bf16.mxu0 0
        %2803 = vmatmul.mubr.bf16.gmra.mxu0 %v2613
        %v2804 = vpop.f32.mrf.mxu0
        %v2805 = vadd.f32 0.0, %v2804
        %v2806 = vpop.f32.mrf.mxu0
        %v2807 = vpop.f32.mrf.mxu0
        %v2808 = vadd.f32 0.0, %v2807
        %v2809 = vpop.f32.mrf.mxu0
        %2810 = vmatprep.mubr.bf16.mxu0 0
        %2811 = vmatmul.mubr.bf16.gmra.mxu0 %v2614
        %v2812 = vpop.f32.mrf.mxu0
        %v2813 = vadd.f32 0.0, %v2812
        %v2814 = vpop.f32.mrf.mxu0
        %v2815 = vpop.f32.mrf.mxu0
        %v2816 = vadd.f32 0.0, %v2815
        %v2817 = vpop.f32.mrf.mxu0
        %2818 = vmatprep.mubr.bf16.mxu0 0
        %2819 = vmatmul.mubr.bf16.gmra.mxu0 %v2615
        %v2820 = vpop.f32.mrf.mxu0
        %v2821 = vadd.f32 0.0, %v2820
        %v2822 = vpop.f32.mrf.mxu0
        %v2823 = vpop.f32.mrf.mxu0
        %v2824 = vadd.f32 0.0, %v2823
        %v2825 = vpop.f32.mrf.mxu0
        %2826 = vmatprep.mubr.bf16.mxu0 0
        %2827 = vmatmul.mubr.bf16.gmra.mxu0 %v2616
        %v2828 = vpop.f32.mrf.mxu0
        %v2829 = vadd.f32 0.0, %v2828
        %v2830 = vpop.f32.mrf.mxu0
        %v2831 = vpop.f32.mrf.mxu0
        %v2832 = vadd.f32 0.0, %v2831
        %v2833 = vpop.f32.mrf.mxu0
        %2834 = vmatprep.mubr.bf16.mxu0 0
        %2835 = vmatmul.mubr.bf16.gmra.mxu0 %v2617
        %v2836 = vpop.f32.mrf.mxu0
        %v2837 = vadd.f32 0.0, %v2836
        %v2838 = vpop.f32.mrf.mxu0
        %v2839 = vpop.f32.mrf.mxu0
        %v2840 = vadd.f32 0.0, %v2839
        %v2841 = vpop.f32.mrf.mxu0
        %2842 = vdwg.mxu0
        %v2843 = vadd.f32 %v2264, %v2717
        %v2844 = vadd.f32 %v2267, %v2720
        %v2845 = vadd.f32 %v2272, %v2725
        %v2846 = vadd.f32 %v2275, %v2728
        %v2847 = vadd.f32 %v2280, %v2733
        %v2848 = vadd.f32 %v2283, %v2736
        %v2849 = vadd.f32 %v2288, %v2741
        %v2850 = vadd.f32 %v2291, %v2744
        %v2851 = vadd.f32 %v2296, %v2749
        %v2852 = vadd.f32 %v2299, %v2752
        %v2853 = vadd.f32 %v2304, %v2757
        %v2854 = vadd.f32 %v2307, %v2760
        %v2855 = vadd.f32 %v2312, %v2765
        %v2856 = vadd.f32 %v2315, %v2768
        %v2857 = vadd.f32 %v2320, %v2773
        %v2858 = vadd.f32 %v2323, %v2776
        %v2859 = vadd.f32 %v2328, %v2781
        %v2860 = vadd.f32 %v2331, %v2784
        %v2861 = vadd.f32 %v2336, %v2789
        %v2862 = vadd.f32 %v2339, %v2792
        %v2863 = vadd.f32 %v2344, %v2797
        %v2864 = vadd.f32 %v2347, %v2800
        %v2865 = vadd.f32 %v2352, %v2805
        %v2866 = vadd.f32 %v2355, %v2808
        %v2867 = vadd.f32 %v2360, %v2813
        %v2868 = vadd.f32 %v2363, %v2816
        %v2869 = vadd.f32 %v2368, %v2821
        %v2870 = vadd.f32 %v2371, %v2824
        %v2871 = vadd.f32 %v2376, %v2829
        %v2872 = vadd.f32 %v2379, %v2832
        %v2873 = vadd.f32 %v2384, %v2837
        %v2874 = vadd.f32 %v2387, %v2840
        %v2875 = vld [vmem:[%s1229] sm:$0xf]
        %v2876 = vld [vmem:[%s1229 + $0x4] sm:$0xf]
        %v2877 = vld [vmem:[%s1229 + $0xc] sm:$0xf]
        %v2878 = vld [vmem:[%s1229 + $0x10] sm:$0xf]
        %v2879 = vld [vmem:[%s1229 + $0x18] sm:$0xf]
        %v2880 = vld [vmem:[%s1229 + $0x1c] sm:$0xf]
        %v2881 = vld [vmem:[%s1229 + $0x24] sm:$0xf]
        %v2882 = vld [vmem:[%s1229 + $0x28] sm:$0xf]
        %v2883 = vld [vmem:[%s1229 + $0x30] sm:$0xf]
        %v2884 = vld [vmem:[%s1229 + $0x34] sm:$0xf]
        %v2885 = vld [vmem:[%s1229 + $0x3c] sm:$0xf]
        %v2886 = vld [vmem:[%s1229 + $0x40] sm:$0xf]
        %v2887 = vld [vmem:[%s1229 + $0x48] sm:$0xf]
        %v2888 = vld [vmem:[%s1229 + $0x4c] sm:$0xf]
        %v2889 = vld [vmem:[%s1229 + $0x54] sm:$0xf]
        %v2890 = vld [vmem:[%s1229 + $0x58] sm:$0xf]
        %v2891 = vld [vmem:[%s1229 + $0x60] sm:$0xf]
        %v2892 = vld [vmem:[%s1229 + $0x64] sm:$0xf]
        %v2893 = vld [vmem:[%s1229 + $0x6c] sm:$0xf]
        %v2894 = vld [vmem:[%s1229 + $0x70] sm:$0xf]
        %v2895 = vld [vmem:[%s1229 + $0x78] sm:$0xf]
        %v2896 = vld [vmem:[%s1229 + $0x7c] sm:$0xf]
        %v2897 = vld [vmem:[%s1229 + $0x84] sm:$0xf]
        %v2898 = vld [vmem:[%s1229 + $0x88] sm:$0xf]
        %v2899 = vld [vmem:[%s1229 + $0x90] sm:$0xf]
        %v2900 = vld [vmem:[%s1229 + $0x94] sm:$0xf]
        %v2901 = vld [vmem:[%s1229 + $0x9c] sm:$0xf]
        %v2902 = vld [vmem:[%s1229 + $0xa0] sm:$0xf]
        %v2903 = vld [vmem:[%s1229 + $0xa8] sm:$0xf]
        %v2904 = vld [vmem:[%s1229 + $0xac] sm:$0xf]
        %v2905 = vld [vmem:[%s1229 + $0xb4] sm:$0xf]
        %v2906 = vld [vmem:[%s1229 + $0xb8] sm:$0xf]
        %s2907 = scalar_lea.vmem [#allocation6], 192
        %v2908 = vld [vmem:[%s2907] sm:$0xf]
        %v2909 = vld [vmem:[%s2907 + $0x4] sm:$0xf]
        %v2910 = vld [vmem:[%s2907 + $0x8] sm:$0xf]
        %v2911 = vld [vmem:[%s2907 + $0xc] sm:$0xf]
        %v2912 = vld [vmem:[%s2907 + $0x10] sm:$0xf]
        %v2913 = vld [vmem:[%s2907 + $0x14] sm:$0xf]
        %v2914 = vld [vmem:[%s2907 + $0x18] sm:$0xf]
        %v2915 = vld [vmem:[%s2907 + $0x1c] sm:$0xf]
        %v2916 = vld [vmem:[%s2907 + $0x20] sm:$0xf]
        %v2917 = vld [vmem:[%s2907 + $0x24] sm:$0xf]
        %v2918 = vld [vmem:[%s2907 + $0x28] sm:$0xf]
        %v2919 = vld [vmem:[%s2907 + $0x2c] sm:$0xf]
        %v2920 = vld [vmem:[%s2907 + $0x30] sm:$0xf]
        %v2921 = vld [vmem:[%s2907 + $0x34] sm:$0xf]
        %v2922 = vld [vmem:[%s2907 + $0x38] sm:$0xf]
        %v2923 = vld [vmem:[%s2907 + $0x3c] sm:$0xf]
        %v2956 = vunpack.c.l.b16 %v2875
        %v2957 = vunpack.c.l.b16 %v2876
        %v2958 = vunpack.c.l.b16 %v2877
        %v2959 = vunpack.c.l.b16 %v2878
        %v2960 = vunpack.c.l.b16 %v2879
        %v2961 = vunpack.c.l.b16 %v2880
        %v2962 = vunpack.c.l.b16 %v2881
        %v2963 = vunpack.c.l.b16 %v2882
        %v2964 = vunpack.c.l.b16 %v2883
        %v2965 = vunpack.c.l.b16 %v2884
        %v2966 = vunpack.c.l.b16 %v2885
        %v2967 = vunpack.c.l.b16 %v2886
        %v2968 = vunpack.c.l.b16 %v2887
        %v2969 = vunpack.c.l.b16 %v2888
        %v2970 = vunpack.c.l.b16 %v2889
        %v2971 = vunpack.c.l.b16 %v2890
        %v2972 = vunpack.c.l.b16 %v2891
        %v2973 = vunpack.c.l.b16 %v2892
        %v2974 = vunpack.c.l.b16 %v2893
        %v2975 = vunpack.c.l.b16 %v2894
        %v2976 = vunpack.c.l.b16 %v2895
        %v2977 = vunpack.c.l.b16 %v2896
        %v2978 = vunpack.c.l.b16 %v2897
        %v2979 = vunpack.c.l.b16 %v2898
        %v2980 = vunpack.c.l.b16 %v2899
        %v2981 = vunpack.c.l.b16 %v2900
        %v2982 = vunpack.c.l.b16 %v2901
        %v2983 = vunpack.c.l.b16 %v2902
        %v2984 = vunpack.c.l.b16 %v2903
        %v2985 = vunpack.c.l.b16 %v2904
        %v2986 = vunpack.c.l.b16 %v2905
        %v2987 = vunpack.c.l.b16 %v2906
        %v2988 = vpack.c.b16 %v2957, %v2956
        %v2989 = vpack.c.b16 %v2959, %v2958
        %v2990 = vpack.c.b16 %v2961, %v2960
        %v2991 = vpack.c.b16 %v2963, %v2962
        %v2992 = vpack.c.b16 %v2965, %v2964
        %v2993 = vpack.c.b16 %v2967, %v2966
        %v2994 = vpack.c.b16 %v2969, %v2968
        %v2995 = vpack.c.b16 %v2971, %v2970
        %v2996 = vpack.c.b16 %v2973, %v2972
        %v2997 = vpack.c.b16 %v2975, %v2974
        %v2998 = vpack.c.b16 %v2977, %v2976
        %v2999 = vpack.c.b16 %v2979, %v2978
        %v3000 = vpack.c.b16 %v2981, %v2980
        %v3001 = vpack.c.b16 %v2983, %v2982
        %v3002 = vpack.c.b16 %v2985, %v2984
        %v3003 = vpack.c.b16 %v2987, %v2986
        %v3036 = vunpack.c.l.b16 %v2908
        %v3037 = vunpack.c.l.b16 %v2909
        %v3038 = vunpack.c.l.b16 %v2910
        %v3039 = vunpack.c.l.b16 %v2911
        %v3040 = vunpack.c.l.b16 %v2912
        %v3041 = vunpack.c.l.b16 %v2913
        %v3042 = vunpack.c.l.b16 %v2914
        %v3043 = vunpack.c.l.b16 %v2915
        %v3044 = vunpack.c.l.b16 %v2916
        %v3045 = vunpack.c.l.b16 %v2917
        %v3046 = vunpack.c.l.b16 %v2918
        %v3047 = vunpack.c.l.b16 %v2919
        %v3048 = vunpack.c.l.b16 %v2920
        %v3049 = vunpack.c.l.b16 %v2921
        %v3050 = vunpack.c.l.b16 %v2922
        %v3051 = vunpack.c.l.b16 %v2923
        %v3052 = vpack.c.b16 %v3037, %v3036
        %v3053 = vpack.c.b16 %v3039, %v3038
        %v3054 = vpack.c.b16 %v3041, %v3040
        %v3055 = vpack.c.b16 %v3043, %v3042
        %v3056 = vpack.c.b16 %v3045, %v3044
        %v3057 = vpack.c.b16 %v3047, %v3046
        %v3058 = vpack.c.b16 %v3049, %v3048
        %v3059 = vpack.c.b16 %v3051, %v3050
        %3068 = vmatprep.subr.bf16.mxu0 0
        %3069 = vmatpush1.bf16.msra.mxu0 %v3059
        %3070 = vmatprep.subr.bf16.mxu0 0
        %3071 = vmatpush1.bf16.msra.mxu0 %v3058
        %3072 = vmatprep.subr.bf16.mxu0 0
        %3073 = vmatpush1.bf16.msra.mxu0 %v3057
        %3074 = vmatprep.subr.bf16.mxu0 0
        %3075 = vmatpush1.bf16.msra.mxu0 %v3056
        %3076 = vmatprep.subr.bf16.mxu0 0
        %3077 = vmatpush1.bf16.msra.mxu0 %v3055
        %3078 = vmatprep.subr.bf16.mxu0 0
        %3079 = vmatpush1.bf16.msra.mxu0 %v3054
        %3080 = vmatprep.subr.bf16.mxu0 0
        %3081 = vmatpush1.bf16.msra.mxu0 %v3053
        %3082 = vmatprep.subr.bf16.mxu0 0
        %3083 = vmatpush1.bf16.msra.mxu0 %v3052
        %3084 = vmatprep.subr.bf16.mxu0 0
        %3085 = vmatpush2.bf16.msra.mxu0 0
        %3086 = vmatprep.subr.bf16.mxu0 0
        %3087 = vmatpush2.bf16.msra.mxu0 0
        %3088 = vmatprep.subr.bf16.mxu0 0
        %3089 = vmatpush2.bf16.msra.mxu0 0
        %3090 = vmatprep.subr.bf16.mxu0 0
        %3091 = vmatpush2.bf16.msra.mxu0 0
        %3092 = vmatprep.subr.bf16.mxu0 0
        %3093 = vmatpush2.bf16.msra.mxu0 0
        %3094 = vmatprep.subr.bf16.mxu0 0
        %3095 = vmatpush2.bf16.msra.mxu0 0
        %3096 = vmatprep.subr.bf16.mxu0 0
        %3097 = vmatpush2.bf16.msra.mxu0 0
        %3098 = vmatprep.subr.bf16.mxu0 0
        %3099 = vmatpush2.bf16.msra.mxu0 0
        %3100 = vmatprep.mubr.bf16.mxu0 0
        %3101 = vmatmul.mubr.bf16.gmra.mxu0 %v2988
        %v3102 = vpop.f32.mrf.mxu0
        %v3103 = vadd.f32 0.0, %v3102
        %v3104 = vpop.f32.mrf.mxu0
        %v3105 = vpop.f32.mrf.mxu0
        %v3106 = vadd.f32 0.0, %v3105
        %v3107 = vpop.f32.mrf.mxu0
        %3108 = vmatprep.mubr.bf16.mxu0 0
        %3109 = vmatmul.mubr.bf16.gmra.mxu0 %v2989
        %v3110 = vpop.f32.mrf.mxu0
        %v3111 = vadd.f32 0.0, %v3110
        %v3112 = vpop.f32.mrf.mxu0
        %v3113 = vpop.f32.mrf.mxu0
        %v3114 = vadd.f32 0.0, %v3113
        %v3115 = vpop.f32.mrf.mxu0
        %3116 = vmatprep.mubr.bf16.mxu0 0
        %3117 = vmatmul.mubr.bf16.gmra.mxu0 %v2990
        %v3118 = vpop.f32.mrf.mxu0
        %v3119 = vadd.f32 0.0, %v3118
        %v3120 = vpop.f32.mrf.mxu0
        %v3121 = vpop.f32.mrf.mxu0
        %v3122 = vadd.f32 0.0, %v3121
        %v3123 = vpop.f32.mrf.mxu0
        %3124 = vmatprep.mubr.bf16.mxu0 0
        %3125 = vmatmul.mubr.bf16.gmra.mxu0 %v2991
        %v3126 = vpop.f32.mrf.mxu0
        %v3127 = vadd.f32 0.0, %v3126
        %v3128 = vpop.f32.mrf.mxu0
        %v3129 = vpop.f32.mrf.mxu0
        %v3130 = vadd.f32 0.0, %v3129
        %v3131 = vpop.f32.mrf.mxu0
        %3132 = vmatprep.mubr.bf16.mxu0 0
        %3133 = vmatmul.mubr.bf16.gmra.mxu0 %v2992
        %v3134 = vpop.f32.mrf.mxu0
        %v3135 = vadd.f32 0.0, %v3134
        %v3136 = vpop.f32.mrf.mxu0
        %v3137 = vpop.f32.mrf.mxu0
        %v3138 = vadd.f32 0.0, %v3137
        %v3139 = vpop.f32.mrf.mxu0
        %3140 = vmatprep.mubr.bf16.mxu0 0
        %3141 = vmatmul.mubr.bf16.gmra.mxu0 %v2993
        %v3142 = vpop.f32.mrf.mxu0
        %v3143 = vadd.f32 0.0, %v3142
        %v3144 = vpop.f32.mrf.mxu0
        %v3145 = vpop.f32.mrf.mxu0
        %v3146 = vadd.f32 0.0, %v3145
        %v3147 = vpop.f32.mrf.mxu0
        %3148 = vmatprep.mubr.bf16.mxu0 0
        %3149 = vmatmul.mubr.bf16.gmra.mxu0 %v2994
        %v3150 = vpop.f32.mrf.mxu0
        %v3151 = vadd.f32 0.0, %v3150
        %v3152 = vpop.f32.mrf.mxu0
        %v3153 = vpop.f32.mrf.mxu0
        %v3154 = vadd.f32 0.0, %v3153
        %v3155 = vpop.f32.mrf.mxu0
        %3156 = vmatprep.mubr.bf16.mxu0 0
        %3157 = vmatmul.mubr.bf16.gmra.mxu0 %v2995
        %v3158 = vpop.f32.mrf.mxu0
        %v3159 = vadd.f32 0.0, %v3158
        %v3160 = vpop.f32.mrf.mxu0
        %v3161 = vpop.f32.mrf.mxu0
        %v3162 = vadd.f32 0.0, %v3161
        %v3163 = vpop.f32.mrf.mxu0
        %3164 = vmatprep.mubr.bf16.mxu0 0
        %3165 = vmatmul.mubr.bf16.gmra.mxu0 %v2996
        %v3166 = vpop.f32.mrf.mxu0
        %v3167 = vadd.f32 0.0, %v3166
        %v3168 = vpop.f32.mrf.mxu0
        %v3169 = vpop.f32.mrf.mxu0
        %v3170 = vadd.f32 0.0, %v3169
        %v3171 = vpop.f32.mrf.mxu0
        %3172 = vmatprep.mubr.bf16.mxu0 0
        %3173 = vmatmul.mubr.bf16.gmra.mxu0 %v2997
        %v3174 = vpop.f32.mrf.mxu0
        %v3175 = vadd.f32 0.0, %v3174
        %v3176 = vpop.f32.mrf.mxu0
        %v3177 = vpop.f32.mrf.mxu0
        %v3178 = vadd.f32 0.0, %v3177
        %v3179 = vpop.f32.mrf.mxu0
        %3180 = vmatprep.mubr.bf16.mxu0 0
        %3181 = vmatmul.mubr.bf16.gmra.mxu0 %v2998
        %v3182 = vpop.f32.mrf.mxu0
        %v3183 = vadd.f32 0.0, %v3182
        %v3184 = vpop.f32.mrf.mxu0
        %v3185 = vpop.f32.mrf.mxu0
        %v3186 = vadd.f32 0.0, %v3185
        %v3187 = vpop.f32.mrf.mxu0
        %3188 = vmatprep.mubr.bf16.mxu0 0
        %3189 = vmatmul.mubr.bf16.gmra.mxu0 %v2999
        %v3190 = vpop.f32.mrf.mxu0
        %v3191 = vadd.f32 0.0, %v3190
        %v3192 = vpop.f32.mrf.mxu0
        %v3193 = vpop.f32.mrf.mxu0
        %v3194 = vadd.f32 0.0, %v3193
        %v3195 = vpop.f32.mrf.mxu0
        %3196 = vmatprep.mubr.bf16.mxu0 0
        %3197 = vmatmul.mubr.bf16.gmra.mxu0 %v3000
        %v3198 = vpop.f32.mrf.mxu0
        %v3199 = vadd.f32 0.0, %v3198
        %v3200 = vpop.f32.mrf.mxu0
        %v3201 = vpop.f32.mrf.mxu0
        %v3202 = vadd.f32 0.0, %v3201
        %v3203 = vpop.f32.mrf.mxu0
        %3204 = vmatprep.mubr.bf16.mxu0 0
        %3205 = vmatmul.mubr.bf16.gmra.mxu0 %v3001
        %v3206 = vpop.f32.mrf.mxu0
        %v3207 = vadd.f32 0.0, %v3206
        %v3208 = vpop.f32.mrf.mxu0
        %v3209 = vpop.f32.mrf.mxu0
        %v3210 = vadd.f32 0.0, %v3209
        %v3211 = vpop.f32.mrf.mxu0
        %3212 = vmatprep.mubr.bf16.mxu0 0
        %3213 = vmatmul.mubr.bf16.gmra.mxu0 %v3002
        %v3214 = vpop.f32.mrf.mxu0
        %v3215 = vadd.f32 0.0, %v3214
        %v3216 = vpop.f32.mrf.mxu0
        %v3217 = vpop.f32.mrf.mxu0
        %v3218 = vadd.f32 0.0, %v3217
        %v3219 = vpop.f32.mrf.mxu0
        %3220 = vmatprep.mubr.bf16.mxu0 0
        %3221 = vmatmul.mubr.bf16.gmra.mxu0 %v3003
        %v3222 = vpop.f32.mrf.mxu0
        %v3223 = vadd.f32 0.0, %v3222
        %v3224 = vpop.f32.mrf.mxu0
        %v3225 = vpop.f32.mrf.mxu0
        %v3226 = vadd.f32 0.0, %v3225
        %v3227 = vpop.f32.mrf.mxu0
        %3228 = vdwg.mxu0
        %v3229 = vadd.f32 %v2843, %v3103
        %v3230 = vadd.f32 %v2844, %v3106
        %v3231 = vadd.f32 %v2845, %v3111
        %v3232 = vadd.f32 %v2846, %v3114
        %v3233 = vadd.f32 %v2847, %v3119
        %v3234 = vadd.f32 %v2848, %v3122
        %v3235 = vadd.f32 %v2849, %v3127
        %v3236 = vadd.f32 %v2850, %v3130
        %v3237 = vadd.f32 %v2851, %v3135
        %v3238 = vadd.f32 %v2852, %v3138
        %v3239 = vadd.f32 %v2853, %v3143
        %v3240 = vadd.f32 %v2854, %v3146
        %v3241 = vadd.f32 %v2855, %v3151
        %v3242 = vadd.f32 %v2856, %v3154
        %v3243 = vadd.f32 %v2857, %v3159
        %v3244 = vadd.f32 %v2858, %v3162
        %v3245 = vadd.f32 %v2859, %v3167
        %v3246 = vadd.f32 %v2860, %v3170
        %v3247 = vadd.f32 %v2861, %v3175
        %v3248 = vadd.f32 %v2862, %v3178
        %v3249 = vadd.f32 %v2863, %v3183
        %v3250 = vadd.f32 %v2864, %v3186
        %v3251 = vadd.f32 %v2865, %v3191
        %v3252 = vadd.f32 %v2866, %v3194
        %v3253 = vadd.f32 %v2867, %v3199
        %v3254 = vadd.f32 %v2868, %v3202
        %v3255 = vadd.f32 %v2869, %v3207
        %v3256 = vadd.f32 %v2870, %v3210
        %v3257 = vadd.f32 %v2871, %v3215
        %v3258 = vadd.f32 %v2872, %v3218
        %v3259 = vadd.f32 %v2873, %v3223
        %v3260 = vadd.f32 %v2874, %v3226
        %v3261 = vld [vmem:[%s1229] sm:$0xf]
        %v3262 = vld [vmem:[%s1229 + $0x4] sm:$0xf]
        %v3263 = vld [vmem:[%s1229 + $0x8] sm:$0x1]
        %v3264 = vld [vmem:[%s1229 + $0xc] sm:$0xf]
        %v3265 = vld [vmem:[%s1229 + $0x10] sm:$0xf]
        %v3266 = vld [vmem:[%s1229 + $0x14] sm:$0x1]
        %v3267 = vld [vmem:[%s1229 + $0x18] sm:$0xf]
        %v3268 = vld [vmem:[%s1229 + $0x1c] sm:$0xf]
        %v3269 = vld [vmem:[%s1229 + $0x20] sm:$0x1]
        %v3270 = vld [vmem:[%s1229 + $0x24] sm:$0xf]
        %v3271 = vld [vmem:[%s1229 + $0x28] sm:$0xf]
        %v3272 = vld [vmem:[%s1229 + $0x2c] sm:$0x1]
        %v3273 = vld [vmem:[%s1229 + $0x30] sm:$0xf]
        %v3274 = vld [vmem:[%s1229 + $0x34] sm:$0xf]
        %v3275 = vld [vmem:[%s1229 + $0x38] sm:$0x1]
        %v3276 = vld [vmem:[%s1229 + $0x3c] sm:$0xf]
        %v3277 = vld [vmem:[%s1229 + $0x40] sm:$0xf]
        %v3278 = vld [vmem:[%s1229 + $0x44] sm:$0x1]
        %v3279 = vld [vmem:[%s1229 + $0x48] sm:$0xf]
        %v3280 = vld [vmem:[%s1229 + $0x4c] sm:$0xf]
        %v3281 = vld [vmem:[%s1229 + $0x50] sm:$0x1]
        %v3282 = vld [vmem:[%s1229 + $0x54] sm:$0xf]
        %v3283 = vld [vmem:[%s1229 + $0x58] sm:$0xf]
        %v3284 = vld [vmem:[%s1229 + $0x5c] sm:$0x1]
        %v3285 = vld [vmem:[%s1229 + $0x60] sm:$0xf]
        %v3286 = vld [vmem:[%s1229 + $0x64] sm:$0xf]
        %v3287 = vld [vmem:[%s1229 + $0x68] sm:$0x1]
        %v3288 = vld [vmem:[%s1229 + $0x6c] sm:$0xf]
        %v3289 = vld [vmem:[%s1229 + $0x70] sm:$0xf]
        %v3290 = vld [vmem:[%s1229 + $0x74] sm:$0x1]
        %v3291 = vld [vmem:[%s1229 + $0x78] sm:$0xf]
        %v3292 = vld [vmem:[%s1229 + $0x7c] sm:$0xf]
        %v3293 = vld [vmem:[%s1229 + $0x80] sm:$0x1]
        %v3294 = vld [vmem:[%s1229 + $0x84] sm:$0xf]
        %v3295 = vld [vmem:[%s1229 + $0x88] sm:$0xf]
        %v3296 = vld [vmem:[%s1229 + $0x8c] sm:$0x1]
        %v3297 = vld [vmem:[%s1229 + $0x90] sm:$0xf]
        %v3298 = vld [vmem:[%s1229 + $0x94] sm:$0xf]
        %v3299 = vld [vmem:[%s1229 + $0x98] sm:$0x1]
        %v3300 = vld [vmem:[%s1229 + $0x9c] sm:$0xf]
        %v3301 = vld [vmem:[%s1229 + $0xa0] sm:$0xf]
        %v3302 = vld [vmem:[%s1229 + $0xa4] sm:$0x1]
        %v3303 = vld [vmem:[%s1229 + $0xa8] sm:$0xf]
        %v3304 = vld [vmem:[%s1229 + $0xac] sm:$0xf]
        %v3305 = vld [vmem:[%s1229 + $0xb0] sm:$0x1]
        %v3306 = vld [vmem:[%s1229 + $0xb4] sm:$0xf]
        %v3307 = vld [vmem:[%s1229 + $0xb8] sm:$0xf]
        %v3308 = vld [vmem:[%s1229 + $0xbc] sm:$0x1]
        %v3310 = vshrl.u32 %v3261, 16
        %v3312 = vrot.slane %v3310, 4
        %v3313 = vshll.u32 %v3261, 16
        %v3315 = vrot.slane %v3313, 5
        %v3316 = vor.u32 %v3312, %v3315
        %v3317 = vrot.slane %v3316, 4
        %v3319 = vshll.u32 %v3262, 16
        %v3321 = vrot.slane %v3319, 5
        %v3322 = vsel %vm1410, %v3317, %v3321
        %v3323 = vshrl.u32 %v3262, 16
        %v3325 = vrot.slane %v3323, 4
        %v3326 = vor.u32 %v3325, %v3321
        %v3327 = vrot.slane %v3326, 4
        %v3329 = vshll.u32 %v3263, 16
        %v3331 = vrot.slane %v3329, 5
        %v3332 = vsel %vm1410, %v3327, %v3331
        %v3334 = vshrl.u32 %v3264, 16
        %v3336 = vrot.slane %v3334, 4
        %v3337 = vshll.u32 %v3264, 16
        %v3339 = vrot.slane %v3337, 5
        %v3340 = vor.u32 %v3336, %v3339
        %v3341 = vrot.slane %v3340, 4
        %v3343 = vshll.u32 %v3265, 16
        %v3345 = vrot.slane %v3343, 5
        %v3346 = vsel %vm1410, %v3341, %v3345
        %v3347 = vshrl.u32 %v3265, 16
        %v3349 = vrot.slane %v3347, 4
        %v3350 = vor.u32 %v3349, %v3345
        %v3351 = vrot.slane %v3350, 4
        %v3353 = vshll.u32 %v3266, 16
        %v3355 = vrot.slane %v3353, 5
        %v3356 = vsel %vm1410, %v3351, %v3355
        %v3358 = vshrl.u32 %v3267, 16
        %v3360 = vrot.slane %v3358, 4
        %v3361 = vshll.u32 %v3267, 16
        %v3363 = vrot.slane %v3361, 5
        %v3364 = vor.u32 %v3360, %v3363
        %v3365 = vrot.slane %v3364, 4
        %v3367 = vshll.u32 %v3268, 16
        %v3369 = vrot.slane %v3367, 5
        %v3370 = vsel %vm1410, %v3365, %v3369
        %v3371 = vshrl.u32 %v3268, 16
        %v3373 = vrot.slane %v3371, 4
        %v3374 = vor.u32 %v3373, %v3369
        %v3375 = vrot.slane %v3374, 4
        %v3377 = vshll.u32 %v3269, 16
        %v3379 = vrot.slane %v3377, 5
        %v3380 = vsel %vm1410, %v3375, %v3379
        %v3382 = vshrl.u32 %v3270, 16
        %v3384 = vrot.slane %v3382, 4
        %v3385 = vshll.u32 %v3270, 16
        %v3387 = vrot.slane %v3385, 5
        %v3388 = vor.u32 %v3384, %v3387
        %v3389 = vrot.slane %v3388, 4
        %v3391 = vshll.u32 %v3271, 16
        %v3393 = vrot.slane %v3391, 5
        %v3394 = vsel %vm1410, %v3389, %v3393
        %v3395 = vshrl.u32 %v3271, 16
        %v3397 = vrot.slane %v3395, 4
        %v3398 = vor.u32 %v3397, %v3393
        %v3399 = vrot.slane %v3398, 4
        %v3401 = vshll.u32 %v3272, 16
        %v3403 = vrot.slane %v3401, 5
        %v3404 = vsel %vm1410, %v3399, %v3403
        %v3406 = vshrl.u32 %v3273, 16
        %v3408 = vrot.slane %v3406, 4
        %v3409 = vshll.u32 %v3273, 16
        %v3411 = vrot.slane %v3409, 5
        %v3412 = vor.u32 %v3408, %v3411
        %v3413 = vrot.slane %v3412, 4
        %v3415 = vshll.u32 %v3274, 16
        %v3417 = vrot.slane %v3415, 5
        %v3418 = vsel %vm1410, %v3413, %v3417
        %v3419 = vshrl.u32 %v3274, 16
        %v3421 = vrot.slane %v3419, 4
        %v3422 = vor.u32 %v3421, %v3417
        %v3423 = vrot.slane %v3422, 4
        %v3425 = vshll.u32 %v3275, 16
        %v3427 = vrot.slane %v3425, 5
        %v3428 = vsel %vm1410, %v3423, %v3427
        %v3430 = vshrl.u32 %v3276, 16
        %v3432 = vrot.slane %v3430, 4
        %v3433 = vshll.u32 %v3276, 16
        %v3435 = vrot.slane %v3433, 5
        %v3436 = vor.u32 %v3432, %v3435
        %v3437 = vrot.slane %v3436, 4
        %v3439 = vshll.u32 %v3277, 16
        %v3441 = vrot.slane %v3439, 5
        %v3442 = vsel %vm1410, %v3437, %v3441
        %v3443 = vshrl.u32 %v3277, 16
        %v3445 = vrot.slane %v3443, 4
        %v3446 = vor.u32 %v3445, %v3441
        %v3447 = vrot.slane %v3446, 4
        %v3449 = vshll.u32 %v3278, 16
        %v3451 = vrot.slane %v3449, 5
        %v3452 = vsel %vm1410, %v3447, %v3451
        %v3454 = vshrl.u32 %v3279, 16
        %v3456 = vrot.slane %v3454, 4
        %v3457 = vshll.u32 %v3279, 16
        %v3459 = vrot.slane %v3457, 5
        %v3460 = vor.u32 %v3456, %v3459
        %v3461 = vrot.slane %v3460, 4
        %v3463 = vshll.u32 %v3280, 16
        %v3465 = vrot.slane %v3463, 5
        %v3466 = vsel %vm1410, %v3461, %v3465
        %v3467 = vshrl.u32 %v3280, 16
        %v3469 = vrot.slane %v3467, 4
        %v3470 = vor.u32 %v3469, %v3465
        %v3471 = vrot.slane %v3470, 4
        %v3473 = vshll.u32 %v3281, 16
        %v3475 = vrot.slane %v3473, 5
        %v3476 = vsel %vm1410, %v3471, %v3475
        %v3478 = vshrl.u32 %v3282, 16
        %v3480 = vrot.slane %v3478, 4
        %v3481 = vshll.u32 %v3282, 16
        %v3483 = vrot.slane %v3481, 5
        %v3484 = vor.u32 %v3480, %v3483
        %v3485 = vrot.slane %v3484, 4
        %v3487 = vshll.u32 %v3283, 16
        %v3489 = vrot.slane %v3487, 5
        %v3490 = vsel %vm1410, %v3485, %v3489
        %v3491 = vshrl.u32 %v3283, 16
        %v3493 = vrot.slane %v3491, 4
        %v3494 = vor.u32 %v3493, %v3489
        %v3495 = vrot.slane %v3494, 4
        %v3497 = vshll.u32 %v3284, 16
        %v3499 = vrot.slane %v3497, 5
        %v3500 = vsel %vm1410, %v3495, %v3499
        %v3502 = vshrl.u32 %v3285, 16
        %v3504 = vrot.slane %v3502, 4
        %v3505 = vshll.u32 %v3285, 16
        %v3507 = vrot.slane %v3505, 5
        %v3508 = vor.u32 %v3504, %v3507
        %v3509 = vrot.slane %v3508, 4
        %v3511 = vshll.u32 %v3286, 16
        %v3513 = vrot.slane %v3511, 5
        %v3514 = vsel %vm1410, %v3509, %v3513
        %v3515 = vshrl.u32 %v3286, 16
        %v3517 = vrot.slane %v3515, 4
        %v3518 = vor.u32 %v3517, %v3513
        %v3519 = vrot.slane %v3518, 4
        %v3521 = vshll.u32 %v3287, 16
        %v3523 = vrot.slane %v3521, 5
        %v3524 = vsel %vm1410, %v3519, %v3523
        %v3526 = vshrl.u32 %v3288, 16
        %v3528 = vrot.slane %v3526, 4
        %v3529 = vshll.u32 %v3288, 16
        %v3531 = vrot.slane %v3529, 5
        %v3532 = vor.u32 %v3528, %v3531
        %v3533 = vrot.slane %v3532, 4
        %v3535 = vshll.u32 %v3289, 16
        %v3537 = vrot.slane %v3535, 5
        %v3538 = vsel %vm1410, %v3533, %v3537
        %v3539 = vshrl.u32 %v3289, 16
        %v3541 = vrot.slane %v3539, 4
        %v3542 = vor.u32 %v3541, %v3537
        %v3543 = vrot.slane %v3542, 4
        %v3545 = vshll.u32 %v3290, 16
        %v3547 = vrot.slane %v3545, 5
        %v3548 = vsel %vm1410, %v3543, %v3547
        %v3550 = vshrl.u32 %v3291, 16
        %v3552 = vrot.slane %v3550, 4
        %v3553 = vshll.u32 %v3291, 16
        %v3555 = vrot.slane %v3553, 5
        %v3556 = vor.u32 %v3552, %v3555
        %v3557 = vrot.slane %v3556, 4
        %v3559 = vshll.u32 %v3292, 16
        %v3561 = vrot.slane %v3559, 5
        %v3562 = vsel %vm1410, %v3557, %v3561
        %v3563 = vshrl.u32 %v3292, 16
        %v3565 = vrot.slane %v3563, 4
        %v3566 = vor.u32 %v3565, %v3561
        %v3567 = vrot.slane %v3566, 4
        %v3569 = vshll.u32 %v3293, 16
        %v3571 = vrot.slane %v3569, 5
        %v3572 = vsel %vm1410, %v3567, %v3571
        %v3574 = vshrl.u32 %v3294, 16
        %v3576 = vrot.slane %v3574, 4
        %v3577 = vshll.u32 %v3294, 16
        %v3579 = vrot.slane %v3577, 5
        %v3580 = vor.u32 %v3576, %v3579
        %v3581 = vrot.slane %v3580, 4
        %v3583 = vshll.u32 %v3295, 16
        %v3585 = vrot.slane %v3583, 5
        %v3586 = vsel %vm1410, %v3581, %v3585
        %v3587 = vshrl.u32 %v3295, 16
        %v3589 = vrot.slane %v3587, 4
        %v3590 = vor.u32 %v3589, %v3585
        %v3591 = vrot.slane %v3590, 4
        %v3593 = vshll.u32 %v3296, 16
        %v3595 = vrot.slane %v3593, 5
        %v3596 = vsel %vm1410, %v3591, %v3595
        %v3598 = vshrl.u32 %v3297, 16
        %v3600 = vrot.slane %v3598, 4
        %v3601 = vshll.u32 %v3297, 16
        %v3603 = vrot.slane %v3601, 5
        %v3604 = vor.u32 %v3600, %v3603
        %v3605 = vrot.slane %v3604, 4
        %v3607 = vshll.u32 %v3298, 16
        %v3609 = vrot.slane %v3607, 5
        %v3610 = vsel %vm1410, %v3605, %v3609
        %v3611 = vshrl.u32 %v3298, 16
        %v3613 = vrot.slane %v3611, 4
        %v3614 = vor.u32 %v3613, %v3609
        %v3615 = vrot.slane %v3614, 4
        %v3617 = vshll.u32 %v3299, 16
        %v3619 = vrot.slane %v3617, 5
        %v3620 = vsel %vm1410, %v3615, %v3619
        %v3622 = vshrl.u32 %v3300, 16
        %v3624 = vrot.slane %v3622, 4
        %v3625 = vshll.u32 %v3300, 16
        %v3627 = vrot.slane %v3625, 5
        %v3628 = vor.u32 %v3624, %v3627
        %v3629 = vrot.slane %v3628, 4
        %v3631 = vshll.u32 %v3301, 16
        %v3633 = vrot.slane %v3631, 5
        %v3634 = vsel %vm1410, %v3629, %v3633
        %v3635 = vshrl.u32 %v3301, 16
        %v3637 = vrot.slane %v3635, 4
        %v3638 = vor.u32 %v3637, %v3633
        %v3639 = vrot.slane %v3638, 4
        %v3641 = vshll.u32 %v3302, 16
        %v3643 = vrot.slane %v3641, 5
        %v3644 = vsel %vm1410, %v3639, %v3643
        %v3646 = vshrl.u32 %v3303, 16
        %v3648 = vrot.slane %v3646, 4
        %v3649 = vshll.u32 %v3303, 16
        %v3651 = vrot.slane %v3649, 5
        %v3652 = vor.u32 %v3648, %v3651
        %v3653 = vrot.slane %v3652, 4
        %v3655 = vshll.u32 %v3304, 16
        %v3657 = vrot.slane %v3655, 5
        %v3658 = vsel %vm1410, %v3653, %v3657
        %v3659 = vshrl.u32 %v3304, 16
        %v3661 = vrot.slane %v3659, 4
        %v3662 = vor.u32 %v3661, %v3657
        %v3663 = vrot.slane %v3662, 4
        %v3665 = vshll.u32 %v3305, 16
        %v3667 = vrot.slane %v3665, 5
        %v3668 = vsel %vm1410, %v3663, %v3667
        %v3670 = vshrl.u32 %v3306, 16
        %v3672 = vrot.slane %v3670, 4
        %v3673 = vshll.u32 %v3306, 16
        %v3675 = vrot.slane %v3673, 5
        %v3676 = vor.u32 %v3672, %v3675
        %v3677 = vrot.slane %v3676, 4
        %v3679 = vshll.u32 %v3307, 16
        %v3681 = vrot.slane %v3679, 5
        %v3682 = vsel %vm1410, %v3677, %v3681
        %v3683 = vshrl.u32 %v3307, 16
        %v3685 = vrot.slane %v3683, 4
        %v3686 = vor.u32 %v3685, %v3681
        %v3687 = vrot.slane %v3686, 4
        %v3689 = vshll.u32 %v3308, 16
        %v3691 = vrot.slane %v3689, 5
        %v3692 = vsel %vm1410, %v3687, %v3691
        %s3693 = scalar_lea.vmem [#allocation6], 256
        %v3694 = vld [vmem:[%s3693] sm:$0xf]
        %v3695 = vld [vmem:[%s3693 + $0x4] sm:$0xf]
        %v3696 = vld [vmem:[%s3693 + $0x8] sm:$0xf]
        %v3697 = vld [vmem:[%s3693 + $0xc] sm:$0xf]
        %v3698 = vld [vmem:[%s3693 + $0x10] sm:$0xf]
        %v3699 = vld [vmem:[%s3693 + $0x14] sm:$0xf]
        %v3700 = vld [vmem:[%s3693 + $0x18] sm:$0xf]
        %v3701 = vld [vmem:[%s3693 + $0x1c] sm:$0xf]
        %v3702 = vld [vmem:[%s3693 + $0x20] sm:$0xf]
        %v3703 = vld [vmem:[%s3693 + $0x24] sm:$0xf]
        %v3704 = vld [vmem:[%s3693 + $0x28] sm:$0xf]
        %v3705 = vld [vmem:[%s3693 + $0x2c] sm:$0xf]
        %v3706 = vld [vmem:[%s3693 + $0x30] sm:$0xf]
        %v3707 = vld [vmem:[%s3693 + $0x34] sm:$0xf]
        %v3708 = vld [vmem:[%s3693 + $0x38] sm:$0xf]
        %v3709 = vld [vmem:[%s3693 + $0x3c] sm:$0xf]
        %v3710 = vunpack.c.l.b16 %v3322
        %v3711 = vunpack.c.l.b16 %v3332
        %v3712 = vunpack.c.l.b16 %v3346
        %v3713 = vunpack.c.l.b16 %v3356
        %v3714 = vunpack.c.l.b16 %v3370
        %v3715 = vunpack.c.l.b16 %v3380
        %v3716 = vunpack.c.l.b16 %v3394
        %v3717 = vunpack.c.l.b16 %v3404
        %v3718 = vunpack.c.l.b16 %v3418
        %v3719 = vunpack.c.l.b16 %v3428
        %v3720 = vunpack.c.l.b16 %v3442
        %v3721 = vunpack.c.l.b16 %v3452
        %v3722 = vunpack.c.l.b16 %v3466
        %v3723 = vunpack.c.l.b16 %v3476
        %v3724 = vunpack.c.l.b16 %v3490
        %v3725 = vunpack.c.l.b16 %v3500
        %v3726 = vunpack.c.l.b16 %v3514
        %v3727 = vunpack.c.l.b16 %v3524
        %v3728 = vunpack.c.l.b16 %v3538
        %v3729 = vunpack.c.l.b16 %v3548
        %v3730 = vunpack.c.l.b16 %v3562
        %v3731 = vunpack.c.l.b16 %v3572
        %v3732 = vunpack.c.l.b16 %v3586
        %v3733 = vunpack.c.l.b16 %v3596
        %v3734 = vunpack.c.l.b16 %v3610
        %v3735 = vunpack.c.l.b16 %v3620
        %v3736 = vunpack.c.l.b16 %v3634
        %v3737 = vunpack.c.l.b16 %v3644
        %v3738 = vunpack.c.l.b16 %v3658
        %v3739 = vunpack.c.l.b16 %v3668
        %v3740 = vunpack.c.l.b16 %v3682
        %v3741 = vunpack.c.l.b16 %v3692
        %v3742 = vpack.c.b16 %v3711, %v3710
        %v3743 = vpack.c.b16 %v3713, %v3712
        %v3744 = vpack.c.b16 %v3715, %v3714
        %v3745 = vpack.c.b16 %v3717, %v3716
        %v3746 = vpack.c.b16 %v3719, %v3718
        %v3747 = vpack.c.b16 %v3721, %v3720
        %v3748 = vpack.c.b16 %v3723, %v3722
        %v3749 = vpack.c.b16 %v3725, %v3724
        %v3750 = vpack.c.b16 %v3727, %v3726
        %v3751 = vpack.c.b16 %v3729, %v3728
        %v3752 = vpack.c.b16 %v3731, %v3730
        %v3753 = vpack.c.b16 %v3733, %v3732
        %v3754 = vpack.c.b16 %v3735, %v3734
        %v3755 = vpack.c.b16 %v3737, %v3736
        %v3756 = vpack.c.b16 %v3739, %v3738
        %v3757 = vpack.c.b16 %v3741, %v3740
        %v3790 = vunpack.c.l.b16 %v3694
        %v3791 = vunpack.c.l.b16 %v3695
        %v3792 = vunpack.c.l.b16 %v3696
        %v3793 = vunpack.c.l.b16 %v3697
        %v3794 = vunpack.c.l.b16 %v3698
        %v3795 = vunpack.c.l.b16 %v3699
        %v3796 = vunpack.c.l.b16 %v3700
        %v3797 = vunpack.c.l.b16 %v3701
        %v3798 = vunpack.c.l.b16 %v3702
        %v3799 = vunpack.c.l.b16 %v3703
        %v3800 = vunpack.c.l.b16 %v3704
        %v3801 = vunpack.c.l.b16 %v3705
        %v3802 = vunpack.c.l.b16 %v3706
        %v3803 = vunpack.c.l.b16 %v3707
        %v3804 = vunpack.c.l.b16 %v3708
        %v3805 = vunpack.c.l.b16 %v3709
        %v3806 = vpack.c.b16 %v3791, %v3790
        %v3807 = vpack.c.b16 %v3793, %v3792
        %v3808 = vpack.c.b16 %v3795, %v3794
        %v3809 = vpack.c.b16 %v3797, %v3796
        %v3810 = vpack.c.b16 %v3799, %v3798
        %v3811 = vpack.c.b16 %v3801, %v3800
        %v3812 = vpack.c.b16 %v3803, %v3802
        %v3813 = vpack.c.b16 %v3805, %v3804
        %3822 = vmatprep.subr.bf16.mxu0 0
        %3823 = vmatpush1.bf16.msra.mxu0 %v3813
        %3824 = vmatprep.subr.bf16.mxu0 0
        %3825 = vmatpush1.bf16.msra.mxu0 %v3812
        %3826 = vmatprep.subr.bf16.mxu0 0
        %3827 = vmatpush1.bf16.msra.mxu0 %v3811
        %3828 = vmatprep.subr.bf16.mxu0 0
        %3829 = vmatpush1.bf16.msra.mxu0 %v3810
        %3830 = vmatprep.subr.bf16.mxu0 0
        %3831 = vmatpush1.bf16.msra.mxu0 %v3809
        %3832 = vmatprep.subr.bf16.mxu0 0
        %3833 = vmatpush1.bf16.msra.mxu0 %v3808
        %3834 = vmatprep.subr.bf16.mxu0 0
        %3835 = vmatpush1.bf16.msra.mxu0 %v3807
        %3836 = vmatprep.subr.bf16.mxu0 0
        %3837 = vmatpush1.bf16.msra.mxu0 %v3806
        %3838 = vmatprep.subr.bf16.mxu0 0
        %3839 = vmatpush2.bf16.msra.mxu0 0
        %3840 = vmatprep.subr.bf16.mxu0 0
        %3841 = vmatpush2.bf16.msra.mxu0 0
        %3842 = vmatprep.subr.bf16.mxu0 0
        %3843 = vmatpush2.bf16.msra.mxu0 0
        %3844 = vmatprep.subr.bf16.mxu0 0
        %3845 = vmatpush2.bf16.msra.mxu0 0
        %3846 = vmatprep.subr.bf16.mxu0 0
        %3847 = vmatpush2.bf16.msra.mxu0 0
        %3848 = vmatprep.subr.bf16.mxu0 0
        %3849 = vmatpush2.bf16.msra.mxu0 0
        %3850 = vmatprep.subr.bf16.mxu0 0
        %3851 = vmatpush2.bf16.msra.mxu0 0
        %3852 = vmatprep.subr.bf16.mxu0 0
        %3853 = vmatpush2.bf16.msra.mxu0 0
        %3854 = vmatprep.mubr.bf16.mxu0 0
        %3855 = vmatmul.mubr.bf16.gmra.mxu0 %v3742
        %v3856 = vpop.f32.mrf.mxu0
        %v3857 = vadd.f32 0.0, %v3856
        %v3858 = vpop.f32.mrf.mxu0
        %v3859 = vpop.f32.mrf.mxu0
        %v3860 = vadd.f32 0.0, %v3859
        %v3861 = vpop.f32.mrf.mxu0
        %3862 = vmatprep.mubr.bf16.mxu0 0
        %3863 = vmatmul.mubr.bf16.gmra.mxu0 %v3743
        %v3864 = vpop.f32.mrf.mxu0
        %v3865 = vadd.f32 0.0, %v3864
        %v3866 = vpop.f32.mrf.mxu0
        %v3867 = vpop.f32.mrf.mxu0
        %v3868 = vadd.f32 0.0, %v3867
        %v3869 = vpop.f32.mrf.mxu0
        %3870 = vmatprep.mubr.bf16.mxu0 0
        %3871 = vmatmul.mubr.bf16.gmra.mxu0 %v3744
        %v3872 = vpop.f32.mrf.mxu0
        %v3873 = vadd.f32 0.0, %v3872
        %v3874 = vpop.f32.mrf.mxu0
        %v3875 = vpop.f32.mrf.mxu0
        %v3876 = vadd.f32 0.0, %v3875
        %v3877 = vpop.f32.mrf.mxu0
        %3878 = vmatprep.mubr.bf16.mxu0 0
        %3879 = vmatmul.mubr.bf16.gmra.mxu0 %v3745
        %v3880 = vpop.f32.mrf.mxu0
        %v3881 = vadd.f32 0.0, %v3880
        %v3882 = vpop.f32.mrf.mxu0
        %v3883 = vpop.f32.mrf.mxu0
        %v3884 = vadd.f32 0.0, %v3883
        %v3885 = vpop.f32.mrf.mxu0
        %3886 = vmatprep.mubr.bf16.mxu0 0
        %3887 = vmatmul.mubr.bf16.gmra.mxu0 %v3746
        %v3888 = vpop.f32.mrf.mxu0
        %v3889 = vadd.f32 0.0, %v3888
        %v3890 = vpop.f32.mrf.mxu0
        %v3891 = vpop.f32.mrf.mxu0
        %v3892 = vadd.f32 0.0, %v3891
        %v3893 = vpop.f32.mrf.mxu0
        %3894 = vmatprep.mubr.bf16.mxu0 0
        %3895 = vmatmul.mubr.bf16.gmra.mxu0 %v3747
        %v3896 = vpop.f32.mrf.mxu0
        %v3897 = vadd.f32 0.0, %v3896
        %v3898 = vpop.f32.mrf.mxu0
        %v3899 = vpop.f32.mrf.mxu0
        %v3900 = vadd.f32 0.0, %v3899
        %v3901 = vpop.f32.mrf.mxu0
        %3902 = vmatprep.mubr.bf16.mxu0 0
        %3903 = vmatmul.mubr.bf16.gmra.mxu0 %v3748
        %v3904 = vpop.f32.mrf.mxu0
        %v3905 = vadd.f32 0.0, %v3904
        %v3906 = vpop.f32.mrf.mxu0
        %v3907 = vpop.f32.mrf.mxu0
        %v3908 = vadd.f32 0.0, %v3907
        %v3909 = vpop.f32.mrf.mxu0
        %3910 = vmatprep.mubr.bf16.mxu0 0
        %3911 = vmatmul.mubr.bf16.gmra.mxu0 %v3749
        %v3912 = vpop.f32.mrf.mxu0
        %v3913 = vadd.f32 0.0, %v3912
        %v3914 = vpop.f32.mrf.mxu0
        %v3915 = vpop.f32.mrf.mxu0
        %v3916 = vadd.f32 0.0, %v3915
        %v3917 = vpop.f32.mrf.mxu0
        %3918 = vmatprep.mubr.bf16.mxu0 0
        %3919 = vmatmul.mubr.bf16.gmra.mxu0 %v3750
        %v3920 = vpop.f32.mrf.mxu0
        %v3921 = vadd.f32 0.0, %v3920
        %v3922 = vpop.f32.mrf.mxu0
        %v3923 = vpop.f32.mrf.mxu0
        %v3924 = vadd.f32 0.0, %v3923
        %v3925 = vpop.f32.mrf.mxu0
        %3926 = vmatprep.mubr.bf16.mxu0 0
        %3927 = vmatmul.mubr.bf16.gmra.mxu0 %v3751
        %v3928 = vpop.f32.mrf.mxu0
        %v3929 = vadd.f32 0.0, %v3928
        %v3930 = vpop.f32.mrf.mxu0
        %v3931 = vpop.f32.mrf.mxu0
        %v3932 = vadd.f32 0.0, %v3931
        %v3933 = vpop.f32.mrf.mxu0
        %3934 = vmatprep.mubr.bf16.mxu0 0
        %3935 = vmatmul.mubr.bf16.gmra.mxu0 %v3752
        %v3936 = vpop.f32.mrf.mxu0
        %v3937 = vadd.f32 0.0, %v3936
        %v3938 = vpop.f32.mrf.mxu0
        %v3939 = vpop.f32.mrf.mxu0
        %v3940 = vadd.f32 0.0, %v3939
        %v3941 = vpop.f32.mrf.mxu0
        %3942 = vmatprep.mubr.bf16.mxu0 0
        %3943 = vmatmul.mubr.bf16.gmra.mxu0 %v3753
        %v3944 = vpop.f32.mrf.mxu0
        %v3945 = vadd.f32 0.0, %v3944
        %v3946 = vpop.f32.mrf.mxu0
        %v3947 = vpop.f32.mrf.mxu0
        %v3948 = vadd.f32 0.0, %v3947
        %v3949 = vpop.f32.mrf.mxu0
        %3950 = vmatprep.mubr.bf16.mxu0 0
        %3951 = vmatmul.mubr.bf16.gmra.mxu0 %v3754
        %v3952 = vpop.f32.mrf.mxu0
        %v3953 = vadd.f32 0.0, %v3952
        %v3954 = vpop.f32.mrf.mxu0
        %v3955 = vpop.f32.mrf.mxu0
        %v3956 = vadd.f32 0.0, %v3955
        %v3957 = vpop.f32.mrf.mxu0
        %3958 = vmatprep.mubr.bf16.mxu0 0
        %3959 = vmatmul.mubr.bf16.gmra.mxu0 %v3755
        %v3960 = vpop.f32.mrf.mxu0
        %v3961 = vadd.f32 0.0, %v3960
        %v3962 = vpop.f32.mrf.mxu0
        %v3963 = vpop.f32.mrf.mxu0
        %v3964 = vadd.f32 0.0, %v3963
        %v3965 = vpop.f32.mrf.mxu0
        %3966 = vmatprep.mubr.bf16.mxu0 0
        %3967 = vmatmul.mubr.bf16.gmra.mxu0 %v3756
        %v3968 = vpop.f32.mrf.mxu0
        %v3969 = vadd.f32 0.0, %v3968
        %v3970 = vpop.f32.mrf.mxu0
        %v3971 = vpop.f32.mrf.mxu0
        %v3972 = vadd.f32 0.0, %v3971
        %v3973 = vpop.f32.mrf.mxu0
        %3974 = vmatprep.mubr.bf16.mxu0 0
        %3975 = vmatmul.mubr.bf16.gmra.mxu0 %v3757
        %v3976 = vpop.f32.mrf.mxu0
        %v3977 = vadd.f32 0.0, %v3976
        %v3978 = vpop.f32.mrf.mxu0
        %v3979 = vpop.f32.mrf.mxu0
        %v3980 = vadd.f32 0.0, %v3979
        %v3981 = vpop.f32.mrf.mxu0
        %3982 = vdwg.mxu0
        %v3983 = vadd.f32 %v3229, %v3857
        %v3984 = vadd.f32 %v3230, %v3860
        %v3985 = vadd.f32 %v3231, %v3865
        %v3986 = vadd.f32 %v3232, %v3868
        %v3987 = vadd.f32 %v3233, %v3873
        %v3988 = vadd.f32 %v3234, %v3876
        %v3989 = vadd.f32 %v3235, %v3881
        %v3990 = vadd.f32 %v3236, %v3884
        %v3991 = vadd.f32 %v3237, %v3889
        %v3992 = vadd.f32 %v3238, %v3892
        %v3993 = vadd.f32 %v3239, %v3897
        %v3994 = vadd.f32 %v3240, %v3900
        %v3995 = vadd.f32 %v3241, %v3905
        %v3996 = vadd.f32 %v3242, %v3908
        %v3997 = vadd.f32 %v3243, %v3913
        %v3998 = vadd.f32 %v3244, %v3916
        %v3999 = vadd.f32 %v3245, %v3921
        %v4000 = vadd.f32 %v3246, %v3924
        %v4001 = vadd.f32 %v3247, %v3929
        %v4002 = vadd.f32 %v3248, %v3932
        %v4003 = vadd.f32 %v3249, %v3937
        %v4004 = vadd.f32 %v3250, %v3940
        %v4005 = vadd.f32 %v3251, %v3945
        %v4006 = vadd.f32 %v3252, %v3948
        %v4007 = vadd.f32 %v3253, %v3953
        %v4008 = vadd.f32 %v3254, %v3956
        %v4009 = vadd.f32 %v3255, %v3961
        %v4010 = vadd.f32 %v3256, %v3964
        %v4011 = vadd.f32 %v3257, %v3969
        %v4012 = vadd.f32 %v3258, %v3972
        %v4013 = vadd.f32 %v3259, %v3977
        %v4014 = vadd.f32 %v3260, %v3980
        %v4015 = vld [vmem:[%s1229] sm:$0xe]
        %v4016 = vld [vmem:[%s1229 + $0xc] sm:$0xe]
        %v4017 = vld [vmem:[%s1229 + $0x18] sm:$0xe]
        %v4018 = vld [vmem:[%s1229 + $0x24] sm:$0xe]
        %v4019 = vld [vmem:[%s1229 + $0x30] sm:$0xe]
        %v4020 = vld [vmem:[%s1229 + $0x3c] sm:$0xe]
        %v4021 = vld [vmem:[%s1229 + $0x48] sm:$0xe]
        %v4022 = vld [vmem:[%s1229 + $0x54] sm:$0xe]
        %v4023 = vld [vmem:[%s1229 + $0x60] sm:$0xe]
        %v4024 = vld [vmem:[%s1229 + $0x6c] sm:$0xe]
        %v4025 = vld [vmem:[%s1229 + $0x78] sm:$0xe]
        %v4026 = vld [vmem:[%s1229 + $0x84] sm:$0xe]
        %v4027 = vld [vmem:[%s1229 + $0x90] sm:$0xe]
        %v4028 = vld [vmem:[%s1229 + $0x9c] sm:$0xe]
        %v4029 = vld [vmem:[%s1229 + $0xa8] sm:$0xe]
        %v4030 = vld [vmem:[%s1229 + $0xb4] sm:$0xe]
        %v4079 = vrot.slane %v4015, 5
        %v4080 = vrot.slane %v4079, 4
        %v4081 = vrot.slane %v3262, 5
        %v4082 = vsel %vm2440, %v4080, %v4081
        %v4083 = vrot.slane %v4081, 4
        %v4084 = vrot.slane %v3263, 5
        %v4085 = vsel %vm2440, %v4083, %v4084
        %v4086 = vrot.slane %v4016, 5
        %v4087 = vrot.slane %v4086, 4
        %v4088 = vrot.slane %v3265, 5
        %v4089 = vsel %vm2440, %v4087, %v4088
        %v4090 = vrot.slane %v4088, 4
        %v4091 = vrot.slane %v3266, 5
        %v4092 = vsel %vm2440, %v4090, %v4091
        %v4093 = vrot.slane %v4017, 5
        %v4094 = vrot.slane %v4093, 4
        %v4095 = vrot.slane %v3268, 5
        %v4096 = vsel %vm2440, %v4094, %v4095
        %v4097 = vrot.slane %v4095, 4
        %v4098 = vrot.slane %v3269, 5
        %v4099 = vsel %vm2440, %v4097, %v4098
        %v4100 = vrot.slane %v4018, 5
        %v4101 = vrot.slane %v4100, 4
        %v4102 = vrot.slane %v3271, 5
        %v4103 = vsel %vm2440, %v4101, %v4102
        %v4104 = vrot.slane %v4102, 4
        %v4105 = vrot.slane %v3272, 5
        %v4106 = vsel %vm2440, %v4104, %v4105
        %v4107 = vrot.slane %v4019, 5
        %v4108 = vrot.slane %v4107, 4
        %v4109 = vrot.slane %v3274, 5
        %v4110 = vsel %vm2440, %v4108, %v4109
        %v4111 = vrot.slane %v4109, 4
        %v4112 = vrot.slane %v3275, 5
        %v4113 = vsel %vm2440, %v4111, %v4112
        %v4114 = vrot.slane %v4020, 5
        %v4115 = vrot.slane %v4114, 4
        %v4116 = vrot.slane %v3277, 5
        %v4117 = vsel %vm2440, %v4115, %v4116
        %v4118 = vrot.slane %v4116, 4
        %v4119 = vrot.slane %v3278, 5
        %v4120 = vsel %vm2440, %v4118, %v4119
        %v4121 = vrot.slane %v4021, 5
        %v4122 = vrot.slane %v4121, 4
        %v4123 = vrot.slane %v3280, 5
        %v4124 = vsel %vm2440, %v4122, %v4123
        %v4125 = vrot.slane %v4123, 4
        %v4126 = vrot.slane %v3281, 5
        %v4127 = vsel %vm2440, %v4125, %v4126
        %v4128 = vrot.slane %v4022, 5
        %v4129 = vrot.slane %v4128, 4
        %v4130 = vrot.slane %v3283, 5
        %v4131 = vsel %vm2440, %v4129, %v4130
        %v4132 = vrot.slane %v4130, 4
        %v4133 = vrot.slane %v3284, 5
        %v4134 = vsel %vm2440, %v4132, %v4133
        %v4135 = vrot.slane %v4023, 5
        %v4136 = vrot.slane %v4135, 4
        %v4137 = vrot.slane %v3286, 5
        %v4138 = vsel %vm2440, %v4136, %v4137
        %v4139 = vrot.slane %v4137, 4
        %v4140 = vrot.slane %v3287, 5
        %v4141 = vsel %vm2440, %v4139, %v4140
        %v4142 = vrot.slane %v4024, 5
        %v4143 = vrot.slane %v4142, 4
        %v4144 = vrot.slane %v3289, 5
        %v4145 = vsel %vm2440, %v4143, %v4144
        %v4146 = vrot.slane %v4144, 4
        %v4147 = vrot.slane %v3290, 5
        %v4148 = vsel %vm2440, %v4146, %v4147
        %v4149 = vrot.slane %v4025, 5
        %v4150 = vrot.slane %v4149, 4
        %v4151 = vrot.slane %v3292, 5
        %v4152 = vsel %vm2440, %v4150, %v4151
        %v4153 = vrot.slane %v4151, 4
        %v4154 = vrot.slane %v3293, 5
        %v4155 = vsel %vm2440, %v4153, %v4154
        %v4156 = vrot.slane %v4026, 5
        %v4157 = vrot.slane %v4156, 4
        %v4158 = vrot.slane %v3295, 5
        %v4159 = vsel %vm2440, %v4157, %v4158
        %v4160 = vrot.slane %v4158, 4
        %v4161 = vrot.slane %v3296, 5
        %v4162 = vsel %vm2440, %v4160, %v4161
        %v4163 = vrot.slane %v4027, 5
        %v4164 = vrot.slane %v4163, 4
        %v4165 = vrot.slane %v3298, 5
        %v4166 = vsel %vm2440, %v4164, %v4165
        %v4167 = vrot.slane %v4165, 4
        %v4168 = vrot.slane %v3299, 5
        %v4169 = vsel %vm2440, %v4167, %v4168
        %v4170 = vrot.slane %v4028, 5
        %v4171 = vrot.slane %v4170, 4
        %v4172 = vrot.slane %v3301, 5
        %v4173 = vsel %vm2440, %v4171, %v4172
        %v4174 = vrot.slane %v4172, 4
        %v4175 = vrot.slane %v3302, 5
        %v4176 = vsel %vm2440, %v4174, %v4175
        %v4177 = vrot.slane %v4029, 5
        %v4178 = vrot.slane %v4177, 4
        %v4179 = vrot.slane %v3304, 5
        %v4180 = vsel %vm2440, %v4178, %v4179
        %v4181 = vrot.slane %v4179, 4
        %v4182 = vrot.slane %v3305, 5
        %v4183 = vsel %vm2440, %v4181, %v4182
        %v4184 = vrot.slane %v4030, 5
        %v4185 = vrot.slane %v4184, 4
        %v4186 = vrot.slane %v3307, 5
        %v4187 = vsel %vm2440, %v4185, %v4186
        %v4188 = vrot.slane %v4186, 4
        %v4189 = vrot.slane %v3308, 5
        %v4190 = vsel %vm2440, %v4188, %v4189
        %s4191 = scalar_lea.vmem [#allocation6], 320
        %v4192 = vld [vmem:[%s4191] sm:$0xf]
        %v4193 = vld [vmem:[%s4191 + $0x4] sm:$0xf]
        %v4194 = vld [vmem:[%s4191 + $0x8] sm:$0xf]
        %v4195 = vld [vmem:[%s4191 + $0xc] sm:$0xf]
        %v4196 = vld [vmem:[%s4191 + $0x10] sm:$0xf]
        %v4197 = vld [vmem:[%s4191 + $0x14] sm:$0xf]
        %v4198 = vld [vmem:[%s4191 + $0x18] sm:$0xf]
        %v4199 = vld [vmem:[%s4191 + $0x1c] sm:$0xf]
        %v4200 = vld [vmem:[%s4191 + $0x20] sm:$0xf]
        %v4201 = vld [vmem:[%s4191 + $0x24] sm:$0xf]
        %v4202 = vld [vmem:[%s4191 + $0x28] sm:$0xf]
        %v4203 = vld [vmem:[%s4191 + $0x2c] sm:$0xf]
        %v4204 = vld [vmem:[%s4191 + $0x30] sm:$0xf]
        %v4205 = vld [vmem:[%s4191 + $0x34] sm:$0xf]
        %v4206 = vld [vmem:[%s4191 + $0x38] sm:$0xf]
        %v4207 = vld [vmem:[%s4191 + $0x3c] sm:$0xf]
        %v4208 = vunpack.c.l.b16 %v4082
        %v4209 = vunpack.c.l.b16 %v4085
        %v4210 = vunpack.c.l.b16 %v4089
        %v4211 = vunpack.c.l.b16 %v4092
        %v4212 = vunpack.c.l.b16 %v4096
        %v4213 = vunpack.c.l.b16 %v4099
        %v4214 = vunpack.c.l.b16 %v4103
        %v4215 = vunpack.c.l.b16 %v4106
        %v4216 = vunpack.c.l.b16 %v4110
        %v4217 = vunpack.c.l.b16 %v4113
        %v4218 = vunpack.c.l.b16 %v4117
        %v4219 = vunpack.c.l.b16 %v4120
        %v4220 = vunpack.c.l.b16 %v4124
        %v4221 = vunpack.c.l.b16 %v4127
        %v4222 = vunpack.c.l.b16 %v4131
        %v4223 = vunpack.c.l.b16 %v4134
        %v4224 = vunpack.c.l.b16 %v4138
        %v4225 = vunpack.c.l.b16 %v4141
        %v4226 = vunpack.c.l.b16 %v4145
        %v4227 = vunpack.c.l.b16 %v4148
        %v4228 = vunpack.c.l.b16 %v4152
        %v4229 = vunpack.c.l.b16 %v4155
        %v4230 = vunpack.c.l.b16 %v4159
        %v4231 = vunpack.c.l.b16 %v4162
        %v4232 = vunpack.c.l.b16 %v4166
        %v4233 = vunpack.c.l.b16 %v4169
        %v4234 = vunpack.c.l.b16 %v4173
        %v4235 = vunpack.c.l.b16 %v4176
        %v4236 = vunpack.c.l.b16 %v4180
        %v4237 = vunpack.c.l.b16 %v4183
        %v4238 = vunpack.c.l.b16 %v4187
        %v4239 = vunpack.c.l.b16 %v4190
        %v4240 = vpack.c.b16 %v4209, %v4208
        %v4241 = vpack.c.b16 %v4211, %v4210
        %v4242 = vpack.c.b16 %v4213, %v4212
        %v4243 = vpack.c.b16 %v4215, %v4214
        %v4244 = vpack.c.b16 %v4217, %v4216
        %v4245 = vpack.c.b16 %v4219, %v4218
        %v4246 = vpack.c.b16 %v4221, %v4220
        %v4247 = vpack.c.b16 %v4223, %v4222
        %v4248 = vpack.c.b16 %v4225, %v4224
        %v4249 = vpack.c.b16 %v4227, %v4226
        %v4250 = vpack.c.b16 %v4229, %v4228
        %v4251 = vpack.c.b16 %v4231, %v4230
        %v4252 = vpack.c.b16 %v4233, %v4232
        %v4253 = vpack.c.b16 %v4235, %v4234
        %v4254 = vpack.c.b16 %v4237, %v4236
        %v4255 = vpack.c.b16 %v4239, %v4238
        %v4288 = vunpack.c.l.b16 %v4192
        %v4289 = vunpack.c.l.b16 %v4193
        %v4290 = vunpack.c.l.b16 %v4194
        %v4291 = vunpack.c.l.b16 %v4195
        %v4292 = vunpack.c.l.b16 %v4196
        %v4293 = vunpack.c.l.b16 %v4197
        %v4294 = vunpack.c.l.b16 %v4198
        %v4295 = vunpack.c.l.b16 %v4199
        %v4296 = vunpack.c.l.b16 %v4200
        %v4297 = vunpack.c.l.b16 %v4201
        %v4298 = vunpack.c.l.b16 %v4202
        %v4299 = vunpack.c.l.b16 %v4203
        %v4300 = vunpack.c.l.b16 %v4204
        %v4301 = vunpack.c.l.b16 %v4205
        %v4302 = vunpack.c.l.b16 %v4206
        %v4303 = vunpack.c.l.b16 %v4207
        %v4304 = vpack.c.b16 %v4289, %v4288
        %v4305 = vpack.c.b16 %v4291, %v4290
        %v4306 = vpack.c.b16 %v4293, %v4292
        %v4307 = vpack.c.b16 %v4295, %v4294
        %v4308 = vpack.c.b16 %v4297, %v4296
        %v4309 = vpack.c.b16 %v4299, %v4298
        %v4310 = vpack.c.b16 %v4301, %v4300
        %v4311 = vpack.c.b16 %v4303, %v4302
        %4320 = vmatprep.subr.bf16.mxu0 0
        %4321 = vmatpush1.bf16.msra.mxu0 %v4311
        %4322 = vmatprep.subr.bf16.mxu0 0
        %4323 = vmatpush1.bf16.msra.mxu0 %v4310
        %4324 = vmatprep.subr.bf16.mxu0 0
        %4325 = vmatpush1.bf16.msra.mxu0 %v4309
        %4326 = vmatprep.subr.bf16.mxu0 0
        %4327 = vmatpush1.bf16.msra.mxu0 %v4308
        %4328 = vmatprep.subr.bf16.mxu0 0
        %4329 = vmatpush1.bf16.msra.mxu0 %v4307
        %4330 = vmatprep.subr.bf16.mxu0 0
        %4331 = vmatpush1.bf16.msra.mxu0 %v4306
        %4332 = vmatprep.subr.bf16.mxu0 0
        %4333 = vmatpush1.bf16.msra.mxu0 %v4305
        %4334 = vmatprep.subr.bf16.mxu0 0
        %4335 = vmatpush1.bf16.msra.mxu0 %v4304
        %4336 = vmatprep.subr.bf16.mxu0 0
        %4337 = vmatpush2.bf16.msra.mxu0 0
        %4338 = vmatprep.subr.bf16.mxu0 0
        %4339 = vmatpush2.bf16.msra.mxu0 0
        %4340 = vmatprep.subr.bf16.mxu0 0
        %4341 = vmatpush2.bf16.msra.mxu0 0
        %4342 = vmatprep.subr.bf16.mxu0 0
        %4343 = vmatpush2.bf16.msra.mxu0 0
        %4344 = vmatprep.subr.bf16.mxu0 0
        %4345 = vmatpush2.bf16.msra.mxu0 0
        %4346 = vmatprep.subr.bf16.mxu0 0
        %4347 = vmatpush2.bf16.msra.mxu0 0
        %4348 = vmatprep.subr.bf16.mxu0 0
        %4349 = vmatpush2.bf16.msra.mxu0 0
        %4350 = vmatprep.subr.bf16.mxu0 0
        %4351 = vmatpush2.bf16.msra.mxu0 0
        %4352 = vmatprep.mubr.bf16.mxu0 0
        %4353 = vmatmul.mubr.bf16.gmra.mxu0 %v4240
        %v4354 = vpop.f32.mrf.mxu0
        %v4355 = vadd.f32 0.0, %v4354
        %v4356 = vpop.f32.mrf.mxu0
        %v4357 = vpop.f32.mrf.mxu0
        %v4358 = vadd.f32 0.0, %v4357
        %v4359 = vpop.f32.mrf.mxu0
        %4360 = vmatprep.mubr.bf16.mxu0 0
        %4361 = vmatmul.mubr.bf16.gmra.mxu0 %v4241
        %v4362 = vpop.f32.mrf.mxu0
        %v4363 = vadd.f32 0.0, %v4362
        %v4364 = vpop.f32.mrf.mxu0
        %v4365 = vpop.f32.mrf.mxu0
        %v4366 = vadd.f32 0.0, %v4365
        %v4367 = vpop.f32.mrf.mxu0
        %4368 = vmatprep.mubr.bf16.mxu0 0
        %4369 = vmatmul.mubr.bf16.gmra.mxu0 %v4242
        %v4370 = vpop.f32.mrf.mxu0
        %v4371 = vadd.f32 0.0, %v4370
        %v4372 = vpop.f32.mrf.mxu0
        %v4373 = vpop.f32.mrf.mxu0
        %v4374 = vadd.f32 0.0, %v4373
        %v4375 = vpop.f32.mrf.mxu0
        %4376 = vmatprep.mubr.bf16.mxu0 0
        %4377 = vmatmul.mubr.bf16.gmra.mxu0 %v4243
        %v4378 = vpop.f32.mrf.mxu0
        %v4379 = vadd.f32 0.0, %v4378
        %v4380 = vpop.f32.mrf.mxu0
        %v4381 = vpop.f32.mrf.mxu0
        %v4382 = vadd.f32 0.0, %v4381
        %v4383 = vpop.f32.mrf.mxu0
        %4384 = vmatprep.mubr.bf16.mxu0 0
        %4385 = vmatmul.mubr.bf16.gmra.mxu0 %v4244
        %v4386 = vpop.f32.mrf.mxu0
        %v4387 = vadd.f32 0.0, %v4386
        %v4388 = vpop.f32.mrf.mxu0
        %v4389 = vpop.f32.mrf.mxu0
        %v4390 = vadd.f32 0.0, %v4389
        %v4391 = vpop.f32.mrf.mxu0
        %4392 = vmatprep.mubr.bf16.mxu0 0
        %4393 = vmatmul.mubr.bf16.gmra.mxu0 %v4245
        %v4394 = vpop.f32.mrf.mxu0
        %v4395 = vadd.f32 0.0, %v4394
        %v4396 = vpop.f32.mrf.mxu0
        %v4397 = vpop.f32.mrf.mxu0
        %v4398 = vadd.f32 0.0, %v4397
        %v4399 = vpop.f32.mrf.mxu0
        %4400 = vmatprep.mubr.bf16.mxu0 0
        %4401 = vmatmul.mubr.bf16.gmra.mxu0 %v4246
        %v4402 = vpop.f32.mrf.mxu0
        %v4403 = vadd.f32 0.0, %v4402
        %v4404 = vpop.f32.mrf.mxu0
        %v4405 = vpop.f32.mrf.mxu0
        %v4406 = vadd.f32 0.0, %v4405
        %v4407 = vpop.f32.mrf.mxu0
        %4408 = vmatprep.mubr.bf16.mxu0 0
        %4409 = vmatmul.mubr.bf16.gmra.mxu0 %v4247
        %v4410 = vpop.f32.mrf.mxu0
        %v4411 = vadd.f32 0.0, %v4410
        %v4412 = vpop.f32.mrf.mxu0
        %v4413 = vpop.f32.mrf.mxu0
        %v4414 = vadd.f32 0.0, %v4413
        %v4415 = vpop.f32.mrf.mxu0
        %4416 = vmatprep.mubr.bf16.mxu0 0
        %4417 = vmatmul.mubr.bf16.gmra.mxu0 %v4248
        %v4418 = vpop.f32.mrf.mxu0
        %v4419 = vadd.f32 0.0, %v4418
        %v4420 = vpop.f32.mrf.mxu0
        %v4421 = vpop.f32.mrf.mxu0
        %v4422 = vadd.f32 0.0, %v4421
        %v4423 = vpop.f32.mrf.mxu0
        %4424 = vmatprep.mubr.bf16.mxu0 0
        %4425 = vmatmul.mubr.bf16.gmra.mxu0 %v4249
        %v4426 = vpop.f32.mrf.mxu0
        %v4427 = vadd.f32 0.0, %v4426
        %v4428 = vpop.f32.mrf.mxu0
        %v4429 = vpop.f32.mrf.mxu0
        %v4430 = vadd.f32 0.0, %v4429
        %v4431 = vpop.f32.mrf.mxu0
        %4432 = vmatprep.mubr.bf16.mxu0 0
        %4433 = vmatmul.mubr.bf16.gmra.mxu0 %v4250
        %v4434 = vpop.f32.mrf.mxu0
        %v4435 = vadd.f32 0.0, %v4434
        %v4436 = vpop.f32.mrf.mxu0
        %v4437 = vpop.f32.mrf.mxu0
        %v4438 = vadd.f32 0.0, %v4437
        %v4439 = vpop.f32.mrf.mxu0
        %4440 = vmatprep.mubr.bf16.mxu0 0
        %4441 = vmatmul.mubr.bf16.gmra.mxu0 %v4251
        %v4442 = vpop.f32.mrf.mxu0
        %v4443 = vadd.f32 0.0, %v4442
        %v4444 = vpop.f32.mrf.mxu0
        %v4445 = vpop.f32.mrf.mxu0
        %v4446 = vadd.f32 0.0, %v4445
        %v4447 = vpop.f32.mrf.mxu0
        %4448 = vmatprep.mubr.bf16.mxu0 0
        %4449 = vmatmul.mubr.bf16.gmra.mxu0 %v4252
        %v4450 = vpop.f32.mrf.mxu0
        %v4451 = vadd.f32 0.0, %v4450
        %v4452 = vpop.f32.mrf.mxu0
        %v4453 = vpop.f32.mrf.mxu0
        %v4454 = vadd.f32 0.0, %v4453
        %v4455 = vpop.f32.mrf.mxu0
        %4456 = vmatprep.mubr.bf16.mxu0 0
        %4457 = vmatmul.mubr.bf16.gmra.mxu0 %v4253
        %v4458 = vpop.f32.mrf.mxu0
        %v4459 = vadd.f32 0.0, %v4458
        %v4460 = vpop.f32.mrf.mxu0
        %v4461 = vpop.f32.mrf.mxu0
        %v4462 = vadd.f32 0.0, %v4461
        %v4463 = vpop.f32.mrf.mxu0
        %4464 = vmatprep.mubr.bf16.mxu0 0
        %4465 = vmatmul.mubr.bf16.gmra.mxu0 %v4254
        %v4466 = vpop.f32.mrf.mxu0
        %v4467 = vadd.f32 0.0, %v4466
        %v4468 = vpop.f32.mrf.mxu0
        %v4469 = vpop.f32.mrf.mxu0
        %v4470 = vadd.f32 0.0, %v4469
        %v4471 = vpop.f32.mrf.mxu0
        %4472 = vmatprep.mubr.bf16.mxu0 0
        %4473 = vmatmul.mubr.bf16.gmra.mxu0 %v4255
        %v4474 = vpop.f32.mrf.mxu0
        %v4475 = vadd.f32 0.0, %v4474
        %v4476 = vpop.f32.mrf.mxu0
        %v4477 = vpop.f32.mrf.mxu0
        %v4478 = vadd.f32 0.0, %v4477
        %v4479 = vpop.f32.mrf.mxu0
        %4480 = vdwg.mxu0
        %v4481 = vadd.f32 %v3983, %v4355
        %v4482 = vadd.f32 %v3984, %v4358
        %v4483 = vadd.f32 %v3985, %v4363
        %v4484 = vadd.f32 %v3986, %v4366
        %v4485 = vadd.f32 %v3987, %v4371
        %v4486 = vadd.f32 %v3988, %v4374
        %v4487 = vadd.f32 %v3989, %v4379
        %v4488 = vadd.f32 %v3990, %v4382
        %v4489 = vadd.f32 %v3991, %v4387
        %v4490 = vadd.f32 %v3992, %v4390
        %v4491 = vadd.f32 %v3993, %v4395
        %v4492 = vadd.f32 %v3994, %v4398
        %v4493 = vadd.f32 %v3995, %v4403
        %v4494 = vadd.f32 %v3996, %v4406
        %v4495 = vadd.f32 %v3997, %v4411
        %v4496 = vadd.f32 %v3998, %v4414
        %v4497 = vadd.f32 %v3999, %v4419
        %v4498 = vadd.f32 %v4000, %v4422
        %v4499 = vadd.f32 %v4001, %v4427
        %v4500 = vadd.f32 %v4002, %v4430
        %v4501 = vadd.f32 %v4003, %v4435
        %v4502 = vadd.f32 %v4004, %v4438
        %v4503 = vadd.f32 %v4005, %v4443
        %v4504 = vadd.f32 %v4006, %v4446
        %v4505 = vadd.f32 %v4007, %v4451
        %v4506 = vadd.f32 %v4008, %v4454
        %v4507 = vadd.f32 %v4009, %v4459
        %v4508 = vadd.f32 %v4010, %v4462
        %v4509 = vadd.f32 %v4011, %v4467
        %v4510 = vadd.f32 %v4012, %v4470
        %v4511 = vadd.f32 %v4013, %v4475
        %v4512 = vadd.f32 %v4014, %v4478
        %s4513 = scalar_lea.vmem [#allocation2], 24
        %v4514 = vld [vmem:[%s4513] sm:$0xf]
        %v4515 = vld [vmem:[%s4513 + $0x4] sm:$0xf]
        %v4516 = vld [vmem:[%s4513 + $0xc] sm:$0xf]
        %v4517 = vld [vmem:[%s4513 + $0x10] sm:$0xf]
        %v4518 = vld [vmem:[%s4513 + $0x18] sm:$0xf]
        %v4519 = vld [vmem:[%s4513 + $0x1c] sm:$0xf]
        %v4520 = vld [vmem:[%s4513 + $0x24] sm:$0xf]
        %v4521 = vld [vmem:[%s4513 + $0x28] sm:$0xf]
        %v4522 = vld [vmem:[%s4513 + $0x30] sm:$0xf]
        %v4523 = vld [vmem:[%s4513 + $0x34] sm:$0xf]
        %v4524 = vld [vmem:[%s4513 + $0x3c] sm:$0xf]
        %v4525 = vld [vmem:[%s4513 + $0x40] sm:$0xf]
        %v4526 = vld [vmem:[%s4513 + $0x48] sm:$0xf]
        %v4527 = vld [vmem:[%s4513 + $0x4c] sm:$0xf]
        %v4528 = vld [vmem:[%s4513 + $0x54] sm:$0xf]
        %v4529 = vld [vmem:[%s4513 + $0x58] sm:$0xf]
        %v4530 = vld [vmem:[%s4513 + $0x60] sm:$0xf]
        %v4531 = vld [vmem:[%s4513 + $0x64] sm:$0xf]
        %v4532 = vld [vmem:[%s4513 + $0x6c] sm:$0xf]
        %v4533 = vld [vmem:[%s4513 + $0x70] sm:$0xf]
        %v4534 = vld [vmem:[%s4513 + $0x78] sm:$0xf]
        %v4535 = vld [vmem:[%s4513 + $0x7c] sm:$0xf]
        %v4536 = vld [vmem:[%s4513 + $0x84] sm:$0xf]
        %v4537 = vld [vmem:[%s4513 + $0x88] sm:$0xf]
        %v4538 = vld [vmem:[%s4513 + $0x90] sm:$0xf]
        %v4539 = vld [vmem:[%s4513 + $0x94] sm:$0xf]
        %v4540 = vld [vmem:[%s4513 + $0x9c] sm:$0xf]
        %v4541 = vld [vmem:[%s4513 + $0xa0] sm:$0xf]
        %v4542 = vld [vmem:[%s4513 + $0xa8] sm:$0xf]
        %v4543 = vld [vmem:[%s4513 + $0xac] sm:$0xf]
        %v4544 = vld [vmem:[%s4513 + $0xb4] sm:$0xf]
        %v4545 = vld [vmem:[%s4513 + $0xb8] sm:$0xf]
        %s4546 = scalar_lea.vmem [#allocation6], 384
        %v4547 = vld [vmem:[%s4546] sm:$0xf]
        %v4548 = vld [vmem:[%s4546 + $0x4] sm:$0xf]
        %v4549 = vld [vmem:[%s4546 + $0x8] sm:$0xf]
        %v4550 = vld [vmem:[%s4546 + $0xc] sm:$0xf]
        %v4551 = vld [vmem:[%s4546 + $0x10] sm:$0xf]
        %v4552 = vld [vmem:[%s4546 + $0x14] sm:$0xf]
        %v4553 = vld [vmem:[%s4546 + $0x18] sm:$0xf]
        %v4554 = vld [vmem:[%s4546 + $0x1c] sm:$0xf]
        %v4555 = vld [vmem:[%s4546 + $0x20] sm:$0xf]
        %v4556 = vld [vmem:[%s4546 + $0x24] sm:$0xf]
        %v4557 = vld [vmem:[%s4546 + $0x28] sm:$0xf]
        %v4558 = vld [vmem:[%s4546 + $0x2c] sm:$0xf]
        %v4559 = vld [vmem:[%s4546 + $0x30] sm:$0xf]
        %v4560 = vld [vmem:[%s4546 + $0x34] sm:$0xf]
        %v4561 = vld [vmem:[%s4546 + $0x38] sm:$0xf]
        %v4562 = vld [vmem:[%s4546 + $0x3c] sm:$0xf]
        %v4595 = vunpack.c.l.b16 %v4514
        %v4596 = vunpack.c.l.b16 %v4515
        %v4597 = vunpack.c.l.b16 %v4516
        %v4598 = vunpack.c.l.b16 %v4517
        %v4599 = vunpack.c.l.b16 %v4518
        %v4600 = vunpack.c.l.b16 %v4519
        %v4601 = vunpack.c.l.b16 %v4520
        %v4602 = vunpack.c.l.b16 %v4521
        %v4603 = vunpack.c.l.b16 %v4522
        %v4604 = vunpack.c.l.b16 %v4523
        %v4605 = vunpack.c.l.b16 %v4524
        %v4606 = vunpack.c.l.b16 %v4525
        %v4607 = vunpack.c.l.b16 %v4526
        %v4608 = vunpack.c.l.b16 %v4527
        %v4609 = vunpack.c.l.b16 %v4528
        %v4610 = vunpack.c.l.b16 %v4529
        %v4611 = vunpack.c.l.b16 %v4530
        %v4612 = vunpack.c.l.b16 %v4531
        %v4613 = vunpack.c.l.b16 %v4532
        %v4614 = vunpack.c.l.b16 %v4533
        %v4615 = vunpack.c.l.b16 %v4534
        %v4616 = vunpack.c.l.b16 %v4535
        %v4617 = vunpack.c.l.b16 %v4536
        %v4618 = vunpack.c.l.b16 %v4537
        %v4619 = vunpack.c.l.b16 %v4538
        %v4620 = vunpack.c.l.b16 %v4539
        %v4621 = vunpack.c.l.b16 %v4540
        %v4622 = vunpack.c.l.b16 %v4541
        %v4623 = vunpack.c.l.b16 %v4542
        %v4624 = vunpack.c.l.b16 %v4543
        %v4625 = vunpack.c.l.b16 %v4544
        %v4626 = vunpack.c.l.b16 %v4545
        %v4627 = vpack.c.b16 %v4596, %v4595
        %v4628 = vpack.c.b16 %v4598, %v4597
        %v4629 = vpack.c.b16 %v4600, %v4599
        %v4630 = vpack.c.b16 %v4602, %v4601
        %v4631 = vpack.c.b16 %v4604, %v4603
        %v4632 = vpack.c.b16 %v4606, %v4605
        %v4633 = vpack.c.b16 %v4608, %v4607
        %v4634 = vpack.c.b16 %v4610, %v4609
        %v4635 = vpack.c.b16 %v4612, %v4611
        %v4636 = vpack.c.b16 %v4614, %v4613
        %v4637 = vpack.c.b16 %v4616, %v4615
        %v4638 = vpack.c.b16 %v4618, %v4617
        %v4639 = vpack.c.b16 %v4620, %v4619
        %v4640 = vpack.c.b16 %v4622, %v4621
        %v4641 = vpack.c.b16 %v4624, %v4623
        %v4642 = vpack.c.b16 %v4626, %v4625
        %v4675 = vunpack.c.l.b16 %v4547
        %v4676 = vunpack.c.l.b16 %v4548
        %v4677 = vunpack.c.l.b16 %v4549
        %v4678 = vunpack.c.l.b16 %v4550
        %v4679 = vunpack.c.l.b16 %v4551
        %v4680 = vunpack.c.l.b16 %v4552
        %v4681 = vunpack.c.l.b16 %v4553
        %v4682 = vunpack.c.l.b16 %v4554
        %v4683 = vunpack.c.l.b16 %v4555
        %v4684 = vunpack.c.l.b16 %v4556
        %v4685 = vunpack.c.l.b16 %v4557
        %v4686 = vunpack.c.l.b16 %v4558
        %v4687 = vunpack.c.l.b16 %v4559
        %v4688 = vunpack.c.l.b16 %v4560
        %v4689 = vunpack.c.l.b16 %v4561
        %v4690 = vunpack.c.l.b16 %v4562
        %v4691 = vpack.c.b16 %v4676, %v4675
        %v4692 = vpack.c.b16 %v4678, %v4677
        %v4693 = vpack.c.b16 %v4680, %v4679
        %v4694 = vpack.c.b16 %v4682, %v4681
        %v4695 = vpack.c.b16 %v4684, %v4683
        %v4696 = vpack.c.b16 %v4686, %v4685
        %v4697 = vpack.c.b16 %v4688, %v4687
        %v4698 = vpack.c.b16 %v4690, %v4689
        %4707 = vmatprep.subr.bf16.mxu0 0
        %4708 = vmatpush1.bf16.msra.mxu0 %v4698
        %4709 = vmatprep.subr.bf16.mxu0 0
        %4710 = vmatpush1.bf16.msra.mxu0 %v4697
        %4711 = vmatprep.subr.bf16.mxu0 0
        %4712 = vmatpush1.bf16.msra.mxu0 %v4696
        %4713 = vmatprep.subr.bf16.mxu0 0
        %4714 = vmatpush1.bf16.msra.mxu0 %v4695
        %4715 = vmatprep.subr.bf16.mxu0 0
        %4716 = vmatpush1.bf16.msra.mxu0 %v4694
        %4717 = vmatprep.subr.bf16.mxu0 0
        %4718 = vmatpush1.bf16.msra.mxu0 %v4693
        %4719 = vmatprep.subr.bf16.mxu0 0
        %4720 = vmatpush1.bf16.msra.mxu0 %v4692
        %4721 = vmatprep.subr.bf16.mxu0 0
        %4722 = vmatpush1.bf16.msra.mxu0 %v4691
        %4723 = vmatprep.subr.bf16.mxu0 0
        %4724 = vmatpush2.bf16.msra.mxu0 0
        %4725 = vmatprep.subr.bf16.mxu0 0
        %4726 = vmatpush2.bf16.msra.mxu0 0
        %4727 = vmatprep.subr.bf16.mxu0 0
        %4728 = vmatpush2.bf16.msra.mxu0 0
        %4729 = vmatprep.subr.bf16.mxu0 0
        %4730 = vmatpush2.bf16.msra.mxu0 0
        %4731 = vmatprep.subr.bf16.mxu0 0
        %4732 = vmatpush2.bf16.msra.mxu0 0
        %4733 = vmatprep.subr.bf16.mxu0 0
        %4734 = vmatpush2.bf16.msra.mxu0 0
        %4735 = vmatprep.subr.bf16.mxu0 0
        %4736 = vmatpush2.bf16.msra.mxu0 0
        %4737 = vmatprep.subr.bf16.mxu0 0
        %4738 = vmatpush2.bf16.msra.mxu0 0
        %4739 = vmatprep.mubr.bf16.mxu0 0
        %4740 = vmatmul.mubr.bf16.gmra.mxu0 %v4627
        %v4741 = vpop.f32.mrf.mxu0
        %v4742 = vadd.f32 0.0, %v4741
        %v4743 = vpop.f32.mrf.mxu0
        %v4744 = vpop.f32.mrf.mxu0
        %v4745 = vadd.f32 0.0, %v4744
        %v4746 = vpop.f32.mrf.mxu0
        %4747 = vmatprep.mubr.bf16.mxu0 0
        %4748 = vmatmul.mubr.bf16.gmra.mxu0 %v4628
        %v4749 = vpop.f32.mrf.mxu0
        %v4750 = vadd.f32 0.0, %v4749
        %v4751 = vpop.f32.mrf.mxu0
        %v4752 = vpop.f32.mrf.mxu0
        %v4753 = vadd.f32 0.0, %v4752
        %v4754 = vpop.f32.mrf.mxu0
        %4755 = vmatprep.mubr.bf16.mxu0 0
        %4756 = vmatmul.mubr.bf16.gmra.mxu0 %v4629
        %v4757 = vpop.f32.mrf.mxu0
        %v4758 = vadd.f32 0.0, %v4757
        %v4759 = vpop.f32.mrf.mxu0
        %v4760 = vpop.f32.mrf.mxu0
        %v4761 = vadd.f32 0.0, %v4760
        %v4762 = vpop.f32.mrf.mxu0
        %4763 = vmatprep.mubr.bf16.mxu0 0
        %4764 = vmatmul.mubr.bf16.gmra.mxu0 %v4630
        %v4765 = vpop.f32.mrf.mxu0
        %v4766 = vadd.f32 0.0, %v4765
        %v4767 = vpop.f32.mrf.mxu0
        %v4768 = vpop.f32.mrf.mxu0
        %v4769 = vadd.f32 0.0, %v4768
        %v4770 = vpop.f32.mrf.mxu0
        %4771 = vmatprep.mubr.bf16.mxu0 0
        %4772 = vmatmul.mubr.bf16.gmra.mxu0 %v4631
        %v4773 = vpop.f32.mrf.mxu0
        %v4774 = vadd.f32 0.0, %v4773
        %v4775 = vpop.f32.mrf.mxu0
        %v4776 = vpop.f32.mrf.mxu0
        %v4777 = vadd.f32 0.0, %v4776
        %v4778 = vpop.f32.mrf.mxu0
        %4779 = vmatprep.mubr.bf16.mxu0 0
        %4780 = vmatmul.mubr.bf16.gmra.mxu0 %v4632
        %v4781 = vpop.f32.mrf.mxu0
        %v4782 = vadd.f32 0.0, %v4781
        %v4783 = vpop.f32.mrf.mxu0
        %v4784 = vpop.f32.mrf.mxu0
        %v4785 = vadd.f32 0.0, %v4784
        %v4786 = vpop.f32.mrf.mxu0
        %4787 = vmatprep.mubr.bf16.mxu0 0
        %4788 = vmatmul.mubr.bf16.gmra.mxu0 %v4633
        %v4789 = vpop.f32.mrf.mxu0
        %v4790 = vadd.f32 0.0, %v4789
        %v4791 = vpop.f32.mrf.mxu0
        %v4792 = vpop.f32.mrf.mxu0
        %v4793 = vadd.f32 0.0, %v4792
        %v4794 = vpop.f32.mrf.mxu0
        %4795 = vmatprep.mubr.bf16.mxu0 0
        %4796 = vmatmul.mubr.bf16.gmra.mxu0 %v4634
        %v4797 = vpop.f32.mrf.mxu0
        %v4798 = vadd.f32 0.0, %v4797
        %v4799 = vpop.f32.mrf.mxu0
        %v4800 = vpop.f32.mrf.mxu0
        %v4801 = vadd.f32 0.0, %v4800
        %v4802 = vpop.f32.mrf.mxu0
        %4803 = vmatprep.mubr.bf16.mxu0 0
        %4804 = vmatmul.mubr.bf16.gmra.mxu0 %v4635
        %v4805 = vpop.f32.mrf.mxu0
        %v4806 = vadd.f32 0.0, %v4805
        %v4807 = vpop.f32.mrf.mxu0
        %v4808 = vpop.f32.mrf.mxu0
        %v4809 = vadd.f32 0.0, %v4808
        %v4810 = vpop.f32.mrf.mxu0
        %4811 = vmatprep.mubr.bf16.mxu0 0
        %4812 = vmatmul.mubr.bf16.gmra.mxu0 %v4636
        %v4813 = vpop.f32.mrf.mxu0
        %v4814 = vadd.f32 0.0, %v4813
        %v4815 = vpop.f32.mrf.mxu0
        %v4816 = vpop.f32.mrf.mxu0
        %v4817 = vadd.f32 0.0, %v4816
        %v4818 = vpop.f32.mrf.mxu0
        %4819 = vmatprep.mubr.bf16.mxu0 0
        %4820 = vmatmul.mubr.bf16.gmra.mxu0 %v4637
        %v4821 = vpop.f32.mrf.mxu0
        %v4822 = vadd.f32 0.0, %v4821
        %v4823 = vpop.f32.mrf.mxu0
        %v4824 = vpop.f32.mrf.mxu0
        %v4825 = vadd.f32 0.0, %v4824
        %v4826 = vpop.f32.mrf.mxu0
        %4827 = vmatprep.mubr.bf16.mxu0 0
        %4828 = vmatmul.mubr.bf16.gmra.mxu0 %v4638
        %v4829 = vpop.f32.mrf.mxu0
        %v4830 = vadd.f32 0.0, %v4829
        %v4831 = vpop.f32.mrf.mxu0
        %v4832 = vpop.f32.mrf.mxu0
        %v4833 = vadd.f32 0.0, %v4832
        %v4834 = vpop.f32.mrf.mxu0
        %4835 = vmatprep.mubr.bf16.mxu0 0
        %4836 = vmatmul.mubr.bf16.gmra.mxu0 %v4639
        %v4837 = vpop.f32.mrf.mxu0
        %v4838 = vadd.f32 0.0, %v4837
        %v4839 = vpop.f32.mrf.mxu0
        %v4840 = vpop.f32.mrf.mxu0
        %v4841 = vadd.f32 0.0, %v4840
        %v4842 = vpop.f32.mrf.mxu0
        %4843 = vmatprep.mubr.bf16.mxu0 0
        %4844 = vmatmul.mubr.bf16.gmra.mxu0 %v4640
        %v4845 = vpop.f32.mrf.mxu0
        %v4846 = vadd.f32 0.0, %v4845
        %v4847 = vpop.f32.mrf.mxu0
        %v4848 = vpop.f32.mrf.mxu0
        %v4849 = vadd.f32 0.0, %v4848
        %v4850 = vpop.f32.mrf.mxu0
        %4851 = vmatprep.mubr.bf16.mxu0 0
        %4852 = vmatmul.mubr.bf16.gmra.mxu0 %v4641
        %v4853 = vpop.f32.mrf.mxu0
        %v4854 = vadd.f32 0.0, %v4853
        %v4855 = vpop.f32.mrf.mxu0
        %v4856 = vpop.f32.mrf.mxu0
        %v4857 = vadd.f32 0.0, %v4856
        %v4858 = vpop.f32.mrf.mxu0
        %4859 = vmatprep.mubr.bf16.mxu0 0
        %4860 = vmatmul.mubr.bf16.gmra.mxu0 %v4642
        %v4861 = vpop.f32.mrf.mxu0
        %v4862 = vadd.f32 0.0, %v4861
        %v4863 = vpop.f32.mrf.mxu0
        %v4864 = vpop.f32.mrf.mxu0
        %v4865 = vadd.f32 0.0, %v4864
        %v4866 = vpop.f32.mrf.mxu0
        %4867 = vdwg.mxu0
        %v4868 = vadd.f32 %v4481, %v4742
        %v4869 = vadd.f32 %v4482, %v4745
        %v4870 = vadd.f32 %v4483, %v4750
        %v4871 = vadd.f32 %v4484, %v4753
        %v4872 = vadd.f32 %v4485, %v4758
        %v4873 = vadd.f32 %v4486, %v4761
        %v4874 = vadd.f32 %v4487, %v4766
        %v4875 = vadd.f32 %v4488, %v4769
        %v4876 = vadd.f32 %v4489, %v4774
        %v4877 = vadd.f32 %v4490, %v4777
        %v4878 = vadd.f32 %v4491, %v4782
        %v4879 = vadd.f32 %v4492, %v4785
        %v4880 = vadd.f32 %v4493, %v4790
        %v4881 = vadd.f32 %v4494, %v4793
        %v4882 = vadd.f32 %v4495, %v4798
        %v4883 = vadd.f32 %v4496, %v4801
        %v4884 = vadd.f32 %v4497, %v4806
        %v4885 = vadd.f32 %v4498, %v4809
        %v4886 = vadd.f32 %v4499, %v4814
        %v4887 = vadd.f32 %v4500, %v4817
        %v4888 = vadd.f32 %v4501, %v4822
        %v4889 = vadd.f32 %v4502, %v4825
        %v4890 = vadd.f32 %v4503, %v4830
        %v4891 = vadd.f32 %v4504, %v4833
        %v4892 = vadd.f32 %v4505, %v4838
        %v4893 = vadd.f32 %v4506, %v4841
        %v4894 = vadd.f32 %v4507, %v4846
        %v4895 = vadd.f32 %v4508, %v4849
        %v4896 = vadd.f32 %v4509, %v4854
        %v4897 = vadd.f32 %v4510, %v4857
        %v4898 = vadd.f32 %v4511, %v4862
        %v4899 = vadd.f32 %v4512, %v4865
        %v4900 = vld [vmem:[%s4513] sm:$0xf]
        %v4901 = vld [vmem:[%s4513 + $0x4] sm:$0xf]
        %v4902 = vld [vmem:[%s4513 + $0x8] sm:$0x1]
        %v4903 = vld [vmem:[%s4513 + $0xc] sm:$0xf]
        %v4904 = vld [vmem:[%s4513 + $0x10] sm:$0xf]
        %v4905 = vld [vmem:[%s4513 + $0x14] sm:$0x1]
        %v4906 = vld [vmem:[%s4513 + $0x18] sm:$0xf]
        %v4907 = vld [vmem:[%s4513 + $0x1c] sm:$0xf]
        %v4908 = vld [vmem:[%s4513 + $0x20] sm:$0x1]
        %v4909 = vld [vmem:[%s4513 + $0x24] sm:$0xf]
        %v4910 = vld [vmem:[%s4513 + $0x28] sm:$0xf]
        %v4911 = vld [vmem:[%s4513 + $0x2c] sm:$0x1]
        %v4912 = vld [vmem:[%s4513 + $0x30] sm:$0xf]
        %v4913 = vld [vmem:[%s4513 + $0x34] sm:$0xf]
        %v4914 = vld [vmem:[%s4513 + $0x38] sm:$0x1]
        %v4915 = vld [vmem:[%s4513 + $0x3c] sm:$0xf]
        %v4916 = vld [vmem:[%s4513 + $0x40] sm:$0xf]
        %v4917 = vld [vmem:[%s4513 + $0x44] sm:$0x1]
        %v4918 = vld [vmem:[%s4513 + $0x48] sm:$0xf]
        %v4919 = vld [vmem:[%s4513 + $0x4c] sm:$0xf]
        %v4920 = vld [vmem:[%s4513 + $0x50] sm:$0x1]
        %v4921 = vld [vmem:[%s4513 + $0x54] sm:$0xf]
        %v4922 = vld [vmem:[%s4513 + $0x58] sm:$0xf]
        %v4923 = vld [vmem:[%s4513 + $0x5c] sm:$0x1]
        %v4924 = vld [vmem:[%s4513 + $0x60] sm:$0xf]
        %v4925 = vld [vmem:[%s4513 + $0x64] sm:$0xf]
        %v4926 = vld [vmem:[%s4513 + $0x68] sm:$0x1]
        %v4927 = vld [vmem:[%s4513 + $0x6c] sm:$0xf]
        %v4928 = vld [vmem:[%s4513 + $0x70] sm:$0xf]
        %v4929 = vld [vmem:[%s4513 + $0x74] sm:$0x1]
        %v4930 = vld [vmem:[%s4513 + $0x78] sm:$0xf]
        %v4931 = vld [vmem:[%s4513 + $0x7c] sm:$0xf]
        %v4932 = vld [vmem:[%s4513 + $0x80] sm:$0x1]
        %v4933 = vld [vmem:[%s4513 + $0x84] sm:$0xf]
        %v4934 = vld [vmem:[%s4513 + $0x88] sm:$0xf]
        %v4935 = vld [vmem:[%s4513 + $0x8c] sm:$0x1]
        %v4936 = vld [vmem:[%s4513 + $0x90] sm:$0xf]
        %v4937 = vld [vmem:[%s4513 + $0x94] sm:$0xf]
        %v4938 = vld [vmem:[%s4513 + $0x98] sm:$0x1]
        %v4939 = vld [vmem:[%s4513 + $0x9c] sm:$0xf]
        %v4940 = vld [vmem:[%s4513 + $0xa0] sm:$0xf]
        %v4941 = vld [vmem:[%s4513 + $0xa4] sm:$0x1]
        %v4942 = vld [vmem:[%s4513 + $0xa8] sm:$0xf]
        %v4943 = vld [vmem:[%s4513 + $0xac] sm:$0xf]
        %v4944 = vld [vmem:[%s4513 + $0xb0] sm:$0x1]
        %v4945 = vld [vmem:[%s4513 + $0xb4] sm:$0xf]
        %v4946 = vld [vmem:[%s4513 + $0xb8] sm:$0xf]
        %v4947 = vld [vmem:[%s4513 + $0xbc] sm:$0x1]
        %v4949 = vshrl.u32 %v4900, 16
        %v4951 = vrot.slane %v4949, 4
        %v4952 = vshll.u32 %v4900, 16
        %v4954 = vrot.slane %v4952, 5
        %v4955 = vor.u32 %v4951, %v4954
        %v4956 = vrot.slane %v4955, 4
        %v4958 = vshll.u32 %v4901, 16
        %v4960 = vrot.slane %v4958, 5
        %v4961 = vsel %vm1410, %v4956, %v4960
        %v4962 = vshrl.u32 %v4901, 16
        %v4964 = vrot.slane %v4962, 4
        %v4965 = vor.u32 %v4964, %v4960
        %v4966 = vrot.slane %v4965, 4
        %v4968 = vshll.u32 %v4902, 16
        %v4970 = vrot.slane %v4968, 5
        %v4971 = vsel %vm1410, %v4966, %v4970
        %v4973 = vshrl.u32 %v4903, 16
        %v4975 = vrot.slane %v4973, 4
        %v4976 = vshll.u32 %v4903, 16
        %v4978 = vrot.slane %v4976, 5
        %v4979 = vor.u32 %v4975, %v4978
        %v4980 = vrot.slane %v4979, 4
        %v4982 = vshll.u32 %v4904, 16
        %v4984 = vrot.slane %v4982, 5
        %v4985 = vsel %vm1410, %v4980, %v4984
        %v4986 = vshrl.u32 %v4904, 16
        %v4988 = vrot.slane %v4986, 4
        %v4989 = vor.u32 %v4988, %v4984
        %v4990 = vrot.slane %v4989, 4
        %v4992 = vshll.u32 %v4905, 16
        %v4994 = vrot.slane %v4992, 5
        %v4995 = vsel %vm1410, %v4990, %v4994
        %v4997 = vshrl.u32 %v4906, 16
        %v4999 = vrot.slane %v4997, 4
        %v5000 = vshll.u32 %v4906, 16
        %v5002 = vrot.slane %v5000, 5
        %v5003 = vor.u32 %v4999, %v5002
        %v5004 = vrot.slane %v5003, 4
        %v5006 = vshll.u32 %v4907, 16
        %v5008 = vrot.slane %v5006, 5
        %v5009 = vsel %vm1410, %v5004, %v5008
        %v5010 = vshrl.u32 %v4907, 16
        %v5012 = vrot.slane %v5010, 4
        %v5013 = vor.u32 %v5012, %v5008
        %v5014 = vrot.slane %v5013, 4
        %v5016 = vshll.u32 %v4908, 16
        %v5018 = vrot.slane %v5016, 5
        %v5019 = vsel %vm1410, %v5014, %v5018
        %v5021 = vshrl.u32 %v4909, 16
        %v5023 = vrot.slane %v5021, 4
        %v5024 = vshll.u32 %v4909, 16
        %v5026 = vrot.slane %v5024, 5
        %v5027 = vor.u32 %v5023, %v5026
        %v5028 = vrot.slane %v5027, 4
        %v5030 = vshll.u32 %v4910, 16
        %v5032 = vrot.slane %v5030, 5
        %v5033 = vsel %vm1410, %v5028, %v5032
        %v5034 = vshrl.u32 %v4910, 16
        %v5036 = vrot.slane %v5034, 4
        %v5037 = vor.u32 %v5036, %v5032
        %v5038 = vrot.slane %v5037, 4
        %v5040 = vshll.u32 %v4911, 16
        %v5042 = vrot.slane %v5040, 5
        %v5043 = vsel %vm1410, %v5038, %v5042
        %v5045 = vshrl.u32 %v4912, 16
        %v5047 = vrot.slane %v5045, 4
        %v5048 = vshll.u32 %v4912, 16
        %v5050 = vrot.slane %v5048, 5
        %v5051 = vor.u32 %v5047, %v5050
        %v5052 = vrot.slane %v5051, 4
        %v5054 = vshll.u32 %v4913, 16
        %v5056 = vrot.slane %v5054, 5
        %v5057 = vsel %vm1410, %v5052, %v5056
        %v5058 = vshrl.u32 %v4913, 16
        %v5060 = vrot.slane %v5058, 4
        %v5061 = vor.u32 %v5060, %v5056
        %v5062 = vrot.slane %v5061, 4
        %v5064 = vshll.u32 %v4914, 16
        %v5066 = vrot.slane %v5064, 5
        %v5067 = vsel %vm1410, %v5062, %v5066
        %v5069 = vshrl.u32 %v4915, 16
        %v5071 = vrot.slane %v5069, 4
        %v5072 = vshll.u32 %v4915, 16
        %v5074 = vrot.slane %v5072, 5
        %v5075 = vor.u32 %v5071, %v5074
        %v5076 = vrot.slane %v5075, 4
        %v5078 = vshll.u32 %v4916, 16
        %v5080 = vrot.slane %v5078, 5
        %v5081 = vsel %vm1410, %v5076, %v5080
        %v5082 = vshrl.u32 %v4916, 16
        %v5084 = vrot.slane %v5082, 4
        %v5085 = vor.u32 %v5084, %v5080
        %v5086 = vrot.slane %v5085, 4
        %v5088 = vshll.u32 %v4917, 16
        %v5090 = vrot.slane %v5088, 5
        %v5091 = vsel %vm1410, %v5086, %v5090
        %v5093 = vshrl.u32 %v4918, 16
        %v5095 = vrot.slane %v5093, 4
        %v5096 = vshll.u32 %v4918, 16
        %v5098 = vrot.slane %v5096, 5
        %v5099 = vor.u32 %v5095, %v5098
        %v5100 = vrot.slane %v5099, 4
        %v5102 = vshll.u32 %v4919, 16
        %v5104 = vrot.slane %v5102, 5
        %v5105 = vsel %vm1410, %v5100, %v5104
        %v5106 = vshrl.u32 %v4919, 16
        %v5108 = vrot.slane %v5106, 4
        %v5109 = vor.u32 %v5108, %v5104
        %v5110 = vrot.slane %v5109, 4
        %v5112 = vshll.u32 %v4920, 16
        %v5114 = vrot.slane %v5112, 5
        %v5115 = vsel %vm1410, %v5110, %v5114
        %v5117 = vshrl.u32 %v4921, 16
        %v5119 = vrot.slane %v5117, 4
        %v5120 = vshll.u32 %v4921, 16
        %v5122 = vrot.slane %v5120, 5
        %v5123 = vor.u32 %v5119, %v5122
        %v5124 = vrot.slane %v5123, 4
        %v5126 = vshll.u32 %v4922, 16
        %v5128 = vrot.slane %v5126, 5
        %v5129 = vsel %vm1410, %v5124, %v5128
        %v5130 = vshrl.u32 %v4922, 16
        %v5132 = vrot.slane %v5130, 4
        %v5133 = vor.u32 %v5132, %v5128
        %v5134 = vrot.slane %v5133, 4
        %v5136 = vshll.u32 %v4923, 16
        %v5138 = vrot.slane %v5136, 5
        %v5139 = vsel %vm1410, %v5134, %v5138
        %v5141 = vshrl.u32 %v4924, 16
        %v5143 = vrot.slane %v5141, 4
        %v5144 = vshll.u32 %v4924, 16
        %v5146 = vrot.slane %v5144, 5
        %v5147 = vor.u32 %v5143, %v5146
        %v5148 = vrot.slane %v5147, 4
        %v5150 = vshll.u32 %v4925, 16
        %v5152 = vrot.slane %v5150, 5
        %v5153 = vsel %vm1410, %v5148, %v5152
        %v5154 = vshrl.u32 %v4925, 16
        %v5156 = vrot.slane %v5154, 4
        %v5157 = vor.u32 %v5156, %v5152
        %v5158 = vrot.slane %v5157, 4
        %v5160 = vshll.u32 %v4926, 16
        %v5162 = vrot.slane %v5160, 5
        %v5163 = vsel %vm1410, %v5158, %v5162
        %v5165 = vshrl.u32 %v4927, 16
        %v5167 = vrot.slane %v5165, 4
        %v5168 = vshll.u32 %v4927, 16
        %v5170 = vrot.slane %v5168, 5
        %v5171 = vor.u32 %v5167, %v5170
        %v5172 = vrot.slane %v5171, 4
        %v5174 = vshll.u32 %v4928, 16
        %v5176 = vrot.slane %v5174, 5
        %v5177 = vsel %vm1410, %v5172, %v5176
        %v5178 = vshrl.u32 %v4928, 16
        %v5180 = vrot.slane %v5178, 4
        %v5181 = vor.u32 %v5180, %v5176
        %v5182 = vrot.slane %v5181, 4
        %v5184 = vshll.u32 %v4929, 16
        %v5186 = vrot.slane %v5184, 5
        %v5187 = vsel %vm1410, %v5182, %v5186
        %v5189 = vshrl.u32 %v4930, 16
        %v5191 = vrot.slane %v5189, 4
        %v5192 = vshll.u32 %v4930, 16
        %v5194 = vrot.slane %v5192, 5
        %v5195 = vor.u32 %v5191, %v5194
        %v5196 = vrot.slane %v5195, 4
        %v5198 = vshll.u32 %v4931, 16
        %v5200 = vrot.slane %v5198, 5
        %v5201 = vsel %vm1410, %v5196, %v5200
        %v5202 = vshrl.u32 %v4931, 16
        %v5204 = vrot.slane %v5202, 4
        %v5205 = vor.u32 %v5204, %v5200
        %v5206 = vrot.slane %v5205, 4
        %v5208 = vshll.u32 %v4932, 16
        %v5210 = vrot.slane %v5208, 5
        %v5211 = vsel %vm1410, %v5206, %v5210
        %v5213 = vshrl.u32 %v4933, 16
        %v5215 = vrot.slane %v5213, 4
        %v5216 = vshll.u32 %v4933, 16
        %v5218 = vrot.slane %v5216, 5
        %v5219 = vor.u32 %v5215, %v5218
        %v5220 = vrot.slane %v5219, 4
        %v5222 = vshll.u32 %v4934, 16
        %v5224 = vrot.slane %v5222, 5
        %v5225 = vsel %vm1410, %v5220, %v5224
        %v5226 = vshrl.u32 %v4934, 16
        %v5228 = vrot.slane %v5226, 4
        %v5229 = vor.u32 %v5228, %v5224
        %v5230 = vrot.slane %v5229, 4
        %v5232 = vshll.u32 %v4935, 16
        %v5234 = vrot.slane %v5232, 5
        %v5235 = vsel %vm1410, %v5230, %v5234
        %v5237 = vshrl.u32 %v4936, 16
        %v5239 = vrot.slane %v5237, 4
        %v5240 = vshll.u32 %v4936, 16
        %v5242 = vrot.slane %v5240, 5
        %v5243 = vor.u32 %v5239, %v5242
        %v5244 = vrot.slane %v5243, 4
        %v5246 = vshll.u32 %v4937, 16
        %v5248 = vrot.slane %v5246, 5
        %v5249 = vsel %vm1410, %v5244, %v5248
        %v5250 = vshrl.u32 %v4937, 16
        %v5252 = vrot.slane %v5250, 4
        %v5253 = vor.u32 %v5252, %v5248
        %v5254 = vrot.slane %v5253, 4
        %v5256 = vshll.u32 %v4938, 16
        %v5258 = vrot.slane %v5256, 5
        %v5259 = vsel %vm1410, %v5254, %v5258
        %v5261 = vshrl.u32 %v4939, 16
        %v5263 = vrot.slane %v5261, 4
        %v5264 = vshll.u32 %v4939, 16
        %v5266 = vrot.slane %v5264, 5
        %v5267 = vor.u32 %v5263, %v5266
        %v5268 = vrot.slane %v5267, 4
        %v5270 = vshll.u32 %v4940, 16
        %v5272 = vrot.slane %v5270, 5
        %v5273 = vsel %vm1410, %v5268, %v5272
        %v5274 = vshrl.u32 %v4940, 16
        %v5276 = vrot.slane %v5274, 4
        %v5277 = vor.u32 %v5276, %v5272
        %v5278 = vrot.slane %v5277, 4
        %v5280 = vshll.u32 %v4941, 16
        %v5282 = vrot.slane %v5280, 5
        %v5283 = vsel %vm1410, %v5278, %v5282
        %v5285 = vshrl.u32 %v4942, 16
        %v5287 = vrot.slane %v5285, 4
        %v5288 = vshll.u32 %v4942, 16
        %v5290 = vrot.slane %v5288, 5
        %v5291 = vor.u32 %v5287, %v5290
        %v5292 = vrot.slane %v5291, 4
        %v5294 = vshll.u32 %v4943, 16
        %v5296 = vrot.slane %v5294, 5
        %v5297 = vsel %vm1410, %v5292, %v5296
        %v5298 = vshrl.u32 %v4943, 16
        %v5300 = vrot.slane %v5298, 4
        %v5301 = vor.u32 %v5300, %v5296
        %v5302 = vrot.slane %v5301, 4
        %v5304 = vshll.u32 %v4944, 16
        %v5306 = vrot.slane %v5304, 5
        %v5307 = vsel %vm1410, %v5302, %v5306
        %v5309 = vshrl.u32 %v4945, 16
        %v5311 = vrot.slane %v5309, 4
        %v5312 = vshll.u32 %v4945, 16
        %v5314 = vrot.slane %v5312, 5
        %v5315 = vor.u32 %v5311, %v5314
        %v5316 = vrot.slane %v5315, 4
        %v5318 = vshll.u32 %v4946, 16
        %v5320 = vrot.slane %v5318, 5
        %v5321 = vsel %vm1410, %v5316, %v5320
        %v5322 = vshrl.u32 %v4946, 16
        %v5324 = vrot.slane %v5322, 4
        %v5325 = vor.u32 %v5324, %v5320
        %v5326 = vrot.slane %v5325, 4
        %v5328 = vshll.u32 %v4947, 16
        %v5330 = vrot.slane %v5328, 5
        %v5331 = vsel %vm1410, %v5326, %v5330
        %s5332 = scalar_lea.vmem [#allocation6], 448
        %v5333 = vld [vmem:[%s5332] sm:$0xf]
        %v5334 = vld [vmem:[%s5332 + $0x4] sm:$0xf]
        %v5335 = vld [vmem:[%s5332 + $0x8] sm:$0xf]
        %v5336 = vld [vmem:[%s5332 + $0xc] sm:$0xf]
        %v5337 = vld [vmem:[%s5332 + $0x10] sm:$0xf]
        %v5338 = vld [vmem:[%s5332 + $0x14] sm:$0xf]
        %v5339 = vld [vmem:[%s5332 + $0x18] sm:$0xf]
        %v5340 = vld [vmem:[%s5332 + $0x1c] sm:$0xf]
        %v5341 = vld [vmem:[%s5332 + $0x20] sm:$0xf]
        %v5342 = vld [vmem:[%s5332 + $0x24] sm:$0xf]
        %v5343 = vld [vmem:[%s5332 + $0x28] sm:$0xf]
        %v5344 = vld [vmem:[%s5332 + $0x2c] sm:$0xf]
        %v5345 = vld [vmem:[%s5332 + $0x30] sm:$0xf]
        %v5346 = vld [vmem:[%s5332 + $0x34] sm:$0xf]
        %v5347 = vld [vmem:[%s5332 + $0x38] sm:$0xf]
        %v5348 = vld [vmem:[%s5332 + $0x3c] sm:$0xf]
        %v5349 = vunpack.c.l.b16 %v4961
        %v5350 = vunpack.c.l.b16 %v4971
        %v5351 = vunpack.c.l.b16 %v4985
        %v5352 = vunpack.c.l.b16 %v4995
        %v5353 = vunpack.c.l.b16 %v5009
        %v5354 = vunpack.c.l.b16 %v5019
        %v5355 = vunpack.c.l.b16 %v5033
        %v5356 = vunpack.c.l.b16 %v5043
        %v5357 = vunpack.c.l.b16 %v5057
        %v5358 = vunpack.c.l.b16 %v5067
        %v5359 = vunpack.c.l.b16 %v5081
        %v5360 = vunpack.c.l.b16 %v5091
        %v5361 = vunpack.c.l.b16 %v5105
        %v5362 = vunpack.c.l.b16 %v5115
        %v5363 = vunpack.c.l.b16 %v5129
        %v5364 = vunpack.c.l.b16 %v5139
        %v5365 = vunpack.c.l.b16 %v5153
        %v5366 = vunpack.c.l.b16 %v5163
        %v5367 = vunpack.c.l.b16 %v5177
        %v5368 = vunpack.c.l.b16 %v5187
        %v5369 = vunpack.c.l.b16 %v5201
        %v5370 = vunpack.c.l.b16 %v5211
        %v5371 = vunpack.c.l.b16 %v5225
        %v5372 = vunpack.c.l.b16 %v5235
        %v5373 = vunpack.c.l.b16 %v5249
        %v5374 = vunpack.c.l.b16 %v5259
        %v5375 = vunpack.c.l.b16 %v5273
        %v5376 = vunpack.c.l.b16 %v5283
        %v5377 = vunpack.c.l.b16 %v5297
        %v5378 = vunpack.c.l.b16 %v5307
        %v5379 = vunpack.c.l.b16 %v5321
        %v5380 = vunpack.c.l.b16 %v5331
        %v5381 = vpack.c.b16 %v5350, %v5349
        %v5382 = vpack.c.b16 %v5352, %v5351
        %v5383 = vpack.c.b16 %v5354, %v5353
        %v5384 = vpack.c.b16 %v5356, %v5355
        %v5385 = vpack.c.b16 %v5358, %v5357
        %v5386 = vpack.c.b16 %v5360, %v5359
        %v5387 = vpack.c.b16 %v5362, %v5361
        %v5388 = vpack.c.b16 %v5364, %v5363
        %v5389 = vpack.c.b16 %v5366, %v5365
        %v5390 = vpack.c.b16 %v5368, %v5367
        %v5391 = vpack.c.b16 %v5370, %v5369
        %v5392 = vpack.c.b16 %v5372, %v5371
        %v5393 = vpack.c.b16 %v5374, %v5373
        %v5394 = vpack.c.b16 %v5376, %v5375
        %v5395 = vpack.c.b16 %v5378, %v5377
        %v5396 = vpack.c.b16 %v5380, %v5379
        %v5429 = vunpack.c.l.b16 %v5333
        %v5430 = vunpack.c.l.b16 %v5334
        %v5431 = vunpack.c.l.b16 %v5335
        %v5432 = vunpack.c.l.b16 %v5336
        %v5433 = vunpack.c.l.b16 %v5337
        %v5434 = vunpack.c.l.b16 %v5338
        %v5435 = vunpack.c.l.b16 %v5339
        %v5436 = vunpack.c.l.b16 %v5340
        %v5437 = vunpack.c.l.b16 %v5341
        %v5438 = vunpack.c.l.b16 %v5342
        %v5439 = vunpack.c.l.b16 %v5343
        %v5440 = vunpack.c.l.b16 %v5344
        %v5441 = vunpack.c.l.b16 %v5345
        %v5442 = vunpack.c.l.b16 %v5346
        %v5443 = vunpack.c.l.b16 %v5347
        %v5444 = vunpack.c.l.b16 %v5348
        %v5445 = vpack.c.b16 %v5430, %v5429
        %v5446 = vpack.c.b16 %v5432, %v5431
        %v5447 = vpack.c.b16 %v5434, %v5433
        %v5448 = vpack.c.b16 %v5436, %v5435
        %v5449 = vpack.c.b16 %v5438, %v5437
        %v5450 = vpack.c.b16 %v5440, %v5439
        %v5451 = vpack.c.b16 %v5442, %v5441
        %v5452 = vpack.c.b16 %v5444, %v5443
        %5461 = vmatprep.subr.bf16.mxu0 0
        %5462 = vmatpush1.bf16.msra.mxu0 %v5452
        %5463 = vmatprep.subr.bf16.mxu0 0
        %5464 = vmatpush1.bf16.msra.mxu0 %v5451
        %5465 = vmatprep.subr.bf16.mxu0 0
        %5466 = vmatpush1.bf16.msra.mxu0 %v5450
        %5467 = vmatprep.subr.bf16.mxu0 0
        %5468 = vmatpush1.bf16.msra.mxu0 %v5449
        %5469 = vmatprep.subr.bf16.mxu0 0
        %5470 = vmatpush1.bf16.msra.mxu0 %v5448
        %5471 = vmatprep.subr.bf16.mxu0 0
        %5472 = vmatpush1.bf16.msra.mxu0 %v5447
        %5473 = vmatprep.subr.bf16.mxu0 0
        %5474 = vmatpush1.bf16.msra.mxu0 %v5446
        %5475 = vmatprep.subr.bf16.mxu0 0
        %5476 = vmatpush1.bf16.msra.mxu0 %v5445
        %5477 = vmatprep.subr.bf16.mxu0 0
        %5478 = vmatpush2.bf16.msra.mxu0 0
        %5479 = vmatprep.subr.bf16.mxu0 0
        %5480 = vmatpush2.bf16.msra.mxu0 0
        %5481 = vmatprep.subr.bf16.mxu0 0
        %5482 = vmatpush2.bf16.msra.mxu0 0
        %5483 = vmatprep.subr.bf16.mxu0 0
        %5484 = vmatpush2.bf16.msra.mxu0 0
        %5485 = vmatprep.subr.bf16.mxu0 0
        %5486 = vmatpush2.bf16.msra.mxu0 0
        %5487 = vmatprep.subr.bf16.mxu0 0
        %5488 = vmatpush2.bf16.msra.mxu0 0
        %5489 = vmatprep.subr.bf16.mxu0 0
        %5490 = vmatpush2.bf16.msra.mxu0 0
        %5491 = vmatprep.subr.bf16.mxu0 0
        %5492 = vmatpush2.bf16.msra.mxu0 0
        %5493 = vmatprep.mubr.bf16.mxu0 0
        %5494 = vmatmul.mubr.bf16.gmra.mxu0 %v5381
        %v5495 = vpop.f32.mrf.mxu0
        %v5496 = vadd.f32 0.0, %v5495
        %v5497 = vpop.f32.mrf.mxu0
        %v5498 = vpop.f32.mrf.mxu0
        %v5499 = vadd.f32 0.0, %v5498
        %v5500 = vpop.f32.mrf.mxu0
        %5501 = vmatprep.mubr.bf16.mxu0 0
        %5502 = vmatmul.mubr.bf16.gmra.mxu0 %v5382
        %v5503 = vpop.f32.mrf.mxu0
        %v5504 = vadd.f32 0.0, %v5503
        %v5505 = vpop.f32.mrf.mxu0
        %v5506 = vpop.f32.mrf.mxu0
        %v5507 = vadd.f32 0.0, %v5506
        %v5508 = vpop.f32.mrf.mxu0
        %5509 = vmatprep.mubr.bf16.mxu0 0
        %5510 = vmatmul.mubr.bf16.gmra.mxu0 %v5383
        %v5511 = vpop.f32.mrf.mxu0
        %v5512 = vadd.f32 0.0, %v5511
        %v5513 = vpop.f32.mrf.mxu0
        %v5514 = vpop.f32.mrf.mxu0
        %v5515 = vadd.f32 0.0, %v5514
        %v5516 = vpop.f32.mrf.mxu0
        %5517 = vmatprep.mubr.bf16.mxu0 0
        %5518 = vmatmul.mubr.bf16.gmra.mxu0 %v5384
        %v5519 = vpop.f32.mrf.mxu0
        %v5520 = vadd.f32 0.0, %v5519
        %v5521 = vpop.f32.mrf.mxu0
        %v5522 = vpop.f32.mrf.mxu0
        %v5523 = vadd.f32 0.0, %v5522
        %v5524 = vpop.f32.mrf.mxu0
        %5525 = vmatprep.mubr.bf16.mxu0 0
        %5526 = vmatmul.mubr.bf16.gmra.mxu0 %v5385
        %v5527 = vpop.f32.mrf.mxu0
        %v5528 = vadd.f32 0.0, %v5527
        %v5529 = vpop.f32.mrf.mxu0
        %v5530 = vpop.f32.mrf.mxu0
        %v5531 = vadd.f32 0.0, %v5530
        %v5532 = vpop.f32.mrf.mxu0
        %5533 = vmatprep.mubr.bf16.mxu0 0
        %5534 = vmatmul.mubr.bf16.gmra.mxu0 %v5386
        %v5535 = vpop.f32.mrf.mxu0
        %v5536 = vadd.f32 0.0, %v5535
        %v5537 = vpop.f32.mrf.mxu0
        %v5538 = vpop.f32.mrf.mxu0
        %v5539 = vadd.f32 0.0, %v5538
        %v5540 = vpop.f32.mrf.mxu0
        %5541 = vmatprep.mubr.bf16.mxu0 0
        %5542 = vmatmul.mubr.bf16.gmra.mxu0 %v5387
        %v5543 = vpop.f32.mrf.mxu0
        %v5544 = vadd.f32 0.0, %v5543
        %v5545 = vpop.f32.mrf.mxu0
        %v5546 = vpop.f32.mrf.mxu0
        %v5547 = vadd.f32 0.0, %v5546
        %v5548 = vpop.f32.mrf.mxu0
        %5549 = vmatprep.mubr.bf16.mxu0 0
        %5550 = vmatmul.mubr.bf16.gmra.mxu0 %v5388
        %v5551 = vpop.f32.mrf.mxu0
        %v5552 = vadd.f32 0.0, %v5551
        %v5553 = vpop.f32.mrf.mxu0
        %v5554 = vpop.f32.mrf.mxu0
        %v5555 = vadd.f32 0.0, %v5554
        %v5556 = vpop.f32.mrf.mxu0
        %5557 = vmatprep.mubr.bf16.mxu0 0
        %5558 = vmatmul.mubr.bf16.gmra.mxu0 %v5389
        %v5559 = vpop.f32.mrf.mxu0
        %v5560 = vadd.f32 0.0, %v5559
        %v5561 = vpop.f32.mrf.mxu0
        %v5562 = vpop.f32.mrf.mxu0
        %v5563 = vadd.f32 0.0, %v5562
        %v5564 = vpop.f32.mrf.mxu0
        %5565 = vmatprep.mubr.bf16.mxu0 0
        %5566 = vmatmul.mubr.bf16.gmra.mxu0 %v5390
        %v5567 = vpop.f32.mrf.mxu0
        %v5568 = vadd.f32 0.0, %v5567
        %v5569 = vpop.f32.mrf.mxu0
        %v5570 = vpop.f32.mrf.mxu0
        %v5571 = vadd.f32 0.0, %v5570
        %v5572 = vpop.f32.mrf.mxu0
        %5573 = vmatprep.mubr.bf16.mxu0 0
        %5574 = vmatmul.mubr.bf16.gmra.mxu0 %v5391
        %v5575 = vpop.f32.mrf.mxu0
        %v5576 = vadd.f32 0.0, %v5575
        %v5577 = vpop.f32.mrf.mxu0
        %v5578 = vpop.f32.mrf.mxu0
        %v5579 = vadd.f32 0.0, %v5578
        %v5580 = vpop.f32.mrf.mxu0
        %5581 = vmatprep.mubr.bf16.mxu0 0
        %5582 = vmatmul.mubr.bf16.gmra.mxu0 %v5392
        %v5583 = vpop.f32.mrf.mxu0
        %v5584 = vadd.f32 0.0, %v5583
        %v5585 = vpop.f32.mrf.mxu0
        %v5586 = vpop.f32.mrf.mxu0
        %v5587 = vadd.f32 0.0, %v5586
        %v5588 = vpop.f32.mrf.mxu0
        %5589 = vmatprep.mubr.bf16.mxu0 0
        %5590 = vmatmul.mubr.bf16.gmra.mxu0 %v5393
        %v5591 = vpop.f32.mrf.mxu0
        %v5592 = vadd.f32 0.0, %v5591
        %v5593 = vpop.f32.mrf.mxu0
        %v5594 = vpop.f32.mrf.mxu0
        %v5595 = vadd.f32 0.0, %v5594
        %v5596 = vpop.f32.mrf.mxu0
        %5597 = vmatprep.mubr.bf16.mxu0 0
        %5598 = vmatmul.mubr.bf16.gmra.mxu0 %v5394
        %v5599 = vpop.f32.mrf.mxu0
        %v5600 = vadd.f32 0.0, %v5599
        %v5601 = vpop.f32.mrf.mxu0
        %v5602 = vpop.f32.mrf.mxu0
        %v5603 = vadd.f32 0.0, %v5602
        %v5604 = vpop.f32.mrf.mxu0
        %5605 = vmatprep.mubr.bf16.mxu0 0
        %5606 = vmatmul.mubr.bf16.gmra.mxu0 %v5395
        %v5607 = vpop.f32.mrf.mxu0
        %v5608 = vadd.f32 0.0, %v5607
        %v5609 = vpop.f32.mrf.mxu0
        %v5610 = vpop.f32.mrf.mxu0
        %v5611 = vadd.f32 0.0, %v5610
        %v5612 = vpop.f32.mrf.mxu0
        %5613 = vmatprep.mubr.bf16.mxu0 0
        %5614 = vmatmul.mubr.bf16.gmra.mxu0 %v5396
        %v5615 = vpop.f32.mrf.mxu0
        %v5616 = vadd.f32 0.0, %v5615
        %v5617 = vpop.f32.mrf.mxu0
        %v5618 = vpop.f32.mrf.mxu0
        %v5619 = vadd.f32 0.0, %v5618
        %v5620 = vpop.f32.mrf.mxu0
        %5621 = vdwg.mxu0
        %v5622 = vadd.f32 %v4868, %v5496
        %v5623 = vadd.f32 %v4869, %v5499
        %v5624 = vadd.f32 %v4870, %v5504
        %v5625 = vadd.f32 %v4871, %v5507
        %v5626 = vadd.f32 %v4872, %v5512
        %v5627 = vadd.f32 %v4873, %v5515
        %v5628 = vadd.f32 %v4874, %v5520
        %v5629 = vadd.f32 %v4875, %v5523
        %v5630 = vadd.f32 %v4876, %v5528
        %v5631 = vadd.f32 %v4877, %v5531
        %v5632 = vadd.f32 %v4878, %v5536
        %v5633 = vadd.f32 %v4879, %v5539
        %v5634 = vadd.f32 %v4880, %v5544
        %v5635 = vadd.f32 %v4881, %v5547
        %v5636 = vadd.f32 %v4882, %v5552
        %v5637 = vadd.f32 %v4883, %v5555
        %v5638 = vadd.f32 %v4884, %v5560
        %v5639 = vadd.f32 %v4885, %v5563
        %v5640 = vadd.f32 %v4886, %v5568
        %v5641 = vadd.f32 %v4887, %v5571
        %v5642 = vadd.f32 %v4888, %v5576
        %v5643 = vadd.f32 %v4889, %v5579
        %v5644 = vadd.f32 %v4890, %v5584
        %v5645 = vadd.f32 %v4891, %v5587
        %v5646 = vadd.f32 %v4892, %v5592
        %v5647 = vadd.f32 %v4893, %v5595
        %v5648 = vadd.f32 %v4894, %v5600
        %v5649 = vadd.f32 %v4895, %v5603
        %v5650 = vadd.f32 %v4896, %v5608
        %v5651 = vadd.f32 %v4897, %v5611
        %v5652 = vadd.f32 %v4898, %v5616
        %v5653 = vadd.f32 %v4899, %v5619
        %v5654 = vld [vmem:[%s4513] sm:$0xe]
        %v5655 = vld [vmem:[%s4513 + $0xc] sm:$0xe]
        %v5656 = vld [vmem:[%s4513 + $0x18] sm:$0xe]
        %v5657 = vld [vmem:[%s4513 + $0x24] sm:$0xe]
        %v5658 = vld [vmem:[%s4513 + $0x30] sm:$0xe]
        %v5659 = vld [vmem:[%s4513 + $0x3c] sm:$0xe]
        %v5660 = vld [vmem:[%s4513 + $0x48] sm:$0xe]
        %v5661 = vld [vmem:[%s4513 + $0x54] sm:$0xe]
        %v5662 = vld [vmem:[%s4513 + $0x60] sm:$0xe]
        %v5663 = vld [vmem:[%s4513 + $0x6c] sm:$0xe]
        %v5664 = vld [vmem:[%s4513 + $0x78] sm:$0xe]
        %v5665 = vld [vmem:[%s4513 + $0x84] sm:$0xe]
        %v5666 = vld [vmem:[%s4513 + $0x90] sm:$0xe]
        %v5667 = vld [vmem:[%s4513 + $0x9c] sm:$0xe]
        %v5668 = vld [vmem:[%s4513 + $0xa8] sm:$0xe]
        %v5669 = vld [vmem:[%s4513 + $0xb4] sm:$0xe]
        %v5718 = vrot.slane %v5654, 5
        %v5719 = vrot.slane %v5718, 4
        %v5720 = vrot.slane %v4901, 5
        %v5721 = vsel %vm2440, %v5719, %v5720
        %v5722 = vrot.slane %v5720, 4
        %v5723 = vrot.slane %v4902, 5
        %v5724 = vsel %vm2440, %v5722, %v5723
        %v5725 = vrot.slane %v5655, 5
        %v5726 = vrot.slane %v5725, 4
        %v5727 = vrot.slane %v4904, 5
        %v5728 = vsel %vm2440, %v5726, %v5727
        %v5729 = vrot.slane %v5727, 4
        %v5730 = vrot.slane %v4905, 5
        %v5731 = vsel %vm2440, %v5729, %v5730
        %v5732 = vrot.slane %v5656, 5
        %v5733 = vrot.slane %v5732, 4
        %v5734 = vrot.slane %v4907, 5
        %v5735 = vsel %vm2440, %v5733, %v5734
        %v5736 = vrot.slane %v5734, 4
        %v5737 = vrot.slane %v4908, 5
        %v5738 = vsel %vm2440, %v5736, %v5737
        %v5739 = vrot.slane %v5657, 5
        %v5740 = vrot.slane %v5739, 4
        %v5741 = vrot.slane %v4910, 5
        %v5742 = vsel %vm2440, %v5740, %v5741
        %v5743 = vrot.slane %v5741, 4
        %v5744 = vrot.slane %v4911, 5
        %v5745 = vsel %vm2440, %v5743, %v5744
        %v5746 = vrot.slane %v5658, 5
        %v5747 = vrot.slane %v5746, 4
        %v5748 = vrot.slane %v4913, 5
        %v5749 = vsel %vm2440, %v5747, %v5748
        %v5750 = vrot.slane %v5748, 4
        %v5751 = vrot.slane %v4914, 5
        %v5752 = vsel %vm2440, %v5750, %v5751
        %v5753 = vrot.slane %v5659, 5
        %v5754 = vrot.slane %v5753, 4
        %v5755 = vrot.slane %v4916, 5
        %v5756 = vsel %vm2440, %v5754, %v5755
        %v5757 = vrot.slane %v5755, 4
        %v5758 = vrot.slane %v4917, 5
        %v5759 = vsel %vm2440, %v5757, %v5758
        %v5760 = vrot.slane %v5660, 5
        %v5761 = vrot.slane %v5760, 4
        %v5762 = vrot.slane %v4919, 5
        %v5763 = vsel %vm2440, %v5761, %v5762
        %v5764 = vrot.slane %v5762, 4
        %v5765 = vrot.slane %v4920, 5
        %v5766 = vsel %vm2440, %v5764, %v5765
        %v5767 = vrot.slane %v5661, 5
        %v5768 = vrot.slane %v5767, 4
        %v5769 = vrot.slane %v4922, 5
        %v5770 = vsel %vm2440, %v5768, %v5769
        %v5771 = vrot.slane %v5769, 4
        %v5772 = vrot.slane %v4923, 5
        %v5773 = vsel %vm2440, %v5771, %v5772
        %v5774 = vrot.slane %v5662, 5
        %v5775 = vrot.slane %v5774, 4
        %v5776 = vrot.slane %v4925, 5
        %v5777 = vsel %vm2440, %v5775, %v5776
        %v5778 = vrot.slane %v5776, 4
        %v5779 = vrot.slane %v4926, 5
        %v5780 = vsel %vm2440, %v5778, %v5779
        %v5781 = vrot.slane %v5663, 5
        %v5782 = vrot.slane %v5781, 4
        %v5783 = vrot.slane %v4928, 5
        %v5784 = vsel %vm2440, %v5782, %v5783
        %v5785 = vrot.slane %v5783, 4
        %v5786 = vrot.slane %v4929, 5
        %v5787 = vsel %vm2440, %v5785, %v5786
        %v5788 = vrot.slane %v5664, 5
        %v5789 = vrot.slane %v5788, 4
        %v5790 = vrot.slane %v4931, 5
        %v5791 = vsel %vm2440, %v5789, %v5790
        %v5792 = vrot.slane %v5790, 4
        %v5793 = vrot.slane %v4932, 5
        %v5794 = vsel %vm2440, %v5792, %v5793
        %v5795 = vrot.slane %v5665, 5
        %v5796 = vrot.slane %v5795, 4
        %v5797 = vrot.slane %v4934, 5
        %v5798 = vsel %vm2440, %v5796, %v5797
        %v5799 = vrot.slane %v5797, 4
        %v5800 = vrot.slane %v4935, 5
        %v5801 = vsel %vm2440, %v5799, %v5800
        %v5802 = vrot.slane %v5666, 5
        %v5803 = vrot.slane %v5802, 4
        %v5804 = vrot.slane %v4937, 5
        %v5805 = vsel %vm2440, %v5803, %v5804
        %v5806 = vrot.slane %v5804, 4
        %v5807 = vrot.slane %v4938, 5
        %v5808 = vsel %vm2440, %v5806, %v5807
        %v5809 = vrot.slane %v5667, 5
        %v5810 = vrot.slane %v5809, 4
        %v5811 = vrot.slane %v4940, 5
        %v5812 = vsel %vm2440, %v5810, %v5811
        %v5813 = vrot.slane %v5811, 4
        %v5814 = vrot.slane %v4941, 5
        %v5815 = vsel %vm2440, %v5813, %v5814
        %v5816 = vrot.slane %v5668, 5
        %v5817 = vrot.slane %v5816, 4
        %v5818 = vrot.slane %v4943, 5
        %v5819 = vsel %vm2440, %v5817, %v5818
        %v5820 = vrot.slane %v5818, 4
        %v5821 = vrot.slane %v4944, 5
        %v5822 = vsel %vm2440, %v5820, %v5821
        %v5823 = vrot.slane %v5669, 5
        %v5824 = vrot.slane %v5823, 4
        %v5825 = vrot.slane %v4946, 5
        %v5826 = vsel %vm2440, %v5824, %v5825
        %v5827 = vrot.slane %v5825, 4
        %v5828 = vrot.slane %v4947, 5
        %v5829 = vsel %vm2440, %v5827, %v5828
        %s5830 = scalar_lea.vmem [#allocation6], 512
        %v5831 = vld [vmem:[%s5830] sm:$0xf]
        %v5832 = vld [vmem:[%s5830 + $0x4] sm:$0xf]
        %v5833 = vld [vmem:[%s5830 + $0x8] sm:$0xf]
        %v5834 = vld [vmem:[%s5830 + $0xc] sm:$0xf]
        %v5835 = vld [vmem:[%s5830 + $0x10] sm:$0xf]
        %v5836 = vld [vmem:[%s5830 + $0x14] sm:$0xf]
        %v5837 = vld [vmem:[%s5830 + $0x18] sm:$0xf]
        %v5838 = vld [vmem:[%s5830 + $0x1c] sm:$0xf]
        %v5839 = vld [vmem:[%s5830 + $0x20] sm:$0xf]
        %v5840 = vld [vmem:[%s5830 + $0x24] sm:$0xf]
        %v5841 = vld [vmem:[%s5830 + $0x28] sm:$0xf]
        %v5842 = vld [vmem:[%s5830 + $0x2c] sm:$0xf]
        %v5843 = vld [vmem:[%s5830 + $0x30] sm:$0xf]
        %v5844 = vld [vmem:[%s5830 + $0x34] sm:$0xf]
        %v5845 = vld [vmem:[%s5830 + $0x38] sm:$0xf]
        %v5846 = vld [vmem:[%s5830 + $0x3c] sm:$0xf]
        %v5847 = vunpack.c.l.b16 %v5721
        %v5848 = vunpack.c.l.b16 %v5724
        %v5849 = vunpack.c.l.b16 %v5728
        %v5850 = vunpack.c.l.b16 %v5731
        %v5851 = vunpack.c.l.b16 %v5735
        %v5852 = vunpack.c.l.b16 %v5738
        %v5853 = vunpack.c.l.b16 %v5742
        %v5854 = vunpack.c.l.b16 %v5745
        %v5855 = vunpack.c.l.b16 %v5749
        %v5856 = vunpack.c.l.b16 %v5752
        %v5857 = vunpack.c.l.b16 %v5756
        %v5858 = vunpack.c.l.b16 %v5759
        %v5859 = vunpack.c.l.b16 %v5763
        %v5860 = vunpack.c.l.b16 %v5766
        %v5861 = vunpack.c.l.b16 %v5770
        %v5862 = vunpack.c.l.b16 %v5773
        %v5863 = vunpack.c.l.b16 %v5777
        %v5864 = vunpack.c.l.b16 %v5780
        %v5865 = vunpack.c.l.b16 %v5784
        %v5866 = vunpack.c.l.b16 %v5787
        %v5867 = vunpack.c.l.b16 %v5791
        %v5868 = vunpack.c.l.b16 %v5794
        %v5869 = vunpack.c.l.b16 %v5798
        %v5870 = vunpack.c.l.b16 %v5801
        %v5871 = vunpack.c.l.b16 %v5805
        %v5872 = vunpack.c.l.b16 %v5808
        %v5873 = vunpack.c.l.b16 %v5812
        %v5874 = vunpack.c.l.b16 %v5815
        %v5875 = vunpack.c.l.b16 %v5819
        %v5876 = vunpack.c.l.b16 %v5822
        %v5877 = vunpack.c.l.b16 %v5826
        %v5878 = vunpack.c.l.b16 %v5829
        %v5879 = vpack.c.b16 %v5848, %v5847
        %v5880 = vpack.c.b16 %v5850, %v5849
        %v5881 = vpack.c.b16 %v5852, %v5851
        %v5882 = vpack.c.b16 %v5854, %v5853
        %v5883 = vpack.c.b16 %v5856, %v5855
        %v5884 = vpack.c.b16 %v5858, %v5857
        %v5885 = vpack.c.b16 %v5860, %v5859
        %v5886 = vpack.c.b16 %v5862, %v5861
        %v5887 = vpack.c.b16 %v5864, %v5863
        %v5888 = vpack.c.b16 %v5866, %v5865
        %v5889 = vpack.c.b16 %v5868, %v5867
        %v5890 = vpack.c.b16 %v5870, %v5869
        %v5891 = vpack.c.b16 %v5872, %v5871
        %v5892 = vpack.c.b16 %v5874, %v5873
        %v5893 = vpack.c.b16 %v5876, %v5875
        %v5894 = vpack.c.b16 %v5878, %v5877
        %v5927 = vunpack.c.l.b16 %v5831
        %v5928 = vunpack.c.l.b16 %v5832
        %v5929 = vunpack.c.l.b16 %v5833
        %v5930 = vunpack.c.l.b16 %v5834
        %v5931 = vunpack.c.l.b16 %v5835
        %v5932 = vunpack.c.l.b16 %v5836
        %v5933 = vunpack.c.l.b16 %v5837
        %v5934 = vunpack.c.l.b16 %v5838
        %v5935 = vunpack.c.l.b16 %v5839
        %v5936 = vunpack.c.l.b16 %v5840
        %v5937 = vunpack.c.l.b16 %v5841
        %v5938 = vunpack.c.l.b16 %v5842
        %v5939 = vunpack.c.l.b16 %v5843
        %v5940 = vunpack.c.l.b16 %v5844
        %v5941 = vunpack.c.l.b16 %v5845
        %v5942 = vunpack.c.l.b16 %v5846
        %v5943 = vpack.c.b16 %v5928, %v5927
        %v5944 = vpack.c.b16 %v5930, %v5929
        %v5945 = vpack.c.b16 %v5932, %v5931
        %v5946 = vpack.c.b16 %v5934, %v5933
        %v5947 = vpack.c.b16 %v5936, %v5935
        %v5948 = vpack.c.b16 %v5938, %v5937
        %v5949 = vpack.c.b16 %v5940, %v5939
        %v5950 = vpack.c.b16 %v5942, %v5941
        %5959 = vmatprep.subr.bf16.mxu0 0
        %5960 = vmatpush1.bf16.msra.mxu0 %v5950
        %5961 = vmatprep.subr.bf16.mxu0 0
        %5962 = vmatpush1.bf16.msra.mxu0 %v5949
        %5963 = vmatprep.subr.bf16.mxu0 0
        %5964 = vmatpush1.bf16.msra.mxu0 %v5948
        %5965 = vmatprep.subr.bf16.mxu0 0
        %5966 = vmatpush1.bf16.msra.mxu0 %v5947
        %5967 = vmatprep.subr.bf16.mxu0 0
        %5968 = vmatpush1.bf16.msra.mxu0 %v5946
        %5969 = vmatprep.subr.bf16.mxu0 0
        %5970 = vmatpush1.bf16.msra.mxu0 %v5945
        %5971 = vmatprep.subr.bf16.mxu0 0
        %5972 = vmatpush1.bf16.msra.mxu0 %v5944
        %5973 = vmatprep.subr.bf16.mxu0 0
        %5974 = vmatpush1.bf16.msra.mxu0 %v5943
        %5975 = vmatprep.subr.bf16.mxu0 0
        %5976 = vmatpush2.bf16.msra.mxu0 0
        %5977 = vmatprep.subr.bf16.mxu0 0
        %5978 = vmatpush2.bf16.msra.mxu0 0
        %5979 = vmatprep.subr.bf16.mxu0 0
        %5980 = vmatpush2.bf16.msra.mxu0 0
        %5981 = vmatprep.subr.bf16.mxu0 0
        %5982 = vmatpush2.bf16.msra.mxu0 0
        %5983 = vmatprep.subr.bf16.mxu0 0
        %5984 = vmatpush2.bf16.msra.mxu0 0
        %5985 = vmatprep.subr.bf16.mxu0 0
        %5986 = vmatpush2.bf16.msra.mxu0 0
        %5987 = vmatprep.subr.bf16.mxu0 0
        %5988 = vmatpush2.bf16.msra.mxu0 0
        %5989 = vmatprep.subr.bf16.mxu0 0
        %5990 = vmatpush2.bf16.msra.mxu0 0
        %5991 = vmatprep.mubr.bf16.mxu0 0
        %5992 = vmatmul.mubr.bf16.gmra.mxu0 %v5879
        %v5993 = vpop.f32.mrf.mxu0
        %v5994 = vadd.f32 0.0, %v5993
        %v5995 = vpop.f32.mrf.mxu0
        %v5996 = vpop.f32.mrf.mxu0
        %v5997 = vadd.f32 0.0, %v5996
        %v5998 = vpop.f32.mrf.mxu0
        %5999 = vmatprep.mubr.bf16.mxu0 0
        %6000 = vmatmul.mubr.bf16.gmra.mxu0 %v5880
        %v6001 = vpop.f32.mrf.mxu0
        %v6002 = vadd.f32 0.0, %v6001
        %v6003 = vpop.f32.mrf.mxu0
        %v6004 = vpop.f32.mrf.mxu0
        %v6005 = vadd.f32 0.0, %v6004
        %v6006 = vpop.f32.mrf.mxu0
        %6007 = vmatprep.mubr.bf16.mxu0 0
        %6008 = vmatmul.mubr.bf16.gmra.mxu0 %v5881
        %v6009 = vpop.f32.mrf.mxu0
        %v6010 = vadd.f32 0.0, %v6009
        %v6011 = vpop.f32.mrf.mxu0
        %v6012 = vpop.f32.mrf.mxu0
        %v6013 = vadd.f32 0.0, %v6012
        %v6014 = vpop.f32.mrf.mxu0
        %6015 = vmatprep.mubr.bf16.mxu0 0
        %6016 = vmatmul.mubr.bf16.gmra.mxu0 %v5882
        %v6017 = vpop.f32.mrf.mxu0
        %v6018 = vadd.f32 0.0, %v6017
        %v6019 = vpop.f32.mrf.mxu0
        %v6020 = vpop.f32.mrf.mxu0
        %v6021 = vadd.f32 0.0, %v6020
        %v6022 = vpop.f32.mrf.mxu0
        %6023 = vmatprep.mubr.bf16.mxu0 0
        %6024 = vmatmul.mubr.bf16.gmra.mxu0 %v5883
        %v6025 = vpop.f32.mrf.mxu0
        %v6026 = vadd.f32 0.0, %v6025
        %v6027 = vpop.f32.mrf.mxu0
        %v6028 = vpop.f32.mrf.mxu0
        %v6029 = vadd.f32 0.0, %v6028
        %v6030 = vpop.f32.mrf.mxu0
        %6031 = vmatprep.mubr.bf16.mxu0 0
        %6032 = vmatmul.mubr.bf16.gmra.mxu0 %v5884
        %v6033 = vpop.f32.mrf.mxu0
        %v6034 = vadd.f32 0.0, %v6033
        %v6035 = vpop.f32.mrf.mxu0
        %v6036 = vpop.f32.mrf.mxu0
        %v6037 = vadd.f32 0.0, %v6036
        %v6038 = vpop.f32.mrf.mxu0
        %6039 = vmatprep.mubr.bf16.mxu0 0
        %6040 = vmatmul.mubr.bf16.gmra.mxu0 %v5885
        %v6041 = vpop.f32.mrf.mxu0
        %v6042 = vadd.f32 0.0, %v6041
        %v6043 = vpop.f32.mrf.mxu0
        %v6044 = vpop.f32.mrf.mxu0
        %v6045 = vadd.f32 0.0, %v6044
        %v6046 = vpop.f32.mrf.mxu0
        %6047 = vmatprep.mubr.bf16.mxu0 0
        %6048 = vmatmul.mubr.bf16.gmra.mxu0 %v5886
        %v6049 = vpop.f32.mrf.mxu0
        %v6050 = vadd.f32 0.0, %v6049
        %v6051 = vpop.f32.mrf.mxu0
        %v6052 = vpop.f32.mrf.mxu0
        %v6053 = vadd.f32 0.0, %v6052
        %v6054 = vpop.f32.mrf.mxu0
        %6055 = vmatprep.mubr.bf16.mxu0 0
        %6056 = vmatmul.mubr.bf16.gmra.mxu0 %v5887
        %v6057 = vpop.f32.mrf.mxu0
        %v6058 = vadd.f32 0.0, %v6057
        %v6059 = vpop.f32.mrf.mxu0
        %v6060 = vpop.f32.mrf.mxu0
        %v6061 = vadd.f32 0.0, %v6060
        %v6062 = vpop.f32.mrf.mxu0
        %6063 = vmatprep.mubr.bf16.mxu0 0
        %6064 = vmatmul.mubr.bf16.gmra.mxu0 %v5888
        %v6065 = vpop.f32.mrf.mxu0
        %v6066 = vadd.f32 0.0, %v6065
        %v6067 = vpop.f32.mrf.mxu0
        %v6068 = vpop.f32.mrf.mxu0
        %v6069 = vadd.f32 0.0, %v6068
        %v6070 = vpop.f32.mrf.mxu0
        %6071 = vmatprep.mubr.bf16.mxu0 0
        %6072 = vmatmul.mubr.bf16.gmra.mxu0 %v5889
        %v6073 = vpop.f32.mrf.mxu0
        %v6074 = vadd.f32 0.0, %v6073
        %v6075 = vpop.f32.mrf.mxu0
        %v6076 = vpop.f32.mrf.mxu0
        %v6077 = vadd.f32 0.0, %v6076
        %v6078 = vpop.f32.mrf.mxu0
        %6079 = vmatprep.mubr.bf16.mxu0 0
        %6080 = vmatmul.mubr.bf16.gmra.mxu0 %v5890
        %v6081 = vpop.f32.mrf.mxu0
        %v6082 = vadd.f32 0.0, %v6081
        %v6083 = vpop.f32.mrf.mxu0
        %v6084 = vpop.f32.mrf.mxu0
        %v6085 = vadd.f32 0.0, %v6084
        %v6086 = vpop.f32.mrf.mxu0
        %6087 = vmatprep.mubr.bf16.mxu0 0
        %6088 = vmatmul.mubr.bf16.gmra.mxu0 %v5891
        %v6089 = vpop.f32.mrf.mxu0
        %v6090 = vadd.f32 0.0, %v6089
        %v6091 = vpop.f32.mrf.mxu0
        %v6092 = vpop.f32.mrf.mxu0
        %v6093 = vadd.f32 0.0, %v6092
        %v6094 = vpop.f32.mrf.mxu0
        %6095 = vmatprep.mubr.bf16.mxu0 0
        %6096 = vmatmul.mubr.bf16.gmra.mxu0 %v5892
        %v6097 = vpop.f32.mrf.mxu0
        %v6098 = vadd.f32 0.0, %v6097
        %v6099 = vpop.f32.mrf.mxu0
        %v6100 = vpop.f32.mrf.mxu0
        %v6101 = vadd.f32 0.0, %v6100
        %v6102 = vpop.f32.mrf.mxu0
        %6103 = vmatprep.mubr.bf16.mxu0 0
        %6104 = vmatmul.mubr.bf16.gmra.mxu0 %v5893
        %v6105 = vpop.f32.mrf.mxu0
        %v6106 = vadd.f32 0.0, %v6105
        %v6107 = vpop.f32.mrf.mxu0
        %v6108 = vpop.f32.mrf.mxu0
        %v6109 = vadd.f32 0.0, %v6108
        %v6110 = vpop.f32.mrf.mxu0
        %6111 = vmatprep.mubr.bf16.mxu0 0
        %6112 = vmatmul.mubr.bf16.gmra.mxu0 %v5894
        %v6113 = vpop.f32.mrf.mxu0
        %v6114 = vadd.f32 0.0, %v6113
        %v6115 = vpop.f32.mrf.mxu0
        %v6116 = vpop.f32.mrf.mxu0
        %v6117 = vadd.f32 0.0, %v6116
        %v6118 = vpop.f32.mrf.mxu0
        %6119 = vdwg.mxu0
        %v6120 = vadd.f32 %v5622, %v5994
        %v6121 = vadd.f32 %v5623, %v5997
        %v6122 = vadd.f32 %v5624, %v6002
        %v6123 = vadd.f32 %v5625, %v6005
        %v6124 = vadd.f32 %v5626, %v6010
        %v6125 = vadd.f32 %v5627, %v6013
        %v6126 = vadd.f32 %v5628, %v6018
        %v6127 = vadd.f32 %v5629, %v6021
        %v6128 = vadd.f32 %v5630, %v6026
        %v6129 = vadd.f32 %v5631, %v6029
        %v6130 = vadd.f32 %v5632, %v6034
        %v6131 = vadd.f32 %v5633, %v6037
        %v6132 = vadd.f32 %v5634, %v6042
        %v6133 = vadd.f32 %v5635, %v6045
        %v6134 = vadd.f32 %v5636, %v6050
        %v6135 = vadd.f32 %v5637, %v6053
        %v6136 = vadd.f32 %v5638, %v6058
        %v6137 = vadd.f32 %v5639, %v6061
        %v6138 = vadd.f32 %v5640, %v6066
        %v6139 = vadd.f32 %v5641, %v6069
        %v6140 = vadd.f32 %v5642, %v6074
        %v6141 = vadd.f32 %v5643, %v6077
        %v6142 = vadd.f32 %v5644, %v6082
        %v6143 = vadd.f32 %v5645, %v6085
        %v6144 = vadd.f32 %v5646, %v6090
        %v6145 = vadd.f32 %v5647, %v6093
        %v6146 = vadd.f32 %v5648, %v6098
        %v6147 = vadd.f32 %v5649, %v6101
        %v6148 = vadd.f32 %v5650, %v6106
        %v6149 = vadd.f32 %v5651, %v6109
        %v6150 = vadd.f32 %v5652, %v6114
        %v6151 = vadd.f32 %v5653, %v6117
        %v6152 = vld [vmem:[%s5] sm:$0x1]
        %v6154 = vlaneseq
        %v6155 = vshrl.u32 %v6154, 7
        %v6156 = vsub.s32 0, %v6155
        %v6157 = vrot.slane %v6152, %v6156
        %v6159 = vadd.f32 %v6120, %v6157
        %v6160 = vadd.f32 %v6121, %v6157
        %v6161 = vadd.f32 %v6122, %v6157
        %v6162 = vadd.f32 %v6123, %v6157
        %v6163 = vadd.f32 %v6124, %v6157
        %v6164 = vadd.f32 %v6125, %v6157
        %v6165 = vadd.f32 %v6126, %v6157
        %v6166 = vadd.f32 %v6127, %v6157
        %v6167 = vadd.f32 %v6128, %v6157
        %v6168 = vadd.f32 %v6129, %v6157
        %v6169 = vadd.f32 %v6130, %v6157
        %v6170 = vadd.f32 %v6131, %v6157
        %v6171 = vadd.f32 %v6132, %v6157
        %v6172 = vadd.f32 %v6133, %v6157
        %v6173 = vadd.f32 %v6134, %v6157
        %v6174 = vadd.f32 %v6135, %v6157
        %v6175 = vadd.f32 %v6136, %v6157
        %v6176 = vadd.f32 %v6137, %v6157
        %v6177 = vadd.f32 %v6138, %v6157
        %v6178 = vadd.f32 %v6139, %v6157
        %v6179 = vadd.f32 %v6140, %v6157
        %v6180 = vadd.f32 %v6141, %v6157
        %v6181 = vadd.f32 %v6142, %v6157
        %v6182 = vadd.f32 %v6143, %v6157
        %v6183 = vadd.f32 %v6144, %v6157
        %v6184 = vadd.f32 %v6145, %v6157
        %v6185 = vadd.f32 %v6146, %v6157
        %v6186 = vadd.f32 %v6147, %v6157
        %v6187 = vadd.f32 %v6148, %v6157
        %v6188 = vadd.f32 %v6149, %v6157
        %v6189 = vadd.f32 %v6150, %v6157
        %v6190 = vadd.f32 %v6151, %v6157
        %v6191 = vld [vmem:[%s262] sm:$0xff]
        %v6192 = vld [vmem:[%s262 + $0x8] sm:$0xff]
        %v6193 = vld [vmem:[%s262 + $0x10] sm:$0xff]
        %v6194 = vld [vmem:[%s262 + $0x18] sm:$0xff]
        %v6195 = vld [vmem:[%s262 + $0x20] sm:$0xff]
        %v6196 = vld [vmem:[%s262 + $0x28] sm:$0xff]
        %v6197 = vld [vmem:[%s262 + $0x30] sm:$0xff]
        %v6198 = vld [vmem:[%s262 + $0x38] sm:$0xff]
        %v6199 = vld [vmem:[%s262 + $0x40] sm:$0xff]
        %v6200 = vld [vmem:[%s262 + $0x48] sm:$0xff]
        %v6201 = vld [vmem:[%s262 + $0x50] sm:$0xff]
        %v6202 = vld [vmem:[%s262 + $0x58] sm:$0xff]
        %v6203 = vld [vmem:[%s262 + $0x60] sm:$0xff]
        %v6204 = vld [vmem:[%s262 + $0x68] sm:$0xff]
        %v6205 = vld [vmem:[%s262 + $0x70] sm:$0xff]
        %v6206 = vld [vmem:[%s262 + $0x78] sm:$0xff]
        %v6207 = vld [vmem:[%s262 + $0x80] sm:$0xff]
        %v6208 = vld [vmem:[%s262 + $0x88] sm:$0xff]
        %v6209 = vld [vmem:[%s262 + $0x90] sm:$0xff]
        %v6210 = vld [vmem:[%s262 + $0x98] sm:$0xff]
        %v6211 = vld [vmem:[%s262 + $0xa0] sm:$0xff]
        %v6212 = vld [vmem:[%s262 + $0xa8] sm:$0xff]
        %v6213 = vld [vmem:[%s262 + $0xb0] sm:$0xff]
        %v6214 = vld [vmem:[%s262 + $0xb8] sm:$0xff]
        %v6215 = vld [vmem:[%s262 + $0xc0] sm:$0xff]
        %v6216 = vld [vmem:[%s262 + $0xc8] sm:$0xff]
        %v6217 = vld [vmem:[%s262 + $0xd0] sm:$0xff]
        %v6218 = vld [vmem:[%s262 + $0xd8] sm:$0xff]
        %v6219 = vld [vmem:[%s262 + $0xe0] sm:$0xff]
        %v6220 = vld [vmem:[%s262 + $0xe8] sm:$0xff]
        %v6221 = vld [vmem:[%s262 + $0xf0] sm:$0xff]
        %v6222 = vld [vmem:[%s262 + $0xf8] sm:$0xff]
        %v6223 = vadd.f32 %v6159, %v6191
        %v6224 = vadd.f32 %v6160, %v6192
        %v6225 = vadd.f32 %v6161, %v6193
        %v6226 = vadd.f32 %v6162, %v6194
        %v6227 = vadd.f32 %v6163, %v6195
        %v6228 = vadd.f32 %v6164, %v6196
        %v6229 = vadd.f32 %v6165, %v6197
        %v6230 = vadd.f32 %v6166, %v6198
        %v6231 = vadd.f32 %v6167, %v6199
        %v6232 = vadd.f32 %v6168, %v6200
        %v6233 = vadd.f32 %v6169, %v6201
        %v6234 = vadd.f32 %v6170, %v6202
        %v6235 = vadd.f32 %v6171, %v6203
        %v6236 = vadd.f32 %v6172, %v6204
        %v6237 = vadd.f32 %v6173, %v6205
        %v6238 = vadd.f32 %v6174, %v6206
        %v6239 = vadd.f32 %v6175, %v6207
        %v6240 = vadd.f32 %v6176, %v6208
        %v6241 = vadd.f32 %v6177, %v6209
        %v6242 = vadd.f32 %v6178, %v6210
        %v6243 = vadd.f32 %v6179, %v6211
        %v6244 = vadd.f32 %v6180, %v6212
        %v6245 = vadd.f32 %v6181, %v6213
        %v6246 = vadd.f32 %v6182, %v6214
        %v6247 = vadd.f32 %v6183, %v6215
        %v6248 = vadd.f32 %v6184, %v6216
        %v6249 = vadd.f32 %v6185, %v6217
        %v6250 = vadd.f32 %v6186, %v6218
        %v6251 = vadd.f32 %v6187, %v6219
        %v6252 = vadd.f32 %v6188, %v6220
        %v6253 = vadd.f32 %v6189, %v6221
        %v6254 = vadd.f32 %v6190, %v6222
        %v6255 = vmax.f32 %v6223, 0.0
        %v6256 = vmax.f32 %v6224, 0.0
        %v6257 = vmax.f32 %v6225, 0.0
        %v6258 = vmax.f32 %v6226, 0.0
        %v6259 = vmax.f32 %v6227, 0.0
        %v6260 = vmax.f32 %v6228, 0.0
        %v6261 = vmax.f32 %v6229, 0.0
        %v6262 = vmax.f32 %v6230, 0.0
        %v6263 = vmax.f32 %v6231, 0.0
        %v6264 = vmax.f32 %v6232, 0.0
        %v6265 = vmax.f32 %v6233, 0.0
        %v6266 = vmax.f32 %v6234, 0.0
        %v6267 = vmax.f32 %v6235, 0.0
        %v6268 = vmax.f32 %v6236, 0.0
        %v6269 = vmax.f32 %v6237, 0.0
        %v6270 = vmax.f32 %v6238, 0.0
        %v6271 = vmax.f32 %v6239, 0.0
        %v6272 = vmax.f32 %v6240, 0.0
        %v6273 = vmax.f32 %v6241, 0.0
        %v6274 = vmax.f32 %v6242, 0.0
        %v6275 = vmax.f32 %v6243, 0.0
        %v6276 = vmax.f32 %v6244, 0.0
        %v6277 = vmax.f32 %v6245, 0.0
        %v6278 = vmax.f32 %v6246, 0.0
        %v6279 = vmax.f32 %v6247, 0.0
        %v6280 = vmax.f32 %v6248, 0.0
        %v6281 = vmax.f32 %v6249, 0.0
        %v6282 = vmax.f32 %v6250, 0.0
        %v6283 = vmax.f32 %v6251, 0.0
        %v6284 = vmax.f32 %v6252, 0.0
        %v6285 = vmax.f32 %v6253, 0.0
        %v6286 = vmax.f32 %v6254, 0.0
        %6287 = vst [vmem:[%s299] sm:$0xff] %v6255
        %6288 = vst [vmem:[%s299 + $0x8] sm:$0xff] %v6256
        %6289 = vst [vmem:[%s299 + $0x10] sm:$0xff] %v6257
        %6290 = vst [vmem:[%s299 + $0x18] sm:$0xff] %v6258
        %6291 = vst [vmem:[%s299 + $0x20] sm:$0xff] %v6259
        %6292 = vst [vmem:[%s299 + $0x28] sm:$0xff] %v6260
        %6293 = vst [vmem:[%s299 + $0x30] sm:$0xff] %v6261
        %6294 = vst [vmem:[%s299 + $0x38] sm:$0xff] %v6262
        %6295 = vst [vmem:[%s299 + $0x40] sm:$0xff] %v6263
        %6296 = vst [vmem:[%s299 + $0x48] sm:$0xff] %v6264
        %6297 = vst [vmem:[%s299 + $0x50] sm:$0xff] %v6265
        %6298 = vst [vmem:[%s299 + $0x58] sm:$0xff] %v6266
        %6299 = vst [vmem:[%s299 + $0x60] sm:$0xff] %v6267
        %6300 = vst [vmem:[%s299 + $0x68] sm:$0xff] %v6268
        %6301 = vst [vmem:[%s299 + $0x70] sm:$0xff] %v6269
        %6302 = vst [vmem:[%s299 + $0x78] sm:$0xff] %v6270
        %6303 = vst [vmem:[%s299 + $0x80] sm:$0xff] %v6271
        %6304 = vst [vmem:[%s299 + $0x88] sm:$0xff] %v6272
        %6305 = vst [vmem:[%s299 + $0x90] sm:$0xff] %v6273
        %6306 = vst [vmem:[%s299 + $0x98] sm:$0xff] %v6274
        %6307 = vst [vmem:[%s299 + $0xa0] sm:$0xff] %v6275
        %6308 = vst [vmem:[%s299 + $0xa8] sm:$0xff] %v6276
        %6309 = vst [vmem:[%s299 + $0xb0] sm:$0xff] %v6277
        %6310 = vst [vmem:[%s299 + $0xb8] sm:$0xff] %v6278
        %6311 = vst [vmem:[%s299 + $0xc0] sm:$0xff] %v6279
        %6312 = vst [vmem:[%s299 + $0xc8] sm:$0xff] %v6280
        %6313 = vst [vmem:[%s299 + $0xd0] sm:$0xff] %v6281
        %6314 = vst [vmem:[%s299 + $0xd8] sm:$0xff] %v6282
        %6315 = vst [vmem:[%s299 + $0xe0] sm:$0xff] %v6283
        %6316 = vst [vmem:[%s299 + $0xe8] sm:$0xff] %v6284
        %6317 = vst [vmem:[%s299 + $0xf0] sm:$0xff] %v6285
        %6318 = vst [vmem:[%s299 + $0xf8] sm:$0xff] %v6286
        %s6319 = sand.u32 %s168, 1
        %s6320 = scalar_lea.sflag [#allocation5], %s6319
        %s6321 = sand.u32 %s168, 1
        %s6322 = smul.addr %s6321, 256
        %s6323 = scalar_lea.vmem [#allocation8], %s6322
        // Predicated region
        $region53: #{tpu_custom_call.1} parent=43 // pred_check
          %p6324 = pneg %p178
        $region54: #{tpu_custom_call.1} parent=43 // pred_check_branch
          %6326 = sbr.rel (%p6324) target = $region56
        $region55: #{tpu_custom_call.1} parent=43 // pred_region
          %s6328 = ssub.s32 4096, 4096
          %6329 = vsyncadd %s6320, %s6328
          %s6330 = smul.addr %s24, 32
          %s6331 = smul.addr %s6330, 128
          %s6332 = scalar_lea.hbm %s6, %s6331
          %s6333 = sshll.u32 %s6323, 4
          %s6334 = int_to_ptr.vmem [resolvable:$true] %s6333
          %6339 = dma.vmem_to_hbm [thread:$0]  %s6334, 4096, %s6332, %s6320, 128, 128, 8
        $region56: #{tpu_custom_call.1} parent=43 // pred_fallthru
          _
      $region44: #{tpu_custom_call.1} parent=5 // pred_fallthru
        _
      %p6340 = scmp.le.s32.totalorder 2, %s19
      // Predicated region
      $region57: #{tpu_custom_call.1} parent=5 // pred_check
        %p6341 = pneg %p6340
      $region58: #{tpu_custom_call.1} parent=5 // pred_check_branch
        %6343 = sbr.rel (%p6341) target = $region60
      $region59: #{tpu_custom_call.1} parent=5 // pred_region
        %s6344 = ssub.s32 %s19, 2
        // Predicated region
        $region61: #{tpu_custom_call.1} parent=59 // pred_check
          %p6345 = pneg %p184
        $region62: #{tpu_custom_call.1} parent=59 // pred_check_branch
          %6347 = sbr.rel (%p6345) target = $region64
        $region63: #{tpu_custom_call.1} parent=59 // pred_region
          %s6348 = sand.u32 %s169, 1
          %s6349 = scalar_lea.sflag [#allocation5], %s6348
          %s6350 = sand.u32 %s169, 1
          %s6351 = smul.addr %s6350, 256
          %s6352 = scalar_lea.vmem [#allocation8], %s6351
          %6353 = dma.done %s6349, 4096
        $region64: #{tpu_custom_call.1} parent=59 // pred_fallthru
          _
      $region60: #{tpu_custom_call.1} parent=5 // pred_fallthru
        _
    $region6: #{tpu_custom_call.1} parent=1 // loop_footer
      %s23 = sadd.s32 1, %s19
    $region7: #{tpu_custom_call.1} parent=1 // loop_footer_branch
      %18 = sbr.rel target = $region3
    $region8: #{tpu_custom_call.1} parent=1 // loop_exit
      _
    %6354 = vsyncpa [#allocation4], 1
    %s6355 = scalar_lea.sflag [#allocation4], 1
    %6356 = vsyncpa %s6355, 1
    %6357 = vsyncpa [#allocation7], 1
    %6358 = vsyncpa [#allocation5], 1
    %s6359 = scalar_lea.sflag [#allocation5], 1
    %6360 = vsyncpa %s6359, 1

</llo_original>
